<compile_context>
chip_gen: v6e
topology: v6e:2x2x1
jax: 0.10.0
libtpu: 0.0.40
codegen_flags: <defaults>
</compile_context>

<pallas_src>
import functools

import jax
import jax.numpy as jnp
from jax.experimental import pallas as pl
from jax.experimental.pallas import tpu as pltpu


# ----------------------------- plain-JAX glue -----------------------------

def get_meshgrid(H, W):
    """[1, 2, H, W]; channel 0 = x in [-1,1] along W, channel 1 = y along H."""
    ys = jnp.linspace(-1.0, 1.0, H, dtype=jnp.float32)
    xs = jnp.linspace(-1.0, 1.0, W, dtype=jnp.float32)
    gy, gx = jnp.meshgrid(ys, xs, indexing="ij")
    return jnp.stack([gx, gy], axis=0)[None]


def get_uv_mask(uv):
    """uv: [N,H,W,2] -> [N,1,H,W] float mask of in-range sample coordinates."""
    ok = jnp.all(jnp.abs(uv) <= 1.0, axis=-1)
    return ok.astype(jnp.float32)[:, None]


def backward_warp(img, uv):
    # TODO(synk): bilinear grid_sample is a data-dependent gather with no clean
    #             Pallas equivalent; kept in plain JAX.
    # img: [N,C,H,W], uv: [N,Ho,Wo,2] (x,y) in [-1,1], bilinear / zeros /
    # align_corners=True (F.grid_sample semantics).
    N, C, H, W = img.shape
    x = (uv[..., 0] + 1.0) * 0.5 * (W - 1)
    y = (uv[..., 1] + 1.0) * 0.5 * (H - 1)
    x0 = jnp.floor(x); x1 = x0 + 1.0
    y0 = jnp.floor(y); y1 = y0 + 1.0
    wx1 = x - x0; wx0 = 1.0 - wx1
    wy1 = y - y0; wy0 = 1.0 - wy1

    def gather(xi, yi):
        inb = ((xi >= 0) & (xi <= W - 1) & (yi >= 0) & (yi <= H - 1)).astype(img.dtype)
        xc = jnp.clip(xi, 0, W - 1).astype(jnp.int32)
        yc = jnp.clip(yi, 0, H - 1).astype(jnp.int32)
        g = jax.vmap(lambda im, yy, xx: im[:, yy, xx])(img, yc, xc)  # [N,C,Ho,Wo]
        return g * inb[:, None]

    return (gather(x0, y0) * (wx0 * wy0)[:, None]
            + gather(x1, y0) * (wx1 * wy0)[:, None]
            + gather(x0, y1) * (wx0 * wy1)[:, None]
            + gather(x1, y1) * (wx1 * wy1)[:, None])


def _tps_u(r2):
    eps = 1e-12
    return jnp.where(r2 > eps, r2 * jnp.log(jnp.maximum(r2, eps)), 0.0)


def fit_tps(src, tgt, valid, lambd):
    # TODO(synk): the (K+3)x(K+3) dense linear solve has no clean Pallas
    #             equivalent; kept in plain JAX (jnp.linalg.solve).
    # Fit the inverse TPS map src (warped coords) -> tgt (regular grid),
    # masked control points, smoothing lambd.
    K = src.shape[0]
    d2 = jnp.sum((src[:, None, :] - src[None, :, :]) ** 2, axis=-1)
    A = _tps_u(d2) + lambd * jnp.eye(K, dtype=src.dtype)
    # invalid control points: row -> identity row so w_i = 0
    A = jnp.where(valid[:, None] > 0.5, A, jnp.eye(K, dtype=src.dtype))
    P = jnp.concatenate([jnp.ones((K, 1), src.dtype), src], axis=1) * valid[:, None]
    top = jnp.concatenate([A, P], axis=1)
    bot = jnp.concatenate([P.T, 1e-6 * jnp.eye(3, dtype=src.dtype)], axis=1)
    L = jnp.concatenate([top, bot], axis=0)
    rhs = jnp.concatenate([tgt * valid[:, None], jnp.zeros((3, 2), src.dtype)], axis=0)
    sol = jnp.linalg.solve(L, rhs)           # [K+3, 2]
    return sol[:K].T, sol[K:].T              # wnl_T [2,K], waff [2,3] (bias,x,y)


# ------------------------------ tile selection ------------------------------

def _pick_lane_tile(total, target):
    """Largest divisor of `total` that is a multiple of 128 and <= target."""
    if total <= target:
        return total
    best = None
    t = 128
    while t <= target:
        if total % t == 0:
            best = t
        t += 128
    return best if best is not None else total


def _pick_sublane_tile(total, target):
    """Largest divisor of `total` that is a multiple of 8 and <= target."""
    if total <= target:
        return total
    best = None
    t = 8
    while t <= target:
        if total % t == 0:
            best = t
        t += 8
    return best if best is not None else total


# ------------------------------ Pallas kernels ------------------------------

def _tps_eval_kernel(ctrl_ref, q_ref, wnl_ref, waff_ref, out_ref):
    # ctrl_ref (1,TK,8): cols [cx, cy, |c|^2, 1, 0,0,0,0]
    # q_ref    (1,8,TQ): rows [-2qx, -2qy, 1, |q|^2, 0,0,0,0]
    # wnl_ref  (1,2,TK): TPS nonlinear weights | waff_ref (1,2,3): (bias, x, y)
    # out_ref  (1,2,TQ): accumulated across the control-point (last) grid axis.
    ki = pl.program_id(2)

    @pl.when(ki == 0)
    def _init():
        out_ref[...] = jnp.zeros_like(out_ref)

    c = ctrl_ref[0]                                                # [TK, 8]
    qa = q_ref[0]                                                  # [8, TQ]
    # Squared-distance matrix on the MXU:  r2 = |c|^2 + |q|^2 - 2 c.q
    r2 = jnp.dot(c, qa, preferred_element_type=jnp.float32)        # [TK, TQ]
    r2 = jnp.maximum(r2, 0.0)
    u = jnp.where(r2 > 1e-12, r2 * jnp.log(jnp.maximum(r2, 1e-12)), 0.0)
    out_ref[0] += jnp.dot(wnl_ref[0], u, preferred_element_type=jnp.float32)

    @pl.when(ki == pl.num_programs(2) - 1)
    def _finish():
        waff = waff_ref[0]                                         # [2, 3]
        qx = -0.5 * qa[0:1, :]
        qy = -0.5 * qa[1:2, :]
        out_ref[0] += waff[:, 0:1] + waff[:, 1:2] * qx + waff[:, 2:3] * qy


def _finalize_kernel(tps_ref, delta_ref, mask_ref, grid_ref, deform_ref, mout_ref,
                     *, inv_dx, inv_dy):
    # tps_ref   (1,2,3,SB,128): [channel, {f(c), f(c+dx), f(c+dy)}, pixel tiles]
    # delta_ref (1,2,SB,128) | mask_ref (1,1,SB,128) | grid_ref (1,2,SB,128)
    tc0 = tps_ref[0, 0, 0]; tc1 = tps_ref[0, 1, 0]
    tx0 = tps_ref[0, 0, 1]; tx1 = tps_ref[0, 1, 1]
    ty0 = tps_ref[0, 0, 2]; ty1 = tps_ref[0, 1, 2]
    a = (tx0 - tc0) * inv_dx
    b = (tx1 - tc1) * inv_dy
    c = (ty0 - tc0) * inv_dx
    d = (ty1 - tc1) * inv_dy
    de0 = delta_ref[0, 0]
    de1 = delta_ref[0, 1]
    m = mask_ref[0, 0]                                             # already 0/1
    neg = -2.0 * (1.0 - m)
    deform_ref[0, 0] = (grid_ref[0, 0] + a * de0 + c * de1) * m + neg
    deform_ref[0, 1] = (grid_ref[0, 1] + b * de0 + d * de1) * m + neg
    mout_ref[0, 0] = m


# ------------------------------ forward wrapper ------------------------------

def deformer_forward(delta, coord, mask, uv, lambd=100.0,
                     tk_target=512, tq_target=2048):
    N, H, W, _ = uv.shape
    HW = H * W
    # TODO(synk): pad H*W to a multiple of 128 (pad weights with zeros) instead
    #             of asserting, if odd resolutions are ever needed.
    assert HW % 128 == 0, f"H*W={HW} must be a multiple of 128 for the TPU layout"
    K = HW
    Q = 3 * HW
    dx = 2.0 / (W - 1)
    dy = 2.0 / (H - 1)

    delta_w = backward_warp(jnp.tile(delta, (N, 1, 1, 1)), uv)    # [N,2,H,W]
    coord_w = backward_warp(jnp.tile(coord, (N, 1, 1, 1)), uv)    # [N,2,H,W]
    mask_w = backward_warp(jnp.tile(mask, (N, 1, 1, 1)), uv)      # [N,1,H,W]
    mask_b = (mask_w > 0.5).astype(jnp.float32)

    grid = get_meshgrid(H, W)                                     # [1,2,H,W]

    # TPS fit (inverse map: warped coords -> regular grid), per batch element.
    # TODO(synk): compact control points to the valid-mask set before fit/eval
    #             (masked-point weights are exactly zero) to shrink K.
    src = coord_w.reshape(N, 2, HW).transpose(0, 2, 1)            # [N,K,2]
    tgt = jnp.broadcast_to(grid.reshape(1, 2, HW).transpose(0, 2, 1), (N, HW, 2))
    valid = mask_b.reshape(N, HW)
    wnl_T, waff = jax.vmap(fit_tps, in_axes=(0, 0, 0, None))(src, tgt, valid, lambd)

    # Queries = [coord, coord+(dx,0), coord+(0,dy)] (finite-difference Jacobian,
    # matching the reference module).
    # TODO(synk): analytic TPS gradients would cut K*Q work ~3x but would change
    #             the finite-difference semantics of the reference module.
    cw = coord_w.reshape(N, 2, HW)
    q = jnp.concatenate([cw, cw.at[:, 0, :].add(dx), cw.at[:, 1, :].add(dy)],
                        axis=2)                                   # [N,2,Q]
    qx, qy = q[:, 0], q[:, 1]
    zq = jnp.zeros_like(qx)
    q_aug = jnp.stack([-2.0 * qx, -2.0 * qy, jnp.ones_like(qx), qx * qx + qy * qy,
                       zq, zq, zq, zq], axis=1)                   # [N,8,Q]
    cx, cy = src[..., 0], src[..., 1]
    zk = jnp.zeros_like(cx)
    ctrl_aug = jnp.stack([cx, cy, cx * cx + cy * cy, jnp.ones_like(cx),
                          zk, zk, zk, zk], axis=-1)               # [N,K,8]

    TK = _pick_lane_tile(K, tk_target)
    TQ = _pick_lane_tile(Q, tq_target)
    n_q, n_k = Q // TQ, K // TK

    cost = pl.CostEstimate(
        flops=int(25 * N * K * Q),
        transcendentals=int(N * K * Q),
        bytes_accessed=int(4 * N * (8 * Q * n_k + 10 * K * n_q + 2 * Q)),
    )

    tps_out = pl.pallas_call(
        _tps_eval_kernel,
        out_shape=jax.ShapeDtypeStruct((N, 2, Q), jnp.float32),
        grid=(N, n_q, n_k),
        in_specs=[
            pl.BlockSpec((1, TK, 8), lambda n, qi, ki: (n, ki, 0)),
            pl.BlockSpec((1, 8, TQ), lambda n, qi, ki: (n, 0, qi)),
            pl.BlockSpec((1, 2, TK), lambda n, qi, ki: (n, 0, ki)),
            pl.BlockSpec((1, 2, 3), lambda n, qi, ki: (n, 0, 0)),
        ],
        out_specs=pl.BlockSpec((1, 2, TQ), lambda n, qi, ki: (n, 0, qi)),
        compiler_params=pltpu.CompilerParams(
            dimension_semantics=("parallel", "parallel", "arbitrary"),
            vmem_limit_bytes=48 * 1024 * 1024),
        cost_estimate=cost,
    )(ctrl_aug, q_aug, wnl_T, waff)

    # Finalize: sublane-dense [*, SB, 128] layout over pixels, tiled over HW.
    LP = HW // 128
    SB = _pick_sublane_tile(LP, 64)
    n_p = LP // SB

    tps5 = tps_out.reshape(N, 2, 3, LP, 128)      # per-segment lane-aligned blocks
    delta4 = delta_w.reshape(N, 2, LP, 128)
    mask4 = mask_b.reshape(N, 1, LP, 128)
    grid4 = grid.reshape(1, 2, LP, 128)

    fin = functools.partial(_finalize_kernel, inv_dx=1.0 / dx, inv_dy=1.0 / dy)
    deform4, mout4 = pl.pallas_call(
        fin,
        out_shape=(jax.ShapeDtypeStruct((N, 2, LP, 128), jnp.float32),
                   jax.ShapeDtypeStruct((N, 1, LP, 128), jnp.float32)),
        grid=(N, n_p),
        in_specs=[
            pl.BlockSpec((1, 2, 3, SB, 128), lambda n, pi: (n, 0, 0, pi, 0)),
            pl.BlockSpec((1, 2, SB, 128), lambda n, pi: (n, 0, pi, 0)),
            pl.BlockSpec((1, 1, SB, 128), lambda n, pi: (n, 0, pi, 0)),
            pl.BlockSpec((1, 2, SB, 128), lambda n, pi: (0, 0, pi, 0)),
        ],
        out_specs=(pl.BlockSpec((1, 2, SB, 128), lambda n, pi: (n, 0, pi, 0)),
                   pl.BlockSpec((1, 1, SB, 128), lambda n, pi: (n, 0, pi, 0))),
        compiler_params=pltpu.CompilerParams(
            dimension_semantics=("parallel", "parallel"),
            vmem_limit_bytes=32 * 1024 * 1024),
    )(tps5, delta4, mask4, grid4)

    deform = deform4.reshape(N, 2, H, W).transpose(0, 2, 3, 1)    # [N,H,W,2]
    mask_out = mout4.reshape(N, 1, H, W)
    return deform, mask_out


class Deformer:
    """JAX port of the PyTorch Deformer (scale_x/scale_y are unused in forward)."""

    def initialize(self, deform_uv, project_uv=None, mask=None):
        N, H, W, _ = deform_uv.shape
        xy = get_meshgrid(H, W)
        valid_mask = get_uv_mask(deform_uv)
        self.delta = (jnp.transpose(deform_uv, (0, 3, 1, 2)) - xy) * valid_mask
        self.coord = xy
        self.mask = mask if mask is not None else valid_mask
        if project_uv is not None:
            self.delta = backward_warp(self.delta, project_uv)
            self.coord = backward_warp(self.coord, project_uv)
            self.mask = mask if mask is not None else backward_warp(valid_mask, project_uv)

    def forward(self, uv):
        return deformer_forward(self.delta, self.coord, self.mask, uv)


if __name__ == "__main__":
    key = jax.random.PRNGKey(0)
    k1, k2 = jax.random.split(key)
    N, H, W = 2, 16, 16

    base = jnp.transpose(get_meshgrid(H, W), (0, 2, 3, 1))        # [1,H,W,2]
    deform_uv = jnp.clip(base + 0.05 * jax.random.normal(k1, (1, H, W, 2),
                                                         dtype=jnp.float32), -1.0, 1.0)
    uv = jnp.clip(jnp.broadcast_to(base, (N, H, W, 2))
                  + 0.05 * jax.random.normal(k2, (N, H, W, 2),
                                             dtype=jnp.float32), -1.0, 1.0)

    model = Deformer()
    model.initialize(deform_uv)
    deform, mask_out = model.forward(uv)
    jax.block_until_ready((deform, mask_out))

    assert deform.shape == (N, H, W, 2), deform.shape
    assert mask_out.shape == (N, 1, H, W), mask_out.shape
    assert bool(jnp.all(jnp.isfinite(deform)))
    print("KERNEL_OK")
</pallas_src>

<mosaic_0001>
module attributes {stable_mosaic.version = 11 : i64} {
  func.func @_tps_eval_kernel(%arg0: i32, %arg1: i32, %arg2: i32, %arg3: memref<1x256x8xf32, #tpu.memory_space<vmem>>, %arg4: memref<1x8x768xf32, #tpu.memory_space<vmem>>, %arg5: memref<1x2x256xf32, #tpu.memory_space<vmem>>, %arg6: memref<1x2x3xf32, #tpu.memory_space<vmem>>, %arg7: memref<1x2x768xf32, #tpu.memory_space<vmem>>) attributes {dimension_semantics = [#tpu.dimension_semantics<parallel>, #tpu.dimension_semantics<parallel>, #tpu.dimension_semantics<arbitrary>], iteration_bounds = array<i64: 2, 1, 1>, scalar_prefetch = 0 : i64, scratch_operands = 0 : i64, tpu.core_type = #tpu.core_type<tc>, window_params = [{transform_indices = @transform_0, window_bounds = array<i64: 1, 256, 8>}, {transform_indices = @transform_1, window_bounds = array<i64: 1, 8, 768>}, {transform_indices = @transform_2, window_bounds = array<i64: 1, 2, 256>}, {transform_indices = @transform_3, window_bounds = array<i64: 1, 2, 3>}, {transform_indices = @transform_4, window_bounds = array<i64: 1, 2, 768>}]} {
    %c0_i32 = arith.constant 0 : i32
    %0 = arith.cmpi eq, %arg2, %c0_i32 : i32
    %1 = arith.extui %0 : i1 to i32
    %c0_i32_0 = arith.constant 0 : i32
    %2 = arith.cmpi ne, %1, %c0_i32_0 : i32
    scf.if %2 {
      %cst_22 = arith.constant 0.000000e+00 : f32
      %30 = vector.broadcast %cst_22 : f32 to vector<1x2x768xf32>
      %c0_23 = arith.constant 0 : index
      %c0_24 = arith.constant 0 : index
      %c0_25 = arith.constant 0 : index
      %31 = vector.load %arg7[%c0_23, %c0_24, %c0_25] : memref<1x2x768xf32, #tpu.memory_space<vmem>>, vector<1x2x768xf32>
      tpu.vector_store %arg7[%c0_23, %c0_24, %c0_25], %30 {strides = array<i32>} : memref<1x2x768xf32, #tpu.memory_space<vmem>>, vector<1x2x768xf32>,
    } else {
    }
    %c0 = arith.constant 0 : index
    %c0_1 = arith.constant 0 : index
    %c0_2 = arith.constant 0 : index
    %3 = vector.load %arg3[%c0, %c0_1, %c0_2] : memref<1x256x8xf32, #tpu.memory_space<vmem>>, vector<1x256x8xf32>
    %4 = vector.shape_cast %3 : vector<1x256x8xf32> to vector<256x8xf32>
    %c0_3 = arith.constant 0 : index
    %c0_4 = arith.constant 0 : index
    %c0_5 = arith.constant 0 : index
    %5 = vector.load %arg4[%c0_3, %c0_4, %c0_5] : memref<1x8x768xf32, #tpu.memory_space<vmem>>, vector<1x8x768xf32>
    %6 = vector.shape_cast %5 : vector<1x8x768xf32> to vector<8x768xf32>
    %cst = arith.constant dense<0.000000e+00> : vector<256x768xf32>
    %7 = tpu.matmul %4, %6, %cst {dimension_numbers = #tpu.dot_dimension_numbers<[1], [0], [0], [1], [0, 0, 1, 1], [], []>} : vector<256x8xf32>, vector<8x768xf32>, vector<256x768xf32> -> vector<256x768xf32>
    %cst_6 = arith.constant 0.000000e+00 : f32
    %8 = vector.broadcast %cst_6 : f32 to vector<256x768xf32>
    %9 = arith.maximumf %7, %8 : vector<256x768xf32>
    %cst_7 = arith.constant 9.99999996E-13 : f32
    %10 = vector.broadcast %cst_7 : f32 to vector<256x768xf32>
    %11 = arith.cmpf ogt, %9, %10 : vector<256x768xf32>
    %cst_8 = arith.constant 9.99999996E-13 : f32
    %12 = vector.broadcast %cst_8 : f32 to vector<256x768xf32>
    %13 = arith.maximumf %9, %12 : vector<256x768xf32>
    %14 = math.log %13 : vector<256x768xf32>
    %15 = arith.mulf %9, %14 : vector<256x768xf32>
    %cst_9 = arith.constant 0.000000e+00 : f32
    %16 = vector.broadcast %cst_9 : f32 to vector<256x768xf32>
    %17 = arith.select %11, %15, %16 : vector<256x768xi1>, vector<256x768xf32>
    %c0_10 = arith.constant 0 : index
    %c0_11 = arith.constant 0 : index
    %c0_12 = arith.constant 0 : index
    %18 = vector.load %arg7[%c0_10, %c0_11, %c0_12] : memref<1x2x768xf32, #tpu.memory_space<vmem>>, vector<1x2x768xf32>
    %19 = vector.shape_cast %18 : vector<1x2x768xf32> to vector<2x768xf32>
    %c0_13 = arith.constant 0 : index
    %c0_14 = arith.constant 0 : index
    %c0_15 = arith.constant 0 : index
    %20 = vector.load %arg5[%c0_13, %c0_14, %c0_15] : memref<1x2x256xf32, #tpu.memory_space<vmem>>, vector<1x2x256xf32>
    %21 = vector.shape_cast %20 : vector<1x2x256xf32> to vector<2x256xf32>
    %cst_16 = arith.constant dense<0.000000e+00> : vector<2x768xf32>
    %22 = tpu.matmul %21, %17, %cst_16 {dimension_numbers = #tpu.dot_dimension_numbers<[1], [0], [0], [1], [0, 0, 1, 1], [], []>} : vector<2x256xf32>, vector<256x768xf32>, vector<2x768xf32> -> vector<2x768xf32>
    %23 = arith.addf %19, %22 : vector<2x768xf32>
    %c0_17 = arith.constant 0 : index
    %c0_18 = arith.constant 0 : index
    %c0_19 = arith.constant 0 : index
    %24 = vector.load %arg7[%c0_17, %c0_18, %c0_19] : memref<1x2x768xf32, #tpu.memory_space<vmem>>, vector<1x2x768xf32>
    %25 = vector.shape_cast %24 : vector<1x2x768xf32> to vector<2x768xf32>
    %26 = vector.shape_cast %23 : vector<2x768xf32> to vector<1x2x768xf32>
    tpu.vector_store %arg7[%c0_17, %c0_18, %c0_19], %26 {strides = array<i32>} : memref<1x2x768xf32, #tpu.memory_space<vmem>>, vector<1x2x768xf32>,
    %c0_i32_20 = arith.constant 0 : i32
    %27 = arith.cmpi eq, %arg2, %c0_i32_20 : i32
    %28 = arith.extui %27 : i1 to i32
    %c0_i32_21 = arith.constant 0 : i32
    %29 = arith.cmpi ne, %28, %c0_i32_21 : i32
    scf.if %29 {
      %c0_22 = arith.constant 0 : index
      %c0_23 = arith.constant 0 : index
      %c0_24 = arith.constant 0 : index
      %30 = vector.load %arg6[%c0_22, %c0_23, %c0_24] : memref<1x2x3xf32, #tpu.memory_space<vmem>>, vector<1x2x3xf32>
      %31 = vector.shape_cast %30 : vector<1x2x3xf32> to vector<2x3xf32>
      %32 = vector.extract_strided_slice %6 {offsets = [0, 0], sizes = [1, 768], strides = [1, 1]} : vector<8x768xf32> to vector<1x768xf32>
      %cst_25 = arith.constant -5.000000e-01 : f32
      %33 = vector.broadcast %cst_25 : f32 to vector<1x768xf32>
      %34 = arith.mulf %33, %32 : vector<1x768xf32>
      %35 = vector.extract_strided_slice %6 {offsets = [1, 0], sizes = [1, 768], strides = [1, 1]} : vector<8x768xf32> to vector<1x768xf32>
      %cst_26 = arith.constant -5.000000e-01 : f32
      %36 = vector.broadcast %cst_26 : f32 to vector<1x768xf32>
      %37 = arith.mulf %36, %35 : vector<1x768xf32>
      %c0_27 = arith.constant 0 : index
      %c0_28 = arith.constant 0 : index
      %c0_29 = arith.constant 0 : index
      %38 = vector.load %arg7[%c0_27, %c0_28, %c0_29] : memref<1x2x768xf32, #tpu.memory_space<vmem>>, vector<1x2x768xf32>
      %39 = vector.shape_cast %38 : vector<1x2x768xf32> to vector<2x768xf32>
      %40 = vector.extract_strided_slice %31 {offsets = [0, 0], sizes = [2, 1], strides = [1, 1]} : vector<2x3xf32> to vector<2x1xf32>
      %41 = vector.extract_strided_slice %31 {offsets = [0, 1], sizes = [2, 1], strides = [1, 1]} : vector<2x3xf32> to vector<2x1xf32>
      %42 = vector.broadcast %41 : vector<2x1xf32> to vector<2x768xf32>
      %43 = vector.broadcast %34 : vector<1x768xf32> to vector<2x768xf32>
      %44 = arith.mulf %42, %43 : vector<2x768xf32>
      %45 = vector.broadcast %40 : vector<2x1xf32> to vector<2x768xf32>
      %46 = arith.addf %45, %44 : vector<2x768xf32>
      %47 = vector.extract_strided_slice %31 {offsets = [0, 2], sizes = [2, 1], strides = [1, 1]} : vector<2x3xf32> to vector<2x1xf32>
      %48 = vector.broadcast %47 : vector<2x1xf32> to vector<2x768xf32>
      %49 = vector.broadcast %37 : vector<1x768xf32> to vector<2x768xf32>
      %50 = arith.mulf %48, %49 : vector<2x768xf32>
      %51 = arith.addf %46, %50 : vector<2x768xf32>
      %52 = arith.addf %39, %51 : vector<2x768xf32>
      %c0_30 = arith.constant 0 : index
      %c0_31 = arith.constant 0 : index
      %c0_32 = arith.constant 0 : index
      %53 = vector.load %arg7[%c0_30, %c0_31, %c0_32] : memref<1x2x768xf32, #tpu.memory_space<vmem>>, vector<1x2x768xf32>
      %54 = vector.shape_cast %53 : vector<1x2x768xf32> to vector<2x768xf32>
      %55 = vector.shape_cast %52 : vector<2x768xf32> to vector<1x2x768xf32>
      tpu.vector_store %arg7[%c0_30, %c0_31, %c0_32], %55 {strides = array<i32>} : memref<1x2x768xf32, #tpu.memory_space<vmem>>, vector<1x2x768xf32>,
    } else {
    }
    return
  }
  func.func @transform_0(%arg0: i32, %arg1: i32, %arg2: i32) -> (i32, i32, i32) {
    %c0_i32 = arith.constant 0 : i32
    %c0_i32_0 = arith.constant 0 : i32
    return %arg0, %arg2, %c0_i32 : i32, i32, i32
  }
  func.func @transform_1(%arg0: i32, %arg1: i32, %arg2: i32) -> (i32, i32, i32) {
    %c0_i32 = arith.constant 0 : i32
    %c0_i32_0 = arith.constant 0 : i32
    return %arg0, %c0_i32, %arg1 : i32, i32, i32
  }
  func.func @transform_2(%arg0: i32, %arg1: i32, %arg2: i32) -> (i32, i32, i32) {
    %c0_i32 = arith.constant 0 : i32
    %c0_i32_0 = arith.constant 0 : i32
    return %arg0, %c0_i32, %arg2 : i32, i32, i32
  }
  func.func @transform_3(%arg0: i32, %arg1: i32, %arg2: i32) -> (i32, i32, i32) {
    %c0_i32 = arith.constant 0 : i32
    %c0_i32_0 = arith.constant 0 : i32
    %c0_i32_1 = arith.constant 0 : i32
    return %arg0, %c0_i32, %c0_i32_0 : i32, i32, i32
  }
  func.func @transform_4(%arg0: i32, %arg1: i32, %arg2: i32) -> (i32, i32, i32) {
    %c0_i32 = arith.constant 0 : i32
    %c0_i32_0 = arith.constant 0 : i32
    return %arg0, %c0_i32, %arg1 : i32, i32, i32
  }
}

</mosaic_0001>

<llo_original>
// kernel: tpu_custom_call.1
$region0: #{tpu_custom_call.1}
  #allocation0 [shape = 'u32[]', space=smem, size = 0x4, offset = 0x4, fixed_abs, tag = 'smem constant byte address 0x4 - core index']
  #allocation1 [shape = 'u32[144,128]{1,0:T(1,128)}', space=vmem, size = 0x12000, scoped, tag = 'internal scratch']
  %s0 = inlined_call_operand.vmem [shape: f32[2,256,8], index: 0, kind: input, shape index: {}]
  %s1 = inlined_call_operand.vmem [shape: f32[2,8,768], index: 1, kind: input, shape index: {}]
  %s2 = inlined_call_operand.vmem [shape: f32[2,2,256], index: 2, kind: input, shape index: {}]
  %s3 = inlined_call_operand.vmem [shape: f32[2,2,3], index: 3, kind: input, shape index: {}]
  %s4 = inlined_call_operand.hbm [shape: f32[2,2,768], index: 4, kind: output, shape index: {}]
  %s5 = sld [smem:[#allocation0]]
  $region57: #{tpu_custom_call.1} parent=0
    _
  %s7 = ssub.s32 1, %s5
  %s8 = scalar_select 0, %s7, %s5
  $region1: #{tpu_custom_call.1} parent=0
    #allocation2 [shape = 'u8[12288]{0}', space=vmem, size = 0x3000, scoped, tag = 'output window, operand 0']
    #allocation3 [shape = 's32[2]{0}', space=sflag, size = 0x8, scoped, tag = 'scoped memory for tpu_custom_call.1']
    %9 = vsyncpa [#allocation3], 0
    %s10 = scalar_lea.sflag [#allocation3], 1
    %11 = vsyncpa %s10, 0
    loop: start=0, step=1, limit=4
    $region2: #{tpu_custom_call.1} parent=1 // loop_pre_header
      _
    $region3: #{tpu_custom_call.1} parent=1 // loop_header
      %s13 = sphi 0, %s17
      %p14 = scmp.ge.s32.totalorder %s13, 4
      %s20 = sphi 0, %s39
      %s21 = sphi 0, %s35
      %s22 = sphi 0, %s31
      %s23 = sphi 0, %s20
      %s24 = sphi 0, %s21
      %s25 = sphi 0, %s22
      %s26 = sphi 0, %s23
      %s27 = sphi 0, %s24
      %s28 = sphi 0, %s25
      %s44 = sphi 0, %s46
      %s47 = sphi 0, %s44
      %s48 = sphi 0, %s47
      %s64 = sphi 0, %s48
      %s72 = sphi 0, %s74
      %s75 = sphi 0, %s72
      %s76 = sphi 0, %s75
      %s92 = sphi 0, %s76
      %s100 = sphi 0, %s102
      %s103 = sphi 0, %s100
      %s104 = sphi 0, %s103
      %s120 = sphi 0, %s104
      %s126 = sphi 0, %s128
      %s129 = sphi 0, %s126
      %s130 = sphi 0, %s129
      %s146 = sphi 0, %s130
      %s154 = sphi 0, %s156
      %s157 = sphi 0, %s154
      %s158 = sphi 0, %s157
      %s174 = sphi 0, %s158
    $region4: #{tpu_custom_call.1} parent=1 // loop_header_branch
      %16 = sbr.rel (%p14) target = $region8
    $region5: #{tpu_custom_call.1} parent=1 // loop_body
      %s18 = ssub.s32 %s13, 1
      %s19 = ssub.s32 %s13, 2
      %s29 = sadd.s32 1, %s22
      %p30 = scmp.ge.s32.totalorder %s29, 1
      %s31 = scalar_select %p30, 0, %s29
      %s32 = sadd.s32 1, %s21
      %s33 = scalar_select %p30, %s32, %s21
      %p34 = scmp.ge.s32.totalorder %s33, 1
      %s35 = scalar_select %p34, 0, %s33
      %s36 = sadd.s32 1, %s20
      %s37 = scalar_select %p34, %s36, %s20
      %p38 = scmp.ge.s32.totalorder %s37, 2
      %s39 = scalar_select %p38, 0, %s37
      %s40 = ssub.s32 %s20, %s39
      %s41 = ssub.s32 %s22, %s31
      %s42 = sor.u32 %s40, %s41
      %p43 = scmp.eq.s32.totalorder %s42, 0
      %s45 = sadd.s32 %s44, 1
      %s46 = scalar_select %p43, %s44, %s45
      %p49 = pneg %p43
      %p50 = scmp.eq.s32.totalorder %s13, 1
      %p51 = por %p49, %p50
      %p52 = scmp.ne.s32.totalorder %s44, %s47
      %p53 = scmp.eq.s32.totalorder %s13, 0
      %p54 = por %p52, %p53
      %p55 = scmp.ne.s32.totalorder %s44, %s47
      %p56 = scmp.eq.s32.totalorder %s18, 1
      %p57 = por %p55, %p56
      %p58 = scmp.ne.s32.totalorder %s47, %s48
      %p59 = scmp.eq.s32.totalorder %s18, 0
      %p60 = por %p58, %p59
      %p61 = scmp.ne.s32.totalorder %s47, %s48
      %p62 = scmp.eq.s32.totalorder %s19, 1
      %p63 = por %p61, %p62
      %p65 = scmp.ne.s32.totalorder %s48, %s64
      %p66 = scmp.eq.s32.totalorder %s19, 0
      %p67 = por %p65, %p66
      %s68 = ssub.s32 %s20, %s39
      %s69 = ssub.s32 %s21, %s35
      %s70 = sor.u32 %s68, %s69
      %p71 = scmp.eq.s32.totalorder %s70, 0
      %s73 = sadd.s32 %s72, 1
      %s74 = scalar_select %p71, %s72, %s73
      %p77 = pneg %p71
      %p78 = scmp.eq.s32.totalorder %s13, 1
      %p79 = por %p77, %p78
      %p80 = scmp.ne.s32.totalorder %s72, %s75
      %p81 = scmp.eq.s32.totalorder %s13, 0
      %p82 = por %p80, %p81
      %p83 = scmp.ne.s32.totalorder %s72, %s75
      %p84 = scmp.eq.s32.totalorder %s18, 1
      %p85 = por %p83, %p84
      %p86 = scmp.ne.s32.totalorder %s75, %s76
      %p87 = scmp.eq.s32.totalorder %s18, 0
      %p88 = por %p86, %p87
      %p89 = scmp.ne.s32.totalorder %s75, %s76
      %p90 = scmp.eq.s32.totalorder %s19, 1
      %p91 = por %p89, %p90
      %p93 = scmp.ne.s32.totalorder %s76, %s92
      %p94 = scmp.eq.s32.totalorder %s19, 0
      %p95 = por %p93, %p94
      %s96 = ssub.s32 %s20, %s39
      %s97 = ssub.s32 %s22, %s31
      %s98 = sor.u32 %s96, %s97
      %p99 = scmp.eq.s32.totalorder %s98, 0
      %s101 = sadd.s32 %s100, 1
      %s102 = scalar_select %p99, %s100, %s101
      %p105 = pneg %p99
      %p106 = scmp.eq.s32.totalorder %s13, 1
      %p107 = por %p105, %p106
      %p108 = scmp.ne.s32.totalorder %s100, %s103
      %p109 = scmp.eq.s32.totalorder %s13, 0
      %p110 = por %p108, %p109
      %p111 = scmp.ne.s32.totalorder %s100, %s103
      %p112 = scmp.eq.s32.totalorder %s18, 1
      %p113 = por %p111, %p112
      %p114 = scmp.ne.s32.totalorder %s103, %s104
      %p115 = scmp.eq.s32.totalorder %s18, 0
      %p116 = por %p114, %p115
      %p117 = scmp.ne.s32.totalorder %s103, %s104
      %p118 = scmp.eq.s32.totalorder %s19, 1
      %p119 = por %p117, %p118
      %p121 = scmp.ne.s32.totalorder %s104, %s120
      %p122 = scmp.eq.s32.totalorder %s19, 0
      %p123 = por %p121, %p122
      %s124 = ssub.s32 %s20, %s39
      %p125 = scmp.eq.s32.totalorder %s124, 0
      %s127 = sadd.s32 %s126, 1
      %s128 = scalar_select %p125, %s126, %s127
      %p131 = pneg %p125
      %p132 = scmp.eq.s32.totalorder %s13, 1
      %p133 = por %p131, %p132
      %p134 = scmp.ne.s32.totalorder %s126, %s129
      %p135 = scmp.eq.s32.totalorder %s13, 0
      %p136 = por %p134, %p135
      %p137 = scmp.ne.s32.totalorder %s126, %s129
      %p138 = scmp.eq.s32.totalorder %s18, 1
      %p139 = por %p137, %p138
      %p140 = scmp.ne.s32.totalorder %s129, %s130
      %p141 = scmp.eq.s32.totalorder %s18, 0
      %p142 = por %p140, %p141
      %p143 = scmp.ne.s32.totalorder %s129, %s130
      %p144 = scmp.eq.s32.totalorder %s19, 1
      %p145 = por %p143, %p144
      %p147 = scmp.ne.s32.totalorder %s130, %s146
      %p148 = scmp.eq.s32.totalorder %s19, 0
      %p149 = por %p147, %p148
      %s150 = ssub.s32 %s20, %s39
      %s151 = ssub.s32 %s21, %s35
      %s152 = sor.u32 %s150, %s151
      %p153 = scmp.eq.s32.totalorder %s152, 0
      %s155 = sadd.s32 %s154, 1
      %s156 = scalar_select %p153, %s154, %s155
      %p159 = pneg %p153
      %p160 = scmp.eq.s32.totalorder %s13, 1
      %p161 = por %p159, %p160
      %p162 = scmp.ne.s32.totalorder %s154, %s157
      %p163 = scmp.eq.s32.totalorder %s13, 0
      %p164 = por %p162, %p163
      %p165 = scmp.ne.s32.totalorder %s154, %s157
      %p166 = scmp.eq.s32.totalorder %s18, 1
      %p167 = por %p165, %p166
      %p168 = scmp.ne.s32.totalorder %s157, %s158
      %p169 = scmp.eq.s32.totalorder %s18, 0
      %p170 = por %p168, %p169
      %p171 = scmp.ne.s32.totalorder %s157, %s158
      %p172 = scmp.eq.s32.totalorder %s19, 1
      %p173 = por %p171, %p172
      %p175 = scmp.ne.s32.totalorder %s158, %s174
      %p176 = scmp.eq.s32.totalorder %s19, 0
      %p177 = por %p175, %p176
      %p178 = scmp.le.s32.totalorder 1, %s13
      %p179 = scmp.lt.s32.totalorder %s13, 3
      %p180 = pnand %p178, %p179
      %p181 = pneg %p180
      // Predicated region
      $region9: #{tpu_custom_call.1} parent=5 // pred_check
        _
      $region10: #{tpu_custom_call.1} parent=5 // pred_check_branch
        %183 = sbr.rel (%p180) target = $region12
      $region11: #{tpu_custom_call.1} parent=5 // pred_region
        %s184 = ssub.s32 %s13, 1
      $region12: #{tpu_custom_call.1} parent=5 // pred_fallthru
        _
      %p185 = scmp.lt.s32.totalorder %s13, 2
      // Predicated region
      $region13: #{tpu_custom_call.1} parent=5 // pred_check
        %p186 = pneg %p185
      $region14: #{tpu_custom_call.1} parent=5 // pred_check_branch
        %188 = sbr.rel (%p186) target = $region16
      $region15: #{tpu_custom_call.1} parent=5 // pred_region
        // Predicated region
        $region17: #{tpu_custom_call.1} parent=15 // pred_check
          %p189 = pneg %p54
        $region18: #{tpu_custom_call.1} parent=15 // pred_check_branch
          %191 = sbr.rel (%p189) target = $region20
        $region19: #{tpu_custom_call.1} parent=15 // pred_region
          %s192 = smul.u32 32, %s22
          %p193 = scmp.lt.s32.totalorder %s20, 1
          %s194 = scalar_select %p193, %s20, 1
          %p195 = scmp.lt.s32.totalorder %s192, 31
          %s196 = scalar_select %p195, %s192, 31
          %s197 = smul.addr %s194, 32
          %s198 = sadd.s32 %s196, %s197
          %s199 = smul.addr %s198, 8
          %s200 = scalar_lea.vmem %s0, %s199
          %s201 = smul.u32 32, %s22
        $region20: #{tpu_custom_call.1} parent=15 // pred_fallthru
          _
        // Predicated region
        $region21: #{tpu_custom_call.1} parent=15 // pred_check
          %p202 = pneg %p82
        $region22: #{tpu_custom_call.1} parent=15 // pred_check_branch
          %204 = sbr.rel (%p202) target = $region24
        $region23: #{tpu_custom_call.1} parent=15 // pred_region
          %s205 = smul.u32 6, %s21
          %p206 = scmp.lt.s32.totalorder %s20, 1
          %s207 = scalar_select %p206, %s20, 1
          %p208 = scmp.lt.s32.totalorder %s205, 5
          %s209 = scalar_select %p208, %s205, 5
          %s210 = smul.addr %s207, 6
          %s211 = sadd.s32 %s209, %s210
          %s212 = smul.addr %s211, 8
          %s213 = scalar_lea.vmem %s1, %s212
          %s214 = smul.u32 6, %s21
        $region24: #{tpu_custom_call.1} parent=15 // pred_fallthru
          _
        // Predicated region
        $region25: #{tpu_custom_call.1} parent=15 // pred_check
          %p215 = pneg %p110
        $region26: #{tpu_custom_call.1} parent=15 // pred_check_branch
          %217 = sbr.rel (%p215) target = $region28
        $region27: #{tpu_custom_call.1} parent=15 // pred_region
          %s218 = smul.u32 2, %s22
          %p219 = scmp.lt.s32.totalorder %s20, 1
          %s220 = scalar_select %p219, %s20, 1
          %p221 = scmp.lt.s32.totalorder %s218, 1
          %s222 = scalar_select %p221, %s218, 1
          %s223 = smul.addr %s220, 2
          %s224 = sadd.s32 %s222, %s223
          %s225 = smul.addr %s224, 2
          %s226 = scalar_lea.vmem %s2, %s225
          %s227 = smul.u32 2, %s22
        $region28: #{tpu_custom_call.1} parent=15 // pred_fallthru
          _
        // Predicated region
        $region29: #{tpu_custom_call.1} parent=15 // pred_check
          %p228 = pneg %p136
        $region30: #{tpu_custom_call.1} parent=15 // pred_check_branch
          %230 = sbr.rel (%p228) target = $region32
        $region31: #{tpu_custom_call.1} parent=15 // pred_region
          %p231 = scmp.lt.s32.totalorder %s20, 1
          %s232 = scalar_select %p231, %s20, 1
          %s233 = smul.addr %s232, 2
          %s234 = scalar_lea.vmem %s3, %s233
        $region32: #{tpu_custom_call.1} parent=15 // pred_fallthru
          _
      $region16: #{tpu_custom_call.1} parent=5 // pred_fallthru
        _
      %p235 = scmp.le.s32.totalorder 1, %s13
      %p236 = scmp.lt.s32.totalorder %s13, 3
      %p237 = pnand %p235, %p236
      %p238 = pneg %p237
      // Predicated region
      $region33: #{tpu_custom_call.1} parent=5 // pred_check
        _
      $region34: #{tpu_custom_call.1} parent=5 // pred_check_branch
        %240 = sbr.rel (%p237) target = $region36
      $region35: #{tpu_custom_call.1} parent=5 // pred_region
        %s241 = ssub.s32 %s13, 1
        %s242 = smul.u32 32, %s25
        %p243 = scmp.lt.s32.totalorder %s23, 1
        %s244 = scalar_select %p243, %s23, 1
        %p245 = scmp.lt.s32.totalorder %s242, 31
        %s246 = scalar_select %p245, %s242, 31
        %s247 = smul.addr %s244, 32
        %s248 = sadd.s32 %s246, %s247
        %s249 = smul.addr %s248, 8
        %s250 = scalar_lea.vmem %s0, %s249
        %p251 = pneg %p60
        %p252 = pneg %p57
        %s253 = smul.u32 6, %s24
        %p254 = scmp.lt.s32.totalorder %s23, 1
        %s255 = scalar_select %p254, %s23, 1
        %p256 = scmp.lt.s32.totalorder %s253, 5
        %s257 = scalar_select %p256, %s253, 5
        %s258 = smul.addr %s255, 6
        %s259 = sadd.s32 %s257, %s258
        %s260 = smul.addr %s259, 8
        %s261 = scalar_lea.vmem %s1, %s260
        %p262 = pneg %p88
        %p263 = pneg %p85
        %s264 = smul.u32 2, %s25
        %p265 = scmp.lt.s32.totalorder %s23, 1
        %s266 = scalar_select %p265, %s23, 1
        %p267 = scmp.lt.s32.totalorder %s264, 1
        %s268 = scalar_select %p267, %s264, 1
        %s269 = smul.addr %s266, 2
        %s270 = sadd.s32 %s268, %s269
        %s271 = smul.addr %s270, 2
        %s272 = scalar_lea.vmem %s2, %s271
        %p273 = pneg %p116
        %p274 = pneg %p113
        %p275 = scmp.lt.s32.totalorder %s23, 1
        %s276 = scalar_select %p275, %s23, 1
        %s277 = smul.addr %s276, 2
        %s278 = scalar_lea.vmem %s3, %s277
        %p279 = pneg %p142
        %p280 = pneg %p139
        %p281 = pneg %p170
        %p282 = pneg %p167
        %s283 = sand.u32 %s157, 1
        %s284 = scalar_lea.sflag [#allocation3], %s283
        %s285 = sand.u32 %s157, 1
        %s286 = smul.addr %s285, 12
        %s287 = scalar_lea.vmem [#allocation2], %s286
        %s288 = smul.u32 32, %s25
        %p289 = scmp.lt.s32.totalorder %s23, 1
        %s290 = scalar_select %p289, %s23, 1
        %p291 = scmp.lt.s32.totalorder %s288, 31
        %s292 = scalar_select %p291, %s288, 31
        %s293 = smul.addr %s290, 32
        %s294 = sadd.s32 %s292, %s293
        %s295 = smul.addr %s294, 8
        %s296 = scalar_lea.vmem %s0, %s295
        %s297 = smul.u32 32, %s25
        %s298 = smul.u32 6, %s24
        %p299 = scmp.lt.s32.totalorder %s23, 1
        %s300 = scalar_select %p299, %s23, 1
        %p301 = scmp.lt.s32.totalorder %s298, 5
        %s302 = scalar_select %p301, %s298, 5
        %s303 = smul.addr %s300, 6
        %s304 = sadd.s32 %s302, %s303
        %s305 = smul.addr %s304, 8
        %s306 = scalar_lea.vmem %s1, %s305
        %s307 = smul.u32 6, %s24
        %s308 = smul.u32 2, %s25
        %p309 = scmp.lt.s32.totalorder %s23, 1
        %s310 = scalar_select %p309, %s23, 1
        %p311 = scmp.lt.s32.totalorder %s308, 1
        %s312 = scalar_select %p311, %s308, 1
        %s313 = smul.addr %s310, 2
        %s314 = sadd.s32 %s312, %s313
        %s315 = smul.addr %s314, 2
        %s316 = scalar_lea.vmem %s2, %s315
        %s317 = smul.u32 2, %s25
        %p318 = scmp.lt.s32.totalorder %s23, 1
        %s319 = scalar_select %p318, %s23, 1
        %s320 = smul.addr %s319, 2
        %s321 = scalar_lea.vmem %s3, %s320
        %s322 = smul.u32 6, %s24
        %p323 = scmp.eq.s32.totalorder %s25, 0
        // Predicated region
        $region37: #{tpu_custom_call.1} parent=35 // pred_check
          %p324 = pneg %p323
        $region38: #{tpu_custom_call.1} parent=35 // pred_check_branch
          %326 = sbr.rel (%p324) target = $region40
        $region39: #{tpu_custom_call.1} parent=35 // pred_region
          %327 = vst [vmem:[%s287] sm:$0xff] 0.0
          %328 = vst [vmem:[%s287 + $0x8] sm:$0xf] 0.0
        $region40: #{tpu_custom_call.1} parent=35 // pred_fallthru
          _
        %v329 = vld [vmem:[%s296] sm:$0xff]
        %v330 = vld [vmem:[%s296 + $0x8] sm:$0xff]
        %v331 = vld [vmem:[%s296 + $0x10] sm:$0xff]
        %v332 = vld [vmem:[%s296 + $0x18] sm:$0xff]
        %v333 = vld [vmem:[%s296 + $0x20] sm:$0xff]
        %v334 = vld [vmem:[%s296 + $0x28] sm:$0xff]
        %v335 = vld [vmem:[%s296 + $0x30] sm:$0xff]
        %v336 = vld [vmem:[%s296 + $0x38] sm:$0xff]
        %v337 = vld [vmem:[%s296 + $0x40] sm:$0xff]
        %v338 = vld [vmem:[%s296 + $0x48] sm:$0xff]
        %v339 = vld [vmem:[%s296 + $0x50] sm:$0xff]
        %v340 = vld [vmem:[%s296 + $0x58] sm:$0xff]
        %v341 = vld [vmem:[%s296 + $0x60] sm:$0xff]
        %v342 = vld [vmem:[%s296 + $0x68] sm:$0xff]
        %v343 = vld [vmem:[%s296 + $0x70] sm:$0xff]
        %v344 = vld [vmem:[%s296 + $0x78] sm:$0xff]
        %v345 = vld [vmem:[%s296 + $0x80] sm:$0xff]
        %v346 = vld [vmem:[%s296 + $0x88] sm:$0xff]
        %v347 = vld [vmem:[%s296 + $0x90] sm:$0xff]
        %v348 = vld [vmem:[%s296 + $0x98] sm:$0xff]
        %v349 = vld [vmem:[%s296 + $0xa0] sm:$0xff]
        %v350 = vld [vmem:[%s296 + $0xa8] sm:$0xff]
        %v351 = vld [vmem:[%s296 + $0xb0] sm:$0xff]
        %v352 = vld [vmem:[%s296 + $0xb8] sm:$0xff]
        %v353 = vld [vmem:[%s296 + $0xc0] sm:$0xff]
        %v354 = vld [vmem:[%s296 + $0xc8] sm:$0xff]
        %v355 = vld [vmem:[%s296 + $0xd0] sm:$0xff]
        %v356 = vld [vmem:[%s296 + $0xd8] sm:$0xff]
        %v357 = vld [vmem:[%s296 + $0xe0] sm:$0xff]
        %v358 = vld [vmem:[%s296 + $0xe8] sm:$0xff]
        %v359 = vld [vmem:[%s296 + $0xf0] sm:$0xff]
        %v360 = vld [vmem:[%s296 + $0xf8] sm:$0xff]
        %v361 = vld [vmem:[%s306] sm:$0xff]
        %v362 = vld [vmem:[%s306 + $0x8] sm:$0xff]
        %v363 = vld [vmem:[%s306 + $0x10] sm:$0xff]
        %v364 = vld [vmem:[%s306 + $0x18] sm:$0xff]
        %v365 = vld [vmem:[%s306 + $0x20] sm:$0xff]
        %v366 = vld [vmem:[%s306 + $0x28] sm:$0xff]
        %vm367 = vcmask 64512
        %v369 = vsel %vm367, %v329, 0
        %v372 = vsel %vm367, %v330, 0
        %v375 = vsel %vm367, %v331, 0
        %v378 = vsel %vm367, %v332, 0
        %v381 = vsel %vm367, %v333, 0
        %v384 = vsel %vm367, %v334, 0
        %v387 = vsel %vm367, %v335, 0
        %v390 = vsel %vm367, %v336, 0
        %v393 = vsel %vm367, %v337, 0
        %v396 = vsel %vm367, %v338, 0
        %v399 = vsel %vm367, %v339, 0
        %v402 = vsel %vm367, %v340, 0
        %v405 = vsel %vm367, %v341, 0
        %v408 = vsel %vm367, %v342, 0
        %v411 = vsel %vm367, %v343, 0
        %v414 = vsel %vm367, %v344, 0
        %v417 = vsel %vm367, %v345, 0
        %v420 = vsel %vm367, %v346, 0
        %v423 = vsel %vm367, %v347, 0
        %v426 = vsel %vm367, %v348, 0
        %v429 = vsel %vm367, %v349, 0
        %v432 = vsel %vm367, %v350, 0
        %v435 = vsel %vm367, %v351, 0
        %v438 = vsel %vm367, %v352, 0
        %v441 = vsel %vm367, %v353, 0
        %v444 = vsel %vm367, %v354, 0
        %v447 = vsel %vm367, %v355, 0
        %v450 = vsel %vm367, %v356, 0
        %v453 = vsel %vm367, %v357, 0
        %v456 = vsel %vm367, %v358, 0
        %v459 = vsel %vm367, %v359, 0
        %v462 = vsel %vm367, %v360, 0
        %464 = vmatprep.subr.mxu0 0.0
        %465 = vmatpush1.msra.mxu0 0.0
        %466 = vmatprep.subr.mxu0 0.0
        %467 = vmatpush1.msra.mxu0 0.0
        %468 = vmatprep.subr.mxu0 0.0
        %469 = vmatpush1.msra.mxu0 0.0
        %470 = vmatprep.subr.mxu0 0.0
        %471 = vmatpush1.msra.mxu0 0.0
        %472 = vmatprep.subr.mxu0 0.0
        %473 = vmatpush1.msra.mxu0 0.0
        %474 = vmatprep.subr.mxu0 0.0
        %475 = vmatpush1.msra.mxu0 0.0
        %476 = vmatprep.subr.mxu0 0.0
        %477 = vmatpush1.msra.mxu0 0.0
        %478 = vmatprep.subr.mxu0 0.0
        %479 = vmatpush1.msra.mxu0 0.0
        %480 = vmatprep.subr.mxu0 0.0
        %481 = vmatpush1.msra.mxu0 0.0
        %482 = vmatprep.subr.mxu0 0.0
        %483 = vmatpush1.msra.mxu0 0.0
        %484 = vmatprep.subr.mxu0 0.0
        %485 = vmatpush1.msra.mxu0 0.0
        %486 = vmatprep.subr.mxu0 0.0
        %487 = vmatpush1.msra.mxu0 0.0
        %488 = vmatprep.subr.mxu0 0.0
        %489 = vmatpush1.msra.mxu0 0.0
        %490 = vmatprep.subr.mxu0 0.0
        %491 = vmatpush1.msra.mxu0 0.0
        %492 = vmatprep.subr.mxu0 0.0
        %493 = vmatpush1.msra.mxu0 0.0
        %494 = vmatprep.subr.mxu0 %v362
        %495 = vmatpush1.msra.mxu0 %v361
        %496 = vmatprep.subr.mxu0 0.0
        %497 = vmatpush2.msra.mxu0 0.0
        %498 = vmatprep.subr.mxu0 0.0
        %499 = vmatpush2.msra.mxu0 0.0
        %500 = vmatprep.subr.mxu0 0.0
        %501 = vmatpush2.msra.mxu0 0.0
        %502 = vmatprep.subr.mxu0 0.0
        %503 = vmatpush2.msra.mxu0 0.0
        %504 = vmatprep.subr.mxu0 0.0
        %505 = vmatpush2.msra.mxu0 0.0
        %506 = vmatprep.subr.mxu0 0.0
        %507 = vmatpush2.msra.mxu0 0.0
        %508 = vmatprep.subr.mxu0 0.0
        %509 = vmatpush2.msra.mxu0 0.0
        %510 = vmatprep.subr.mxu0 0.0
        %511 = vmatpush2.msra.mxu0 0.0
        %512 = vmatprep.subr.mxu0 0.0
        %513 = vmatpush2.msra.mxu0 0.0
        %514 = vmatprep.subr.mxu0 0.0
        %515 = vmatpush2.msra.mxu0 0.0
        %516 = vmatprep.subr.mxu0 0.0
        %517 = vmatpush2.msra.mxu0 0.0
        %518 = vmatprep.subr.mxu0 0.0
        %519 = vmatpush2.msra.mxu0 0.0
        %520 = vmatprep.subr.mxu0 0.0
        %521 = vmatpush2.msra.mxu0 0.0
        %522 = vmatprep.subr.mxu0 0.0
        %523 = vmatpush2.msra.mxu0 0.0
        %524 = vmatprep.subr.mxu0 0.0
        %525 = vmatpush2.msra.mxu0 0.0
        %526 = vmatprep.subr.mxu0 0.0
        %527 = vmatpush2.msra.mxu0 0.0
        %528 = vmatprep.mubr.f32.mxu0 0.0
        %529 = vmatmul.mubr.f32.gmra.mxu0 %v369
        %v530 = vpop.f32.mrf.mxu0
        %v531 = vadd.f32 0.0, %v530
        %v532 = vpop.f32.mrf.mxu0
        %v533 = vadd.f32 0.0, %v532
        %534 = vmatprep.mubr.f32.mxu0 0.0
        %535 = vmatmul.mubr.f32.gmra.mxu0 %v372
        %v536 = vpop.f32.mrf.mxu0
        %v537 = vadd.f32 0.0, %v536
        %v538 = vpop.f32.mrf.mxu0
        %v539 = vadd.f32 0.0, %v538
        %540 = vmatprep.mubr.f32.mxu0 0.0
        %541 = vmatmul.mubr.f32.gmra.mxu0 %v375
        %v542 = vpop.f32.mrf.mxu0
        %v543 = vadd.f32 0.0, %v542
        %v544 = vpop.f32.mrf.mxu0
        %v545 = vadd.f32 0.0, %v544
        %546 = vmatprep.mubr.f32.mxu0 0.0
        %547 = vmatmul.mubr.f32.gmra.mxu0 %v378
        %v548 = vpop.f32.mrf.mxu0
        %v549 = vadd.f32 0.0, %v548
        %v550 = vpop.f32.mrf.mxu0
        %v551 = vadd.f32 0.0, %v550
        %552 = vmatprep.mubr.f32.mxu0 0.0
        %553 = vmatmul.mubr.f32.gmra.mxu0 %v381
        %v554 = vpop.f32.mrf.mxu0
        %v555 = vadd.f32 0.0, %v554
        %v556 = vpop.f32.mrf.mxu0
        %v557 = vadd.f32 0.0, %v556
        %558 = vmatprep.mubr.f32.mxu0 0.0
        %559 = vmatmul.mubr.f32.gmra.mxu0 %v384
        %v560 = vpop.f32.mrf.mxu0
        %v561 = vadd.f32 0.0, %v560
        %v562 = vpop.f32.mrf.mxu0
        %v563 = vadd.f32 0.0, %v562
        %564 = vmatprep.mubr.f32.mxu0 0.0
        %565 = vmatmul.mubr.f32.gmra.mxu0 %v387
        %v566 = vpop.f32.mrf.mxu0
        %v567 = vadd.f32 0.0, %v566
        %v568 = vpop.f32.mrf.mxu0
        %v569 = vadd.f32 0.0, %v568
        %570 = vmatprep.mubr.f32.mxu0 0.0
        %571 = vmatmul.mubr.f32.gmra.mxu0 %v390
        %v572 = vpop.f32.mrf.mxu0
        %v573 = vadd.f32 0.0, %v572
        %v574 = vpop.f32.mrf.mxu0
        %v575 = vadd.f32 0.0, %v574
        %576 = vmatprep.mubr.f32.mxu0 0.0
        %577 = vmatmul.mubr.f32.gmra.mxu0 %v393
        %v578 = vpop.f32.mrf.mxu0
        %v579 = vadd.f32 0.0, %v578
        %v580 = vpop.f32.mrf.mxu0
        %v581 = vadd.f32 0.0, %v580
        %582 = vmatprep.mubr.f32.mxu0 0.0
        %583 = vmatmul.mubr.f32.gmra.mxu0 %v396
        %v584 = vpop.f32.mrf.mxu0
        %v585 = vadd.f32 0.0, %v584
        %v586 = vpop.f32.mrf.mxu0
        %v587 = vadd.f32 0.0, %v586
        %588 = vmatprep.mubr.f32.mxu0 0.0
        %589 = vmatmul.mubr.f32.gmra.mxu0 %v399
        %v590 = vpop.f32.mrf.mxu0
        %v591 = vadd.f32 0.0, %v590
        %v592 = vpop.f32.mrf.mxu0
        %v593 = vadd.f32 0.0, %v592
        %594 = vmatprep.mubr.f32.mxu0 0.0
        %595 = vmatmul.mubr.f32.gmra.mxu0 %v402
        %v596 = vpop.f32.mrf.mxu0
        %v597 = vadd.f32 0.0, %v596
        %v598 = vpop.f32.mrf.mxu0
        %v599 = vadd.f32 0.0, %v598
        %600 = vmatprep.mubr.f32.mxu0 0.0
        %601 = vmatmul.mubr.f32.gmra.mxu0 %v405
        %v602 = vpop.f32.mrf.mxu0
        %v603 = vadd.f32 0.0, %v602
        %v604 = vpop.f32.mrf.mxu0
        %v605 = vadd.f32 0.0, %v604
        %606 = vmatprep.mubr.f32.mxu0 0.0
        %607 = vmatmul.mubr.f32.gmra.mxu0 %v408
        %v608 = vpop.f32.mrf.mxu0
        %v609 = vadd.f32 0.0, %v608
        %v610 = vpop.f32.mrf.mxu0
        %v611 = vadd.f32 0.0, %v610
        %612 = vmatprep.mubr.f32.mxu0 0.0
        %613 = vmatmul.mubr.f32.gmra.mxu0 %v411
        %v614 = vpop.f32.mrf.mxu0
        %v615 = vadd.f32 0.0, %v614
        %v616 = vpop.f32.mrf.mxu0
        %v617 = vadd.f32 0.0, %v616
        %618 = vmatprep.mubr.f32.mxu0 0.0
        %619 = vmatmul.mubr.f32.gmra.mxu0 %v414
        %v620 = vpop.f32.mrf.mxu0
        %v621 = vadd.f32 0.0, %v620
        %v622 = vpop.f32.mrf.mxu0
        %v623 = vadd.f32 0.0, %v622
        %624 = vmatprep.mubr.f32.mxu0 0.0
        %625 = vmatmul.mubr.f32.gmra.mxu0 %v417
        %v626 = vpop.f32.mrf.mxu0
        %v627 = vadd.f32 0.0, %v626
        %v628 = vpop.f32.mrf.mxu0
        %v629 = vadd.f32 0.0, %v628
        %630 = vmatprep.mubr.f32.mxu0 0.0
        %631 = vmatmul.mubr.f32.gmra.mxu0 %v420
        %v632 = vpop.f32.mrf.mxu0
        %v633 = vadd.f32 0.0, %v632
        %v634 = vpop.f32.mrf.mxu0
        %v635 = vadd.f32 0.0, %v634
        %636 = vmatprep.mubr.f32.mxu0 0.0
        %637 = vmatmul.mubr.f32.gmra.mxu0 %v423
        %v638 = vpop.f32.mrf.mxu0
        %v639 = vadd.f32 0.0, %v638
        %v640 = vpop.f32.mrf.mxu0
        %v641 = vadd.f32 0.0, %v640
        %642 = vmatprep.mubr.f32.mxu0 0.0
        %643 = vmatmul.mubr.f32.gmra.mxu0 %v426
        %v644 = vpop.f32.mrf.mxu0
        %v645 = vadd.f32 0.0, %v644
        %v646 = vpop.f32.mrf.mxu0
        %v647 = vadd.f32 0.0, %v646
        %648 = vmatprep.mubr.f32.mxu0 0.0
        %649 = vmatmul.mubr.f32.gmra.mxu0 %v429
        %v650 = vpop.f32.mrf.mxu0
        %v651 = vadd.f32 0.0, %v650
        %v652 = vpop.f32.mrf.mxu0
        %v653 = vadd.f32 0.0, %v652
        %654 = vmatprep.mubr.f32.mxu0 0.0
        %655 = vmatmul.mubr.f32.gmra.mxu0 %v432
        %v656 = vpop.f32.mrf.mxu0
        %v657 = vadd.f32 0.0, %v656
        %v658 = vpop.f32.mrf.mxu0
        %v659 = vadd.f32 0.0, %v658
        %660 = vmatprep.mubr.f32.mxu0 0.0
        %661 = vmatmul.mubr.f32.gmra.mxu0 %v435
        %v662 = vpop.f32.mrf.mxu0
        %v663 = vadd.f32 0.0, %v662
        %v664 = vpop.f32.mrf.mxu0
        %v665 = vadd.f32 0.0, %v664
        %666 = vmatprep.mubr.f32.mxu0 0.0
        %667 = vmatmul.mubr.f32.gmra.mxu0 %v438
        %v668 = vpop.f32.mrf.mxu0
        %v669 = vadd.f32 0.0, %v668
        %v670 = vpop.f32.mrf.mxu0
        %v671 = vadd.f32 0.0, %v670
        %672 = vmatprep.mubr.f32.mxu0 0.0
        %673 = vmatmul.mubr.f32.gmra.mxu0 %v441
        %v674 = vpop.f32.mrf.mxu0
        %v675 = vadd.f32 0.0, %v674
        %v676 = vpop.f32.mrf.mxu0
        %v677 = vadd.f32 0.0, %v676
        %678 = vmatprep.mubr.f32.mxu0 0.0
        %679 = vmatmul.mubr.f32.gmra.mxu0 %v444
        %v680 = vpop.f32.mrf.mxu0
        %v681 = vadd.f32 0.0, %v680
        %v682 = vpop.f32.mrf.mxu0
        %v683 = vadd.f32 0.0, %v682
        %684 = vmatprep.mubr.f32.mxu0 0.0
        %685 = vmatmul.mubr.f32.gmra.mxu0 %v447
        %v686 = vpop.f32.mrf.mxu0
        %v687 = vadd.f32 0.0, %v686
        %v688 = vpop.f32.mrf.mxu0
        %v689 = vadd.f32 0.0, %v688
        %690 = vmatprep.mubr.f32.mxu0 0.0
        %691 = vmatmul.mubr.f32.gmra.mxu0 %v450
        %v692 = vpop.f32.mrf.mxu0
        %v693 = vadd.f32 0.0, %v692
        %v694 = vpop.f32.mrf.mxu0
        %v695 = vadd.f32 0.0, %v694
        %696 = vmatprep.mubr.f32.mxu0 0.0
        %697 = vmatmul.mubr.f32.gmra.mxu0 %v453
        %v698 = vpop.f32.mrf.mxu0
        %v699 = vadd.f32 0.0, %v698
        %v700 = vpop.f32.mrf.mxu0
        %v701 = vadd.f32 0.0, %v700
        %702 = vmatprep.mubr.f32.mxu0 0.0
        %703 = vmatmul.mubr.f32.gmra.mxu0 %v456
        %v704 = vpop.f32.mrf.mxu0
        %v705 = vadd.f32 0.0, %v704
        %v706 = vpop.f32.mrf.mxu0
        %v707 = vadd.f32 0.0, %v706
        %708 = vmatprep.mubr.f32.mxu0 0.0
        %709 = vmatmul.mubr.f32.gmra.mxu0 %v459
        %v710 = vpop.f32.mrf.mxu0
        %v711 = vadd.f32 0.0, %v710
        %v712 = vpop.f32.mrf.mxu0
        %v713 = vadd.f32 0.0, %v712
        %714 = vmatprep.mubr.f32.mxu0 0.0
        %715 = vmatmul.mubr.f32.gmra.mxu0 %v462
        %v716 = vpop.f32.mrf.mxu0
        %v717 = vadd.f32 0.0, %v716
        %v718 = vpop.f32.mrf.mxu0
        %v719 = vadd.f32 0.0, %v718
        %720 = vdwg.mxu0
        %721 = vmatprep.subr.mxu0 0.0
        %722 = vmatpush1.msra.mxu0 0.0
        %723 = vmatprep.subr.mxu0 0.0
        %724 = vmatpush1.msra.mxu0 0.0
        %725 = vmatprep.subr.mxu0 0.0
        %726 = vmatpush1.msra.mxu0 0.0
        %727 = vmatprep.subr.mxu0 0.0
        %728 = vmatpush1.msra.mxu0 0.0
        %729 = vmatprep.subr.mxu0 0.0
        %730 = vmatpush1.msra.mxu0 0.0
        %731 = vmatprep.subr.mxu0 0.0
        %732 = vmatpush1.msra.mxu0 0.0
        %733 = vmatprep.subr.mxu0 0.0
        %734 = vmatpush1.msra.mxu0 0.0
        %735 = vmatprep.subr.mxu0 0.0
        %736 = vmatpush1.msra.mxu0 0.0
        %737 = vmatprep.subr.mxu0 0.0
        %738 = vmatpush1.msra.mxu0 0.0
        %739 = vmatprep.subr.mxu0 0.0
        %740 = vmatpush1.msra.mxu0 0.0
        %741 = vmatprep.subr.mxu0 0.0
        %742 = vmatpush1.msra.mxu0 0.0
        %743 = vmatprep.subr.mxu0 0.0
        %744 = vmatpush1.msra.mxu0 0.0
        %745 = vmatprep.subr.mxu0 0.0
        %746 = vmatpush1.msra.mxu0 0.0
        %747 = vmatprep.subr.mxu0 0.0
        %748 = vmatpush1.msra.mxu0 0.0
        %749 = vmatprep.subr.mxu0 0.0
        %750 = vmatpush1.msra.mxu0 0.0
        %751 = vmatprep.subr.mxu0 %v364
        %752 = vmatpush1.msra.mxu0 %v363
        %753 = vmatprep.subr.mxu0 0.0
        %754 = vmatpush2.msra.mxu0 0.0
        %755 = vmatprep.subr.mxu0 0.0
        %756 = vmatpush2.msra.mxu0 0.0
        %757 = vmatprep.subr.mxu0 0.0
        %758 = vmatpush2.msra.mxu0 0.0
        %759 = vmatprep.subr.mxu0 0.0
        %760 = vmatpush2.msra.mxu0 0.0
        %761 = vmatprep.subr.mxu0 0.0
        %762 = vmatpush2.msra.mxu0 0.0
        %763 = vmatprep.subr.mxu0 0.0
        %764 = vmatpush2.msra.mxu0 0.0
        %765 = vmatprep.subr.mxu0 0.0
        %766 = vmatpush2.msra.mxu0 0.0
        %767 = vmatprep.subr.mxu0 0.0
        %768 = vmatpush2.msra.mxu0 0.0
        %769 = vmatprep.subr.mxu0 0.0
        %770 = vmatpush2.msra.mxu0 0.0
        %771 = vmatprep.subr.mxu0 0.0
        %772 = vmatpush2.msra.mxu0 0.0
        %773 = vmatprep.subr.mxu0 0.0
        %774 = vmatpush2.msra.mxu0 0.0
        %775 = vmatprep.subr.mxu0 0.0
        %776 = vmatpush2.msra.mxu0 0.0
        %777 = vmatprep.subr.mxu0 0.0
        %778 = vmatpush2.msra.mxu0 0.0
        %779 = vmatprep.subr.mxu0 0.0
        %780 = vmatpush2.msra.mxu0 0.0
        %781 = vmatprep.subr.mxu0 0.0
        %782 = vmatpush2.msra.mxu0 0.0
        %783 = vmatprep.subr.mxu0 0.0
        %784 = vmatpush2.msra.mxu0 0.0
        %785 = vmatprep.mubr.f32.mxu0 0.0
        %786 = vmatmul.mubr.f32.gmra.mxu0 %v369
        %v787 = vpop.f32.mrf.mxu0
        %v788 = vadd.f32 0.0, %v787
        %v789 = vpop.f32.mrf.mxu0
        %v790 = vadd.f32 0.0, %v789
        %791 = vmatprep.mubr.f32.mxu0 0.0
        %792 = vmatmul.mubr.f32.gmra.mxu0 %v372
        %v793 = vpop.f32.mrf.mxu0
        %v794 = vadd.f32 0.0, %v793
        %v795 = vpop.f32.mrf.mxu0
        %v796 = vadd.f32 0.0, %v795
        %797 = vmatprep.mubr.f32.mxu0 0.0
        %798 = vmatmul.mubr.f32.gmra.mxu0 %v375
        %v799 = vpop.f32.mrf.mxu0
        %v800 = vadd.f32 0.0, %v799
        %v801 = vpop.f32.mrf.mxu0
        %v802 = vadd.f32 0.0, %v801
        %803 = vmatprep.mubr.f32.mxu0 0.0
        %804 = vmatmul.mubr.f32.gmra.mxu0 %v378
        %v805 = vpop.f32.mrf.mxu0
        %v806 = vadd.f32 0.0, %v805
        %v807 = vpop.f32.mrf.mxu0
        %v808 = vadd.f32 0.0, %v807
        %809 = vmatprep.mubr.f32.mxu0 0.0
        %810 = vmatmul.mubr.f32.gmra.mxu0 %v381
        %v811 = vpop.f32.mrf.mxu0
        %v812 = vadd.f32 0.0, %v811
        %v813 = vpop.f32.mrf.mxu0
        %v814 = vadd.f32 0.0, %v813
        %815 = vmatprep.mubr.f32.mxu0 0.0
        %816 = vmatmul.mubr.f32.gmra.mxu0 %v384
        %v817 = vpop.f32.mrf.mxu0
        %v818 = vadd.f32 0.0, %v817
        %v819 = vpop.f32.mrf.mxu0
        %v820 = vadd.f32 0.0, %v819
        %821 = vmatprep.mubr.f32.mxu0 0.0
        %822 = vmatmul.mubr.f32.gmra.mxu0 %v387
        %v823 = vpop.f32.mrf.mxu0
        %v824 = vadd.f32 0.0, %v823
        %v825 = vpop.f32.mrf.mxu0
        %v826 = vadd.f32 0.0, %v825
        %827 = vmatprep.mubr.f32.mxu0 0.0
        %828 = vmatmul.mubr.f32.gmra.mxu0 %v390
        %v829 = vpop.f32.mrf.mxu0
        %v830 = vadd.f32 0.0, %v829
        %v831 = vpop.f32.mrf.mxu0
        %v832 = vadd.f32 0.0, %v831
        %833 = vmatprep.mubr.f32.mxu0 0.0
        %834 = vmatmul.mubr.f32.gmra.mxu0 %v393
        %v835 = vpop.f32.mrf.mxu0
        %v836 = vadd.f32 0.0, %v835
        %v837 = vpop.f32.mrf.mxu0
        %v838 = vadd.f32 0.0, %v837
        %839 = vmatprep.mubr.f32.mxu0 0.0
        %840 = vmatmul.mubr.f32.gmra.mxu0 %v396
        %v841 = vpop.f32.mrf.mxu0
        %v842 = vadd.f32 0.0, %v841
        %v843 = vpop.f32.mrf.mxu0
        %v844 = vadd.f32 0.0, %v843
        %845 = vmatprep.mubr.f32.mxu0 0.0
        %846 = vmatmul.mubr.f32.gmra.mxu0 %v399
        %v847 = vpop.f32.mrf.mxu0
        %v848 = vadd.f32 0.0, %v847
        %v849 = vpop.f32.mrf.mxu0
        %v850 = vadd.f32 0.0, %v849
        %851 = vmatprep.mubr.f32.mxu0 0.0
        %852 = vmatmul.mubr.f32.gmra.mxu0 %v402
        %v853 = vpop.f32.mrf.mxu0
        %v854 = vadd.f32 0.0, %v853
        %v855 = vpop.f32.mrf.mxu0
        %v856 = vadd.f32 0.0, %v855
        %857 = vmatprep.mubr.f32.mxu0 0.0
        %858 = vmatmul.mubr.f32.gmra.mxu0 %v405
        %v859 = vpop.f32.mrf.mxu0
        %v860 = vadd.f32 0.0, %v859
        %v861 = vpop.f32.mrf.mxu0
        %v862 = vadd.f32 0.0, %v861
        %863 = vmatprep.mubr.f32.mxu0 0.0
        %864 = vmatmul.mubr.f32.gmra.mxu0 %v408
        %v865 = vpop.f32.mrf.mxu0
        %v866 = vadd.f32 0.0, %v865
        %v867 = vpop.f32.mrf.mxu0
        %v868 = vadd.f32 0.0, %v867
        %869 = vmatprep.mubr.f32.mxu0 0.0
        %870 = vmatmul.mubr.f32.gmra.mxu0 %v411
        %v871 = vpop.f32.mrf.mxu0
        %v872 = vadd.f32 0.0, %v871
        %v873 = vpop.f32.mrf.mxu0
        %v874 = vadd.f32 0.0, %v873
        %875 = vmatprep.mubr.f32.mxu0 0.0
        %876 = vmatmul.mubr.f32.gmra.mxu0 %v414
        %v877 = vpop.f32.mrf.mxu0
        %v878 = vadd.f32 0.0, %v877
        %v879 = vpop.f32.mrf.mxu0
        %v880 = vadd.f32 0.0, %v879
        %881 = vmatprep.mubr.f32.mxu0 0.0
        %882 = vmatmul.mubr.f32.gmra.mxu0 %v417
        %v883 = vpop.f32.mrf.mxu0
        %v884 = vadd.f32 0.0, %v883
        %v885 = vpop.f32.mrf.mxu0
        %v886 = vadd.f32 0.0, %v885
        %887 = vmatprep.mubr.f32.mxu0 0.0
        %888 = vmatmul.mubr.f32.gmra.mxu0 %v420
        %v889 = vpop.f32.mrf.mxu0
        %v890 = vadd.f32 0.0, %v889
        %v891 = vpop.f32.mrf.mxu0
        %v892 = vadd.f32 0.0, %v891
        %893 = vmatprep.mubr.f32.mxu0 0.0
        %894 = vmatmul.mubr.f32.gmra.mxu0 %v423
        %v895 = vpop.f32.mrf.mxu0
        %v896 = vadd.f32 0.0, %v895
        %v897 = vpop.f32.mrf.mxu0
        %v898 = vadd.f32 0.0, %v897
        %899 = vmatprep.mubr.f32.mxu0 0.0
        %900 = vmatmul.mubr.f32.gmra.mxu0 %v426
        %v901 = vpop.f32.mrf.mxu0
        %v902 = vadd.f32 0.0, %v901
        %v903 = vpop.f32.mrf.mxu0
        %v904 = vadd.f32 0.0, %v903
        %905 = vmatprep.mubr.f32.mxu0 0.0
        %906 = vmatmul.mubr.f32.gmra.mxu0 %v429
        %v907 = vpop.f32.mrf.mxu0
        %v908 = vadd.f32 0.0, %v907
        %v909 = vpop.f32.mrf.mxu0
        %v910 = vadd.f32 0.0, %v909
        %911 = vmatprep.mubr.f32.mxu0 0.0
        %912 = vmatmul.mubr.f32.gmra.mxu0 %v432
        %v913 = vpop.f32.mrf.mxu0
        %v914 = vadd.f32 0.0, %v913
        %v915 = vpop.f32.mrf.mxu0
        %v916 = vadd.f32 0.0, %v915
        %917 = vmatprep.mubr.f32.mxu0 0.0
        %918 = vmatmul.mubr.f32.gmra.mxu0 %v435
        %v919 = vpop.f32.mrf.mxu0
        %v920 = vadd.f32 0.0, %v919
        %v921 = vpop.f32.mrf.mxu0
        %v922 = vadd.f32 0.0, %v921
        %923 = vmatprep.mubr.f32.mxu0 0.0
        %924 = vmatmul.mubr.f32.gmra.mxu0 %v438
        %v925 = vpop.f32.mrf.mxu0
        %v926 = vadd.f32 0.0, %v925
        %v927 = vpop.f32.mrf.mxu0
        %v928 = vadd.f32 0.0, %v927
        %929 = vmatprep.mubr.f32.mxu0 0.0
        %930 = vmatmul.mubr.f32.gmra.mxu0 %v441
        %v931 = vpop.f32.mrf.mxu0
        %v932 = vadd.f32 0.0, %v931
        %v933 = vpop.f32.mrf.mxu0
        %v934 = vadd.f32 0.0, %v933
        %935 = vmatprep.mubr.f32.mxu0 0.0
        %936 = vmatmul.mubr.f32.gmra.mxu0 %v444
        %v937 = vpop.f32.mrf.mxu0
        %v938 = vadd.f32 0.0, %v937
        %v939 = vpop.f32.mrf.mxu0
        %v940 = vadd.f32 0.0, %v939
        %941 = vmatprep.mubr.f32.mxu0 0.0
        %942 = vmatmul.mubr.f32.gmra.mxu0 %v447
        %v943 = vpop.f32.mrf.mxu0
        %v944 = vadd.f32 0.0, %v943
        %v945 = vpop.f32.mrf.mxu0
        %v946 = vadd.f32 0.0, %v945
        %947 = vmatprep.mubr.f32.mxu0 0.0
        %948 = vmatmul.mubr.f32.gmra.mxu0 %v450
        %v949 = vpop.f32.mrf.mxu0
        %v950 = vadd.f32 0.0, %v949
        %v951 = vpop.f32.mrf.mxu0
        %v952 = vadd.f32 0.0, %v951
        %953 = vmatprep.mubr.f32.mxu0 0.0
        %954 = vmatmul.mubr.f32.gmra.mxu0 %v453
        %v955 = vpop.f32.mrf.mxu0
        %v956 = vadd.f32 0.0, %v955
        %v957 = vpop.f32.mrf.mxu0
        %v958 = vadd.f32 0.0, %v957
        %959 = vmatprep.mubr.f32.mxu0 0.0
        %960 = vmatmul.mubr.f32.gmra.mxu0 %v456
        %v961 = vpop.f32.mrf.mxu0
        %v962 = vadd.f32 0.0, %v961
        %v963 = vpop.f32.mrf.mxu0
        %v964 = vadd.f32 0.0, %v963
        %965 = vmatprep.mubr.f32.mxu0 0.0
        %966 = vmatmul.mubr.f32.gmra.mxu0 %v459
        %v967 = vpop.f32.mrf.mxu0
        %v968 = vadd.f32 0.0, %v967
        %v969 = vpop.f32.mrf.mxu0
        %v970 = vadd.f32 0.0, %v969
        %971 = vmatprep.mubr.f32.mxu0 0.0
        %972 = vmatmul.mubr.f32.gmra.mxu0 %v462
        %v973 = vpop.f32.mrf.mxu0
        %v974 = vadd.f32 0.0, %v973
        %v975 = vpop.f32.mrf.mxu0
        %v976 = vadd.f32 0.0, %v975
        %977 = vdwg.mxu0
        %978 = vmatprep.subr.mxu0 0.0
        %979 = vmatpush1.msra.mxu0 0.0
        %980 = vmatprep.subr.mxu0 0.0
        %981 = vmatpush1.msra.mxu0 0.0
        %982 = vmatprep.subr.mxu0 0.0
        %983 = vmatpush1.msra.mxu0 0.0
        %984 = vmatprep.subr.mxu0 0.0
        %985 = vmatpush1.msra.mxu0 0.0
        %986 = vmatprep.subr.mxu0 0.0
        %987 = vmatpush1.msra.mxu0 0.0
        %988 = vmatprep.subr.mxu0 0.0
        %989 = vmatpush1.msra.mxu0 0.0
        %990 = vmatprep.subr.mxu0 0.0
        %991 = vmatpush1.msra.mxu0 0.0
        %992 = vmatprep.subr.mxu0 0.0
        %993 = vmatpush1.msra.mxu0 0.0
        %994 = vmatprep.subr.mxu0 0.0
        %995 = vmatpush1.msra.mxu0 0.0
        %996 = vmatprep.subr.mxu0 0.0
        %997 = vmatpush1.msra.mxu0 0.0
        %998 = vmatprep.subr.mxu0 0.0
        %999 = vmatpush1.msra.mxu0 0.0
        %1000 = vmatprep.subr.mxu0 0.0
        %1001 = vmatpush1.msra.mxu0 0.0
        %1002 = vmatprep.subr.mxu0 0.0
        %1003 = vmatpush1.msra.mxu0 0.0
        %1004 = vmatprep.subr.mxu0 0.0
        %1005 = vmatpush1.msra.mxu0 0.0
        %1006 = vmatprep.subr.mxu0 0.0
        %1007 = vmatpush1.msra.mxu0 0.0
        %1008 = vmatprep.subr.mxu0 %v366
        %1009 = vmatpush1.msra.mxu0 %v365
        %1010 = vmatprep.subr.mxu0 0.0
        %1011 = vmatpush2.msra.mxu0 0.0
        %1012 = vmatprep.subr.mxu0 0.0
        %1013 = vmatpush2.msra.mxu0 0.0
        %1014 = vmatprep.subr.mxu0 0.0
        %1015 = vmatpush2.msra.mxu0 0.0
        %1016 = vmatprep.subr.mxu0 0.0
        %1017 = vmatpush2.msra.mxu0 0.0
        %1018 = vmatprep.subr.mxu0 0.0
        %1019 = vmatpush2.msra.mxu0 0.0
        %1020 = vmatprep.subr.mxu0 0.0
        %1021 = vmatpush2.msra.mxu0 0.0
        %1022 = vmatprep.subr.mxu0 0.0
        %1023 = vmatpush2.msra.mxu0 0.0
        %1024 = vmatprep.subr.mxu0 0.0
        %1025 = vmatpush2.msra.mxu0 0.0
        %1026 = vmatprep.subr.mxu0 0.0
        %1027 = vmatpush2.msra.mxu0 0.0
        %1028 = vmatprep.subr.mxu0 0.0
        %1029 = vmatpush2.msra.mxu0 0.0
        %1030 = vmatprep.subr.mxu0 0.0
        %1031 = vmatpush2.msra.mxu0 0.0
        %1032 = vmatprep.subr.mxu0 0.0
        %1033 = vmatpush2.msra.mxu0 0.0
        %1034 = vmatprep.subr.mxu0 0.0
        %1035 = vmatpush2.msra.mxu0 0.0
        %1036 = vmatprep.subr.mxu0 0.0
        %1037 = vmatpush2.msra.mxu0 0.0
        %1038 = vmatprep.subr.mxu0 0.0
        %1039 = vmatpush2.msra.mxu0 0.0
        %1040 = vmatprep.subr.mxu0 0.0
        %1041 = vmatpush2.msra.mxu0 0.0
        %1042 = vmatprep.mubr.f32.mxu0 0.0
        %1043 = vmatmul.mubr.f32.gmra.mxu0 %v369
        %v1044 = vpop.f32.mrf.mxu0
        %v1045 = vadd.f32 0.0, %v1044
        %v1046 = vpop.f32.mrf.mxu0
        %v1047 = vadd.f32 0.0, %v1046
        %1048 = vmatprep.mubr.f32.mxu0 0.0
        %1049 = vmatmul.mubr.f32.gmra.mxu0 %v372
        %v1050 = vpop.f32.mrf.mxu0
        %v1051 = vadd.f32 0.0, %v1050
        %v1052 = vpop.f32.mrf.mxu0
        %v1053 = vadd.f32 0.0, %v1052
        %1054 = vmatprep.mubr.f32.mxu0 0.0
        %1055 = vmatmul.mubr.f32.gmra.mxu0 %v375
        %v1056 = vpop.f32.mrf.mxu0
        %v1057 = vadd.f32 0.0, %v1056
        %v1058 = vpop.f32.mrf.mxu0
        %v1059 = vadd.f32 0.0, %v1058
        %1060 = vmatprep.mubr.f32.mxu0 0.0
        %1061 = vmatmul.mubr.f32.gmra.mxu0 %v378
        %v1062 = vpop.f32.mrf.mxu0
        %v1063 = vadd.f32 0.0, %v1062
        %v1064 = vpop.f32.mrf.mxu0
        %v1065 = vadd.f32 0.0, %v1064
        %1066 = vmatprep.mubr.f32.mxu0 0.0
        %1067 = vmatmul.mubr.f32.gmra.mxu0 %v381
        %v1068 = vpop.f32.mrf.mxu0
        %v1069 = vadd.f32 0.0, %v1068
        %v1070 = vpop.f32.mrf.mxu0
        %v1071 = vadd.f32 0.0, %v1070
        %1072 = vmatprep.mubr.f32.mxu0 0.0
        %1073 = vmatmul.mubr.f32.gmra.mxu0 %v384
        %v1074 = vpop.f32.mrf.mxu0
        %v1075 = vadd.f32 0.0, %v1074
        %v1076 = vpop.f32.mrf.mxu0
        %v1077 = vadd.f32 0.0, %v1076
        %1078 = vmatprep.mubr.f32.mxu0 0.0
        %1079 = vmatmul.mubr.f32.gmra.mxu0 %v387
        %v1080 = vpop.f32.mrf.mxu0
        %v1081 = vadd.f32 0.0, %v1080
        %v1082 = vpop.f32.mrf.mxu0
        %v1083 = vadd.f32 0.0, %v1082
        %1084 = vmatprep.mubr.f32.mxu0 0.0
        %1085 = vmatmul.mubr.f32.gmra.mxu0 %v390
        %v1086 = vpop.f32.mrf.mxu0
        %v1087 = vadd.f32 0.0, %v1086
        %v1088 = vpop.f32.mrf.mxu0
        %v1089 = vadd.f32 0.0, %v1088
        %1090 = vmatprep.mubr.f32.mxu0 0.0
        %1091 = vmatmul.mubr.f32.gmra.mxu0 %v393
        %v1092 = vpop.f32.mrf.mxu0
        %v1093 = vadd.f32 0.0, %v1092
        %v1094 = vpop.f32.mrf.mxu0
        %v1095 = vadd.f32 0.0, %v1094
        %1096 = vmatprep.mubr.f32.mxu0 0.0
        %1097 = vmatmul.mubr.f32.gmra.mxu0 %v396
        %v1098 = vpop.f32.mrf.mxu0
        %v1099 = vadd.f32 0.0, %v1098
        %v1100 = vpop.f32.mrf.mxu0
        %v1101 = vadd.f32 0.0, %v1100
        %1102 = vmatprep.mubr.f32.mxu0 0.0
        %1103 = vmatmul.mubr.f32.gmra.mxu0 %v399
        %v1104 = vpop.f32.mrf.mxu0
        %v1105 = vadd.f32 0.0, %v1104
        %v1106 = vpop.f32.mrf.mxu0
        %v1107 = vadd.f32 0.0, %v1106
        %1108 = vmatprep.mubr.f32.mxu0 0.0
        %1109 = vmatmul.mubr.f32.gmra.mxu0 %v402
        %v1110 = vpop.f32.mrf.mxu0
        %v1111 = vadd.f32 0.0, %v1110
        %v1112 = vpop.f32.mrf.mxu0
        %v1113 = vadd.f32 0.0, %v1112
        %1114 = vmatprep.mubr.f32.mxu0 0.0
        %1115 = vmatmul.mubr.f32.gmra.mxu0 %v405
        %v1116 = vpop.f32.mrf.mxu0
        %v1117 = vadd.f32 0.0, %v1116
        %v1118 = vpop.f32.mrf.mxu0
        %v1119 = vadd.f32 0.0, %v1118
        %1120 = vmatprep.mubr.f32.mxu0 0.0
        %1121 = vmatmul.mubr.f32.gmra.mxu0 %v408
        %v1122 = vpop.f32.mrf.mxu0
        %v1123 = vadd.f32 0.0, %v1122
        %v1124 = vpop.f32.mrf.mxu0
        %v1125 = vadd.f32 0.0, %v1124
        %1126 = vmatprep.mubr.f32.mxu0 0.0
        %1127 = vmatmul.mubr.f32.gmra.mxu0 %v411
        %v1128 = vpop.f32.mrf.mxu0
        %v1129 = vadd.f32 0.0, %v1128
        %v1130 = vpop.f32.mrf.mxu0
        %v1131 = vadd.f32 0.0, %v1130
        %1132 = vmatprep.mubr.f32.mxu0 0.0
        %1133 = vmatmul.mubr.f32.gmra.mxu0 %v414
        %v1134 = vpop.f32.mrf.mxu0
        %v1135 = vadd.f32 0.0, %v1134
        %v1136 = vpop.f32.mrf.mxu0
        %v1137 = vadd.f32 0.0, %v1136
        %1138 = vmatprep.mubr.f32.mxu0 0.0
        %1139 = vmatmul.mubr.f32.gmra.mxu0 %v417
        %v1140 = vpop.f32.mrf.mxu0
        %v1141 = vadd.f32 0.0, %v1140
        %v1142 = vpop.f32.mrf.mxu0
        %v1143 = vadd.f32 0.0, %v1142
        %1144 = vmatprep.mubr.f32.mxu0 0.0
        %1145 = vmatmul.mubr.f32.gmra.mxu0 %v420
        %v1146 = vpop.f32.mrf.mxu0
        %v1147 = vadd.f32 0.0, %v1146
        %v1148 = vpop.f32.mrf.mxu0
        %v1149 = vadd.f32 0.0, %v1148
        %1150 = vmatprep.mubr.f32.mxu0 0.0
        %1151 = vmatmul.mubr.f32.gmra.mxu0 %v423
        %v1152 = vpop.f32.mrf.mxu0
        %v1153 = vadd.f32 0.0, %v1152
        %v1154 = vpop.f32.mrf.mxu0
        %v1155 = vadd.f32 0.0, %v1154
        %1156 = vmatprep.mubr.f32.mxu0 0.0
        %1157 = vmatmul.mubr.f32.gmra.mxu0 %v426
        %v1158 = vpop.f32.mrf.mxu0
        %v1159 = vadd.f32 0.0, %v1158
        %v1160 = vpop.f32.mrf.mxu0
        %v1161 = vadd.f32 0.0, %v1160
        %1162 = vmatprep.mubr.f32.mxu0 0.0
        %1163 = vmatmul.mubr.f32.gmra.mxu0 %v429
        %v1164 = vpop.f32.mrf.mxu0
        %v1165 = vadd.f32 0.0, %v1164
        %v1166 = vpop.f32.mrf.mxu0
        %v1167 = vadd.f32 0.0, %v1166
        %1168 = vmatprep.mubr.f32.mxu0 0.0
        %1169 = vmatmul.mubr.f32.gmra.mxu0 %v432
        %v1170 = vpop.f32.mrf.mxu0
        %v1171 = vadd.f32 0.0, %v1170
        %v1172 = vpop.f32.mrf.mxu0
        %v1173 = vadd.f32 0.0, %v1172
        %1174 = vmatprep.mubr.f32.mxu0 0.0
        %1175 = vmatmul.mubr.f32.gmra.mxu0 %v435
        %v1176 = vpop.f32.mrf.mxu0
        %v1177 = vadd.f32 0.0, %v1176
        %v1178 = vpop.f32.mrf.mxu0
        %v1179 = vadd.f32 0.0, %v1178
        %1180 = vmatprep.mubr.f32.mxu0 0.0
        %1181 = vmatmul.mubr.f32.gmra.mxu0 %v438
        %v1182 = vpop.f32.mrf.mxu0
        %v1183 = vadd.f32 0.0, %v1182
        %v1184 = vpop.f32.mrf.mxu0
        %v1185 = vadd.f32 0.0, %v1184
        %1186 = vmatprep.mubr.f32.mxu0 0.0
        %1187 = vmatmul.mubr.f32.gmra.mxu0 %v441
        %v1188 = vpop.f32.mrf.mxu0
        %v1189 = vadd.f32 0.0, %v1188
        %v1190 = vpop.f32.mrf.mxu0
        %v1191 = vadd.f32 0.0, %v1190
        %1192 = vmatprep.mubr.f32.mxu0 0.0
        %1193 = vmatmul.mubr.f32.gmra.mxu0 %v444
        %v1194 = vpop.f32.mrf.mxu0
        %v1195 = vadd.f32 0.0, %v1194
        %v1196 = vpop.f32.mrf.mxu0
        %v1197 = vadd.f32 0.0, %v1196
        %1198 = vmatprep.mubr.f32.mxu0 0.0
        %1199 = vmatmul.mubr.f32.gmra.mxu0 %v447
        %v1200 = vpop.f32.mrf.mxu0
        %v1201 = vadd.f32 0.0, %v1200
        %v1202 = vpop.f32.mrf.mxu0
        %v1203 = vadd.f32 0.0, %v1202
        %1204 = vmatprep.mubr.f32.mxu0 0.0
        %1205 = vmatmul.mubr.f32.gmra.mxu0 %v450
        %v1206 = vpop.f32.mrf.mxu0
        %v1207 = vadd.f32 0.0, %v1206
        %v1208 = vpop.f32.mrf.mxu0
        %v1209 = vadd.f32 0.0, %v1208
        %1210 = vmatprep.mubr.f32.mxu0 0.0
        %1211 = vmatmul.mubr.f32.gmra.mxu0 %v453
        %v1212 = vpop.f32.mrf.mxu0
        %v1213 = vadd.f32 0.0, %v1212
        %v1214 = vpop.f32.mrf.mxu0
        %v1215 = vadd.f32 0.0, %v1214
        %1216 = vmatprep.mubr.f32.mxu0 0.0
        %1217 = vmatmul.mubr.f32.gmra.mxu0 %v456
        %v1218 = vpop.f32.mrf.mxu0
        %v1219 = vadd.f32 0.0, %v1218
        %v1220 = vpop.f32.mrf.mxu0
        %v1221 = vadd.f32 0.0, %v1220
        %1222 = vmatprep.mubr.f32.mxu0 0.0
        %1223 = vmatmul.mubr.f32.gmra.mxu0 %v459
        %v1224 = vpop.f32.mrf.mxu0
        %v1225 = vadd.f32 0.0, %v1224
        %v1226 = vpop.f32.mrf.mxu0
        %v1227 = vadd.f32 0.0, %v1226
        %1228 = vmatprep.mubr.f32.mxu0 0.0
        %1229 = vmatmul.mubr.f32.gmra.mxu0 %v462
        %v1230 = vpop.f32.mrf.mxu0
        %v1231 = vadd.f32 0.0, %v1230
        %v1232 = vpop.f32.mrf.mxu0
        %v1233 = vadd.f32 0.0, %v1232
        %1234 = vdwg.mxu0
        %v1235 = vmax.f32 %v531, 0.0
        %v1236 = vmax.f32 %v533, 0.0
        %v1237 = vmax.f32 %v788, 0.0
        %v1238 = vmax.f32 %v790, 0.0
        %v1239 = vmax.f32 %v1045, 0.0
        %v1240 = vmax.f32 %v1047, 0.0
        %v1241 = vmax.f32 %v537, 0.0
        %v1242 = vmax.f32 %v539, 0.0
        %v1243 = vmax.f32 %v794, 0.0
        %v1244 = vmax.f32 %v796, 0.0
        %v1245 = vmax.f32 %v1051, 0.0
        %v1246 = vmax.f32 %v1053, 0.0
        %v1247 = vmax.f32 %v543, 0.0
        %v1248 = vmax.f32 %v545, 0.0
        %v1249 = vmax.f32 %v800, 0.0
        %v1250 = vmax.f32 %v802, 0.0
        %v1251 = vmax.f32 %v1057, 0.0
        %v1252 = vmax.f32 %v1059, 0.0
        %v1253 = vmax.f32 %v549, 0.0
        %v1254 = vmax.f32 %v551, 0.0
        %v1255 = vmax.f32 %v806, 0.0
        %v1256 = vmax.f32 %v808, 0.0
        %v1257 = vmax.f32 %v1063, 0.0
        %v1258 = vmax.f32 %v1065, 0.0
        %v1259 = vmax.f32 %v555, 0.0
        %v1260 = vmax.f32 %v557, 0.0
        %v1261 = vmax.f32 %v812, 0.0
        %v1262 = vmax.f32 %v814, 0.0
        %v1263 = vmax.f32 %v1069, 0.0
        %v1264 = vmax.f32 %v1071, 0.0
        %v1265 = vmax.f32 %v561, 0.0
        %v1266 = vmax.f32 %v563, 0.0
        %v1267 = vmax.f32 %v818, 0.0
        %v1268 = vmax.f32 %v820, 0.0
        %v1269 = vmax.f32 %v1075, 0.0
        %v1270 = vmax.f32 %v1077, 0.0
        %v1271 = vmax.f32 %v567, 0.0
        %v1272 = vmax.f32 %v569, 0.0
        %v1273 = vmax.f32 %v824, 0.0
        %v1274 = vmax.f32 %v826, 0.0
        %v1275 = vmax.f32 %v1081, 0.0
        %v1276 = vmax.f32 %v1083, 0.0
        %v1277 = vmax.f32 %v573, 0.0
        %v1278 = vmax.f32 %v575, 0.0
        %v1279 = vmax.f32 %v830, 0.0
        %v1280 = vmax.f32 %v832, 0.0
        %v1281 = vmax.f32 %v1087, 0.0
        %v1282 = vmax.f32 %v1089, 0.0
        %v1283 = vmax.f32 %v579, 0.0
        %v1284 = vmax.f32 %v581, 0.0
        %v1285 = vmax.f32 %v836, 0.0
        %v1286 = vmax.f32 %v838, 0.0
        %v1287 = vmax.f32 %v1093, 0.0
        %v1288 = vmax.f32 %v1095, 0.0
        %v1289 = vmax.f32 %v585, 0.0
        %v1290 = vmax.f32 %v587, 0.0
        %v1291 = vmax.f32 %v842, 0.0
        %v1292 = vmax.f32 %v844, 0.0
        %v1293 = vmax.f32 %v1099, 0.0
        %v1294 = vmax.f32 %v1101, 0.0
        %v1295 = vmax.f32 %v591, 0.0
        %v1296 = vmax.f32 %v593, 0.0
        %v1297 = vmax.f32 %v848, 0.0
        %v1298 = vmax.f32 %v850, 0.0
        %v1299 = vmax.f32 %v1105, 0.0
        %v1300 = vmax.f32 %v1107, 0.0
        %v1301 = vmax.f32 %v597, 0.0
        %v1302 = vmax.f32 %v599, 0.0
        %v1303 = vmax.f32 %v854, 0.0
        %v1304 = vmax.f32 %v856, 0.0
        %v1305 = vmax.f32 %v1111, 0.0
        %v1306 = vmax.f32 %v1113, 0.0
        %v1307 = vmax.f32 %v603, 0.0
        %v1308 = vmax.f32 %v605, 0.0
        %v1309 = vmax.f32 %v860, 0.0
        %v1310 = vmax.f32 %v862, 0.0
        %v1311 = vmax.f32 %v1117, 0.0
        %v1312 = vmax.f32 %v1119, 0.0
        %v1313 = vmax.f32 %v609, 0.0
        %v1314 = vmax.f32 %v611, 0.0
        %v1315 = vmax.f32 %v866, 0.0
        %v1316 = vmax.f32 %v868, 0.0
        %v1317 = vmax.f32 %v1123, 0.0
        %v1318 = vmax.f32 %v1125, 0.0
        %v1319 = vmax.f32 %v615, 0.0
        %v1320 = vmax.f32 %v617, 0.0
        %v1321 = vmax.f32 %v872, 0.0
        %v1322 = vmax.f32 %v874, 0.0
        %v1323 = vmax.f32 %v1129, 0.0
        %v1324 = vmax.f32 %v1131, 0.0
        %v1325 = vmax.f32 %v621, 0.0
        %v1326 = vmax.f32 %v623, 0.0
        %v1327 = vmax.f32 %v878, 0.0
        %v1328 = vmax.f32 %v880, 0.0
        %v1329 = vmax.f32 %v1135, 0.0
        %v1330 = vmax.f32 %v1137, 0.0
        %v1331 = vmax.f32 %v627, 0.0
        %v1332 = vmax.f32 %v629, 0.0
        %v1333 = vmax.f32 %v884, 0.0
        %v1334 = vmax.f32 %v886, 0.0
        %v1335 = vmax.f32 %v1141, 0.0
        %v1336 = vmax.f32 %v1143, 0.0
        %v1337 = vmax.f32 %v633, 0.0
        %v1338 = vmax.f32 %v635, 0.0
        %v1339 = vmax.f32 %v890, 0.0
        %v1340 = vmax.f32 %v892, 0.0
        %v1341 = vmax.f32 %v1147, 0.0
        %v1342 = vmax.f32 %v1149, 0.0
        %v1343 = vmax.f32 %v639, 0.0
        %v1344 = vmax.f32 %v641, 0.0
        %v1345 = vmax.f32 %v896, 0.0
        %v1346 = vmax.f32 %v898, 0.0
        %v1347 = vmax.f32 %v1153, 0.0
        %v1348 = vmax.f32 %v1155, 0.0
        %v1349 = vmax.f32 %v645, 0.0
        %v1350 = vmax.f32 %v647, 0.0
        %v1351 = vmax.f32 %v902, 0.0
        %v1352 = vmax.f32 %v904, 0.0
        %v1353 = vmax.f32 %v1159, 0.0
        %v1354 = vmax.f32 %v1161, 0.0
        %v1355 = vmax.f32 %v651, 0.0
        %v1356 = vmax.f32 %v653, 0.0
        %v1357 = vmax.f32 %v908, 0.0
        %v1358 = vmax.f32 %v910, 0.0
        %v1359 = vmax.f32 %v1165, 0.0
        %v1360 = vmax.f32 %v1167, 0.0
        %v1361 = vmax.f32 %v657, 0.0
        %v1362 = vmax.f32 %v659, 0.0
        %v1363 = vmax.f32 %v914, 0.0
        %v1364 = vmax.f32 %v916, 0.0
        %v1365 = vmax.f32 %v1171, 0.0
        %v1366 = vmax.f32 %v1173, 0.0
        %v1367 = vmax.f32 %v663, 0.0
        %v1368 = vmax.f32 %v665, 0.0
        %v1369 = vmax.f32 %v920, 0.0
        %v1370 = vmax.f32 %v922, 0.0
        %v1371 = vmax.f32 %v1177, 0.0
        %v1372 = vmax.f32 %v1179, 0.0
        %v1373 = vmax.f32 %v669, 0.0
        %v1374 = vmax.f32 %v671, 0.0
        %v1375 = vmax.f32 %v926, 0.0
        %v1376 = vmax.f32 %v928, 0.0
        %v1377 = vmax.f32 %v1183, 0.0
        %v1378 = vmax.f32 %v1185, 0.0
        %v1379 = vmax.f32 %v675, 0.0
        %v1380 = vmax.f32 %v677, 0.0
        %v1381 = vmax.f32 %v932, 0.0
        %v1382 = vmax.f32 %v934, 0.0
        %v1383 = vmax.f32 %v1189, 0.0
        %v1384 = vmax.f32 %v1191, 0.0
        %v1385 = vmax.f32 %v681, 0.0
        %v1386 = vmax.f32 %v683, 0.0
        %v1387 = vmax.f32 %v938, 0.0
        %v1388 = vmax.f32 %v940, 0.0
        %v1389 = vmax.f32 %v1195, 0.0
        %v1390 = vmax.f32 %v1197, 0.0
        %v1391 = vmax.f32 %v687, 0.0
        %v1392 = vmax.f32 %v689, 0.0
        %v1393 = vmax.f32 %v944, 0.0
        %v1394 = vmax.f32 %v946, 0.0
        %v1395 = vmax.f32 %v1201, 0.0
        %v1396 = vmax.f32 %v1203, 0.0
        %v1397 = vmax.f32 %v693, 0.0
        %v1398 = vmax.f32 %v695, 0.0
        %v1399 = vmax.f32 %v950, 0.0
        %v1400 = vmax.f32 %v952, 0.0
        %v1401 = vmax.f32 %v1207, 0.0
        %v1402 = vmax.f32 %v1209, 0.0
        %v1403 = vmax.f32 %v699, 0.0
        %v1404 = vmax.f32 %v701, 0.0
        %v1405 = vmax.f32 %v956, 0.0
        %v1406 = vmax.f32 %v958, 0.0
        %v1407 = vmax.f32 %v1213, 0.0
        %v1408 = vmax.f32 %v1215, 0.0
        %v1409 = vmax.f32 %v705, 0.0
        %v1410 = vmax.f32 %v707, 0.0
        %v1411 = vmax.f32 %v962, 0.0
        %v1412 = vmax.f32 %v964, 0.0
        %v1413 = vmax.f32 %v1219, 0.0
        %v1414 = vmax.f32 %v1221, 0.0
        %v1415 = vmax.f32 %v711, 0.0
        %v1416 = vmax.f32 %v713, 0.0
        %v1417 = vmax.f32 %v968, 0.0
        %v1418 = vmax.f32 %v970, 0.0
        %v1419 = vmax.f32 %v1225, 0.0
        %v1420 = vmax.f32 %v1227, 0.0
        %v1421 = vmax.f32 %v717, 0.0
        %v1422 = vmax.f32 %v719, 0.0
        %v1423 = vmax.f32 %v974, 0.0
        %v1424 = vmax.f32 %v976, 0.0
        %v1425 = vmax.f32 %v1231, 0.0
        %v1426 = vmax.f32 %v1233, 0.0
        %vm1427 = vcmp.gt.f32.partialorder %v1235, 1e-12
        %vm1428 = vcmp.gt.f32.partialorder %v1236, 1e-12
        %vm1429 = vcmp.gt.f32.partialorder %v1237, 1e-12
        %vm1430 = vcmp.gt.f32.partialorder %v1238, 1e-12
        %vm1431 = vcmp.gt.f32.partialorder %v1239, 1e-12
        %vm1432 = vcmp.gt.f32.partialorder %v1240, 1e-12
        %vm1433 = vcmp.gt.f32.partialorder %v1241, 1e-12
        %vm1434 = vcmp.gt.f32.partialorder %v1242, 1e-12
        %vm1435 = vcmp.gt.f32.partialorder %v1243, 1e-12
        %vm1436 = vcmp.gt.f32.partialorder %v1244, 1e-12
        %vm1437 = vcmp.gt.f32.partialorder %v1245, 1e-12
        %vm1438 = vcmp.gt.f32.partialorder %v1246, 1e-12
        %vm1439 = vcmp.gt.f32.partialorder %v1247, 1e-12
        %vm1440 = vcmp.gt.f32.partialorder %v1248, 1e-12
        %vm1441 = vcmp.gt.f32.partialorder %v1249, 1e-12
        %vm1442 = vcmp.gt.f32.partialorder %v1250, 1e-12
        %vm1443 = vcmp.gt.f32.partialorder %v1251, 1e-12
        %vm1444 = vcmp.gt.f32.partialorder %v1252, 1e-12
        %vm1445 = vcmp.gt.f32.partialorder %v1253, 1e-12
        %vm1446 = vcmp.gt.f32.partialorder %v1254, 1e-12
        %vm1447 = vcmp.gt.f32.partialorder %v1255, 1e-12
        %vm1448 = vcmp.gt.f32.partialorder %v1256, 1e-12
        %vm1449 = vcmp.gt.f32.partialorder %v1257, 1e-12
        %vm1450 = vcmp.gt.f32.partialorder %v1258, 1e-12
        %vm1451 = vcmp.gt.f32.partialorder %v1259, 1e-12
        %vm1452 = vcmp.gt.f32.partialorder %v1260, 1e-12
        %vm1453 = vcmp.gt.f32.partialorder %v1261, 1e-12
        %vm1454 = vcmp.gt.f32.partialorder %v1262, 1e-12
        %vm1455 = vcmp.gt.f32.partialorder %v1263, 1e-12
        %vm1456 = vcmp.gt.f32.partialorder %v1264, 1e-12
        %vm1457 = vcmp.gt.f32.partialorder %v1265, 1e-12
        %vm1458 = vcmp.gt.f32.partialorder %v1266, 1e-12
        %vm1459 = vcmp.gt.f32.partialorder %v1267, 1e-12
        %vm1460 = vcmp.gt.f32.partialorder %v1268, 1e-12
        %vm1461 = vcmp.gt.f32.partialorder %v1269, 1e-12
        %vm1462 = vcmp.gt.f32.partialorder %v1270, 1e-12
        %vm1463 = vcmp.gt.f32.partialorder %v1271, 1e-12
        %vm1464 = vcmp.gt.f32.partialorder %v1272, 1e-12
        %vm1465 = vcmp.gt.f32.partialorder %v1273, 1e-12
        %vm1466 = vcmp.gt.f32.partialorder %v1274, 1e-12
        %vm1467 = vcmp.gt.f32.partialorder %v1275, 1e-12
        %vm1468 = vcmp.gt.f32.partialorder %v1276, 1e-12
        %vm1469 = vcmp.gt.f32.partialorder %v1277, 1e-12
        %vm1470 = vcmp.gt.f32.partialorder %v1278, 1e-12
        %vm1471 = vcmp.gt.f32.partialorder %v1279, 1e-12
        %vm1472 = vcmp.gt.f32.partialorder %v1280, 1e-12
        %vm1473 = vcmp.gt.f32.partialorder %v1281, 1e-12
        %vm1474 = vcmp.gt.f32.partialorder %v1282, 1e-12
        %vm1475 = vcmp.gt.f32.partialorder %v1283, 1e-12
        %vm1476 = vcmp.gt.f32.partialorder %v1284, 1e-12
        %vm1477 = vcmp.gt.f32.partialorder %v1285, 1e-12
        %vm1478 = vcmp.gt.f32.partialorder %v1286, 1e-12
        %vm1479 = vcmp.gt.f32.partialorder %v1287, 1e-12
        %vm1480 = vcmp.gt.f32.partialorder %v1288, 1e-12
        %vm1481 = vcmp.gt.f32.partialorder %v1289, 1e-12
        %vm1482 = vcmp.gt.f32.partialorder %v1290, 1e-12
        %vm1483 = vcmp.gt.f32.partialorder %v1291, 1e-12
        %vm1484 = vcmp.gt.f32.partialorder %v1292, 1e-12
        %vm1485 = vcmp.gt.f32.partialorder %v1293, 1e-12
        %vm1486 = vcmp.gt.f32.partialorder %v1294, 1e-12
        %vm1487 = vcmp.gt.f32.partialorder %v1295, 1e-12
        %vm1488 = vcmp.gt.f32.partialorder %v1296, 1e-12
        %vm1489 = vcmp.gt.f32.partialorder %v1297, 1e-12
        %vm1490 = vcmp.gt.f32.partialorder %v1298, 1e-12
        %vm1491 = vcmp.gt.f32.partialorder %v1299, 1e-12
        %vm1492 = vcmp.gt.f32.partialorder %v1300, 1e-12
        %vm1493 = vcmp.gt.f32.partialorder %v1301, 1e-12
        %vm1494 = vcmp.gt.f32.partialorder %v1302, 1e-12
        %vm1495 = vcmp.gt.f32.partialorder %v1303, 1e-12
        %vm1496 = vcmp.gt.f32.partialorder %v1304, 1e-12
        %vm1497 = vcmp.gt.f32.partialorder %v1305, 1e-12
        %vm1498 = vcmp.gt.f32.partialorder %v1306, 1e-12
        %vm1499 = vcmp.gt.f32.partialorder %v1307, 1e-12
        %vm1500 = vcmp.gt.f32.partialorder %v1308, 1e-12
        %vm1501 = vcmp.gt.f32.partialorder %v1309, 1e-12
        %vm1502 = vcmp.gt.f32.partialorder %v1310, 1e-12
        %vm1503 = vcmp.gt.f32.partialorder %v1311, 1e-12
        %vm1504 = vcmp.gt.f32.partialorder %v1312, 1e-12
        %vm1505 = vcmp.gt.f32.partialorder %v1313, 1e-12
        %vm1506 = vcmp.gt.f32.partialorder %v1314, 1e-12
        %vm1507 = vcmp.gt.f32.partialorder %v1315, 1e-12
        %vm1508 = vcmp.gt.f32.partialorder %v1316, 1e-12
        %vm1509 = vcmp.gt.f32.partialorder %v1317, 1e-12
        %vm1510 = vcmp.gt.f32.partialorder %v1318, 1e-12
        %vm1511 = vcmp.gt.f32.partialorder %v1319, 1e-12
        %vm1512 = vcmp.gt.f32.partialorder %v1320, 1e-12
        %vm1513 = vcmp.gt.f32.partialorder %v1321, 1e-12
        %vm1514 = vcmp.gt.f32.partialorder %v1322, 1e-12
        %vm1515 = vcmp.gt.f32.partialorder %v1323, 1e-12
        %vm1516 = vcmp.gt.f32.partialorder %v1324, 1e-12
        %vm1517 = vcmp.gt.f32.partialorder %v1325, 1e-12
        %vm1518 = vcmp.gt.f32.partialorder %v1326, 1e-12
        %vm1519 = vcmp.gt.f32.partialorder %v1327, 1e-12
        %vm1520 = vcmp.gt.f32.partialorder %v1328, 1e-12
        %vm1521 = vcmp.gt.f32.partialorder %v1329, 1e-12
        %vm1522 = vcmp.gt.f32.partialorder %v1330, 1e-12
        %vm1523 = vcmp.gt.f32.partialorder %v1331, 1e-12
        %vm1524 = vcmp.gt.f32.partialorder %v1332, 1e-12
        %vm1525 = vcmp.gt.f32.partialorder %v1333, 1e-12
        %vm1526 = vcmp.gt.f32.partialorder %v1334, 1e-12
        %vm1527 = vcmp.gt.f32.partialorder %v1335, 1e-12
        %vm1528 = vcmp.gt.f32.partialorder %v1336, 1e-12
        %vm1529 = vcmp.gt.f32.partialorder %v1337, 1e-12
        %vm1530 = vcmp.gt.f32.partialorder %v1338, 1e-12
        %vm1531 = vcmp.gt.f32.partialorder %v1339, 1e-12
        %vm1532 = vcmp.gt.f32.partialorder %v1340, 1e-12
        %vm1533 = vcmp.gt.f32.partialorder %v1341, 1e-12
        %vm1534 = vcmp.gt.f32.partialorder %v1342, 1e-12
        %vm1535 = vcmp.gt.f32.partialorder %v1343, 1e-12
        %vm1536 = vcmp.gt.f32.partialorder %v1344, 1e-12
        %vm1537 = vcmp.gt.f32.partialorder %v1345, 1e-12
        %vm1538 = vcmp.gt.f32.partialorder %v1346, 1e-12
        %vm1539 = vcmp.gt.f32.partialorder %v1347, 1e-12
        %vm1540 = vcmp.gt.f32.partialorder %v1348, 1e-12
        %vm1541 = vcmp.gt.f32.partialorder %v1349, 1e-12
        %vm1542 = vcmp.gt.f32.partialorder %v1350, 1e-12
        %vm1543 = vcmp.gt.f32.partialorder %v1351, 1e-12
        %vm1544 = vcmp.gt.f32.partialorder %v1352, 1e-12
        %vm1545 = vcmp.gt.f32.partialorder %v1353, 1e-12
        %vm1546 = vcmp.gt.f32.partialorder %v1354, 1e-12
        %vm1547 = vcmp.gt.f32.partialorder %v1355, 1e-12
        %vm1548 = vcmp.gt.f32.partialorder %v1356, 1e-12
        %vm1549 = vcmp.gt.f32.partialorder %v1357, 1e-12
        %vm1550 = vcmp.gt.f32.partialorder %v1358, 1e-12
        %vm1551 = vcmp.gt.f32.partialorder %v1359, 1e-12
        %vm1552 = vcmp.gt.f32.partialorder %v1360, 1e-12
        %vm1553 = vcmp.gt.f32.partialorder %v1361, 1e-12
        %vm1554 = vcmp.gt.f32.partialorder %v1362, 1e-12
        %vm1555 = vcmp.gt.f32.partialorder %v1363, 1e-12
        %vm1556 = vcmp.gt.f32.partialorder %v1364, 1e-12
        %vm1557 = vcmp.gt.f32.partialorder %v1365, 1e-12
        %vm1558 = vcmp.gt.f32.partialorder %v1366, 1e-12
        %vm1559 = vcmp.gt.f32.partialorder %v1367, 1e-12
        %vm1560 = vcmp.gt.f32.partialorder %v1368, 1e-12
        %vm1561 = vcmp.gt.f32.partialorder %v1369, 1e-12
        %vm1562 = vcmp.gt.f32.partialorder %v1370, 1e-12
        %vm1563 = vcmp.gt.f32.partialorder %v1371, 1e-12
        %vm1564 = vcmp.gt.f32.partialorder %v1372, 1e-12
        %vm1565 = vcmp.gt.f32.partialorder %v1373, 1e-12
        %vm1566 = vcmp.gt.f32.partialorder %v1374, 1e-12
        %vm1567 = vcmp.gt.f32.partialorder %v1375, 1e-12
        %vm1568 = vcmp.gt.f32.partialorder %v1376, 1e-12
        %vm1569 = vcmp.gt.f32.partialorder %v1377, 1e-12
        %vm1570 = vcmp.gt.f32.partialorder %v1378, 1e-12
        %vm1571 = vcmp.gt.f32.partialorder %v1379, 1e-12
        %vm1572 = vcmp.gt.f32.partialorder %v1380, 1e-12
        %vm1573 = vcmp.gt.f32.partialorder %v1381, 1e-12
        %vm1574 = vcmp.gt.f32.partialorder %v1382, 1e-12
        %vm1575 = vcmp.gt.f32.partialorder %v1383, 1e-12
        %vm1576 = vcmp.gt.f32.partialorder %v1384, 1e-12
        %vm1577 = vcmp.gt.f32.partialorder %v1385, 1e-12
        %vm1578 = vcmp.gt.f32.partialorder %v1386, 1e-12
        %vm1579 = vcmp.gt.f32.partialorder %v1387, 1e-12
        %vm1580 = vcmp.gt.f32.partialorder %v1388, 1e-12
        %vm1581 = vcmp.gt.f32.partialorder %v1389, 1e-12
        %vm1582 = vcmp.gt.f32.partialorder %v1390, 1e-12
        %vm1583 = vcmp.gt.f32.partialorder %v1391, 1e-12
        %vm1584 = vcmp.gt.f32.partialorder %v1392, 1e-12
        %vm1585 = vcmp.gt.f32.partialorder %v1393, 1e-12
        %vm1586 = vcmp.gt.f32.partialorder %v1394, 1e-12
        %vm1587 = vcmp.gt.f32.partialorder %v1395, 1e-12
        %vm1588 = vcmp.gt.f32.partialorder %v1396, 1e-12
        %vm1589 = vcmp.gt.f32.partialorder %v1397, 1e-12
        %vm1590 = vcmp.gt.f32.partialorder %v1398, 1e-12
        %vm1591 = vcmp.gt.f32.partialorder %v1399, 1e-12
        %vm1592 = vcmp.gt.f32.partialorder %v1400, 1e-12
        %vm1593 = vcmp.gt.f32.partialorder %v1401, 1e-12
        %vm1594 = vcmp.gt.f32.partialorder %v1402, 1e-12
        %vm1595 = vcmp.gt.f32.partialorder %v1403, 1e-12
        %vm1596 = vcmp.gt.f32.partialorder %v1404, 1e-12
        %vm1597 = vcmp.gt.f32.partialorder %v1405, 1e-12
        %vm1598 = vcmp.gt.f32.partialorder %v1406, 1e-12
        %vm1599 = vcmp.gt.f32.partialorder %v1407, 1e-12
        %vm1600 = vcmp.gt.f32.partialorder %v1408, 1e-12
        %vm1601 = vcmp.gt.f32.partialorder %v1409, 1e-12
        %vm1602 = vcmp.gt.f32.partialorder %v1410, 1e-12
        %vm1603 = vcmp.gt.f32.partialorder %v1411, 1e-12
        %vm1604 = vcmp.gt.f32.partialorder %v1412, 1e-12
        %vm1605 = vcmp.gt.f32.partialorder %v1413, 1e-12
        %vm1606 = vcmp.gt.f32.partialorder %v1414, 1e-12
        %vm1607 = vcmp.gt.f32.partialorder %v1415, 1e-12
        %vm1608 = vcmp.gt.f32.partialorder %v1416, 1e-12
        %vm1609 = vcmp.gt.f32.partialorder %v1417, 1e-12
        %vm1610 = vcmp.gt.f32.partialorder %v1418, 1e-12
        %vm1611 = vcmp.gt.f32.partialorder %v1419, 1e-12
        %vm1612 = vcmp.gt.f32.partialorder %v1420, 1e-12
        %vm1613 = vcmp.gt.f32.partialorder %v1421, 1e-12
        %vm1614 = vcmp.gt.f32.partialorder %v1422, 1e-12
        %vm1615 = vcmp.gt.f32.partialorder %v1423, 1e-12
        %vm1616 = vcmp.gt.f32.partialorder %v1424, 1e-12
        %vm1617 = vcmp.gt.f32.partialorder %v1425, 1e-12
        %vm1618 = vcmp.gt.f32.partialorder %v1426, 1e-12
        %v1619 = vmax.f32 %v1235, 1e-12
        %v1620 = vmax.f32 %v1236, 1e-12
        %v1621 = vmax.f32 %v1237, 1e-12
        %v1622 = vmax.f32 %v1238, 1e-12
        %v1623 = vmax.f32 %v1239, 1e-12
        %v1624 = vmax.f32 %v1240, 1e-12
        %v1625 = vmax.f32 %v1241, 1e-12
        %v1626 = vmax.f32 %v1242, 1e-12
        %v1627 = vmax.f32 %v1243, 1e-12
        %v1628 = vmax.f32 %v1244, 1e-12
        %v1629 = vmax.f32 %v1245, 1e-12
        %v1630 = vmax.f32 %v1246, 1e-12
        %v1631 = vmax.f32 %v1247, 1e-12
        %v1632 = vmax.f32 %v1248, 1e-12
        %v1633 = vmax.f32 %v1249, 1e-12
        %v1634 = vmax.f32 %v1250, 1e-12
        %v1635 = vmax.f32 %v1251, 1e-12
        %v1636 = vmax.f32 %v1252, 1e-12
        %v1637 = vmax.f32 %v1253, 1e-12
        %v1638 = vmax.f32 %v1254, 1e-12
        %v1639 = vmax.f32 %v1255, 1e-12
        %v1640 = vmax.f32 %v1256, 1e-12
        %v1641 = vmax.f32 %v1257, 1e-12
        %v1642 = vmax.f32 %v1258, 1e-12
        %v1643 = vmax.f32 %v1259, 1e-12
        %v1644 = vmax.f32 %v1260, 1e-12
        %v1645 = vmax.f32 %v1261, 1e-12
        %v1646 = vmax.f32 %v1262, 1e-12
        %v1647 = vmax.f32 %v1263, 1e-12
        %v1648 = vmax.f32 %v1264, 1e-12
        %v1649 = vmax.f32 %v1265, 1e-12
        %v1650 = vmax.f32 %v1266, 1e-12
        %v1651 = vmax.f32 %v1267, 1e-12
        %v1652 = vmax.f32 %v1268, 1e-12
        %v1653 = vmax.f32 %v1269, 1e-12
        %v1654 = vmax.f32 %v1270, 1e-12
        %v1655 = vmax.f32 %v1271, 1e-12
        %v1656 = vmax.f32 %v1272, 1e-12
        %v1657 = vmax.f32 %v1273, 1e-12
        %v1658 = vmax.f32 %v1274, 1e-12
        %v1659 = vmax.f32 %v1275, 1e-12
        %v1660 = vmax.f32 %v1276, 1e-12
        %v1661 = vmax.f32 %v1277, 1e-12
        %v1662 = vmax.f32 %v1278, 1e-12
        %v1663 = vmax.f32 %v1279, 1e-12
        %v1664 = vmax.f32 %v1280, 1e-12
        %v1665 = vmax.f32 %v1281, 1e-12
        %v1666 = vmax.f32 %v1282, 1e-12
        %v1667 = vmax.f32 %v1283, 1e-12
        %v1668 = vmax.f32 %v1284, 1e-12
        %v1669 = vmax.f32 %v1285, 1e-12
        %v1670 = vmax.f32 %v1286, 1e-12
        %v1671 = vmax.f32 %v1287, 1e-12
        %v1672 = vmax.f32 %v1288, 1e-12
        %v1673 = vmax.f32 %v1289, 1e-12
        %v1674 = vmax.f32 %v1290, 1e-12
        %v1675 = vmax.f32 %v1291, 1e-12
        %v1676 = vmax.f32 %v1292, 1e-12
        %v1677 = vmax.f32 %v1293, 1e-12
        %v1678 = vmax.f32 %v1294, 1e-12
        %v1679 = vmax.f32 %v1295, 1e-12
        %v1680 = vmax.f32 %v1296, 1e-12
        %v1681 = vmax.f32 %v1297, 1e-12
        %v1682 = vmax.f32 %v1298, 1e-12
        %v1683 = vmax.f32 %v1299, 1e-12
        %v1684 = vmax.f32 %v1300, 1e-12
        %v1685 = vmax.f32 %v1301, 1e-12
        %v1686 = vmax.f32 %v1302, 1e-12
        %v1687 = vmax.f32 %v1303, 1e-12
        %v1688 = vmax.f32 %v1304, 1e-12
        %v1689 = vmax.f32 %v1305, 1e-12
        %v1690 = vmax.f32 %v1306, 1e-12
        %v1691 = vmax.f32 %v1307, 1e-12
        %v1692 = vmax.f32 %v1308, 1e-12
        %v1693 = vmax.f32 %v1309, 1e-12
        %v1694 = vmax.f32 %v1310, 1e-12
        %v1695 = vmax.f32 %v1311, 1e-12
        %v1696 = vmax.f32 %v1312, 1e-12
        %v1697 = vmax.f32 %v1313, 1e-12
        %v1698 = vmax.f32 %v1314, 1e-12
        %v1699 = vmax.f32 %v1315, 1e-12
        %v1700 = vmax.f32 %v1316, 1e-12
        %v1701 = vmax.f32 %v1317, 1e-12
        %v1702 = vmax.f32 %v1318, 1e-12
        %v1703 = vmax.f32 %v1319, 1e-12
        %v1704 = vmax.f32 %v1320, 1e-12
        %v1705 = vmax.f32 %v1321, 1e-12
        %v1706 = vmax.f32 %v1322, 1e-12
        %v1707 = vmax.f32 %v1323, 1e-12
        %v1708 = vmax.f32 %v1324, 1e-12
        %v1709 = vmax.f32 %v1325, 1e-12
        %v1710 = vmax.f32 %v1326, 1e-12
        %v1711 = vmax.f32 %v1327, 1e-12
        %v1712 = vmax.f32 %v1328, 1e-12
        %v1713 = vmax.f32 %v1329, 1e-12
        %v1714 = vmax.f32 %v1330, 1e-12
        %v1715 = vmax.f32 %v1331, 1e-12
        %v1716 = vmax.f32 %v1332, 1e-12
        %v1717 = vmax.f32 %v1333, 1e-12
        %v1718 = vmax.f32 %v1334, 1e-12
        %v1719 = vmax.f32 %v1335, 1e-12
        %v1720 = vmax.f32 %v1336, 1e-12
        %v1721 = vmax.f32 %v1337, 1e-12
        %v1722 = vmax.f32 %v1338, 1e-12
        %v1723 = vmax.f32 %v1339, 1e-12
        %v1724 = vmax.f32 %v1340, 1e-12
        %v1725 = vmax.f32 %v1341, 1e-12
        %v1726 = vmax.f32 %v1342, 1e-12
        %v1727 = vmax.f32 %v1343, 1e-12
        %v1728 = vmax.f32 %v1344, 1e-12
        %v1729 = vmax.f32 %v1345, 1e-12
        %v1730 = vmax.f32 %v1346, 1e-12
        %v1731 = vmax.f32 %v1347, 1e-12
        %v1732 = vmax.f32 %v1348, 1e-12
        %v1733 = vmax.f32 %v1349, 1e-12
        %v1734 = vmax.f32 %v1350, 1e-12
        %v1735 = vmax.f32 %v1351, 1e-12
        %v1736 = vmax.f32 %v1352, 1e-12
        %v1737 = vmax.f32 %v1353, 1e-12
        %v1738 = vmax.f32 %v1354, 1e-12
        %v1739 = vmax.f32 %v1355, 1e-12
        %v1740 = vmax.f32 %v1356, 1e-12
        %v1741 = vmax.f32 %v1357, 1e-12
        %v1742 = vmax.f32 %v1358, 1e-12
        %v1743 = vmax.f32 %v1359, 1e-12
        %v1744 = vmax.f32 %v1360, 1e-12
        %v1745 = vmax.f32 %v1361, 1e-12
        %v1746 = vmax.f32 %v1362, 1e-12
        %v1747 = vmax.f32 %v1363, 1e-12
        %v1748 = vmax.f32 %v1364, 1e-12
        %v1749 = vmax.f32 %v1365, 1e-12
        %v1750 = vmax.f32 %v1366, 1e-12
        %v1751 = vmax.f32 %v1367, 1e-12
        %v1752 = vmax.f32 %v1368, 1e-12
        %v1753 = vmax.f32 %v1369, 1e-12
        %v1754 = vmax.f32 %v1370, 1e-12
        %v1755 = vmax.f32 %v1371, 1e-12
        %v1756 = vmax.f32 %v1372, 1e-12
        %v1757 = vmax.f32 %v1373, 1e-12
        %v1758 = vmax.f32 %v1374, 1e-12
        %v1759 = vmax.f32 %v1375, 1e-12
        %v1760 = vmax.f32 %v1376, 1e-12
        %v1761 = vmax.f32 %v1377, 1e-12
        %v1762 = vmax.f32 %v1378, 1e-12
        %v1763 = vmax.f32 %v1379, 1e-12
        %v1764 = vmax.f32 %v1380, 1e-12
        %v1765 = vmax.f32 %v1381, 1e-12
        %v1766 = vmax.f32 %v1382, 1e-12
        %v1767 = vmax.f32 %v1383, 1e-12
        %v1768 = vmax.f32 %v1384, 1e-12
        %v1769 = vmax.f32 %v1385, 1e-12
        %v1770 = vmax.f32 %v1386, 1e-12
        %v1771 = vmax.f32 %v1387, 1e-12
        %v1772 = vmax.f32 %v1388, 1e-12
        %v1773 = vmax.f32 %v1389, 1e-12
        %v1774 = vmax.f32 %v1390, 1e-12
        %v1775 = vmax.f32 %v1391, 1e-12
        %v1776 = vmax.f32 %v1392, 1e-12
        %v1777 = vmax.f32 %v1393, 1e-12
        %v1778 = vmax.f32 %v1394, 1e-12
        %v1779 = vmax.f32 %v1395, 1e-12
        %v1780 = vmax.f32 %v1396, 1e-12
        %v1781 = vmax.f32 %v1397, 1e-12
        %v1782 = vmax.f32 %v1398, 1e-12
        %v1783 = vmax.f32 %v1399, 1e-12
        %v1784 = vmax.f32 %v1400, 1e-12
        %v1785 = vmax.f32 %v1401, 1e-12
        %v1786 = vmax.f32 %v1402, 1e-12
        %v1787 = vmax.f32 %v1403, 1e-12
        %v1788 = vmax.f32 %v1404, 1e-12
        %v1789 = vmax.f32 %v1405, 1e-12
        %v1790 = vmax.f32 %v1406, 1e-12
        %v1791 = vmax.f32 %v1407, 1e-12
        %v1792 = vmax.f32 %v1408, 1e-12
        %v1793 = vmax.f32 %v1409, 1e-12
        %v1794 = vmax.f32 %v1410, 1e-12
        %v1795 = vmax.f32 %v1411, 1e-12
        %v1796 = vmax.f32 %v1412, 1e-12
        %v1797 = vmax.f32 %v1413, 1e-12
        %v1798 = vmax.f32 %v1414, 1e-12
        %v1799 = vmax.f32 %v1415, 1e-12
        %v1800 = vmax.f32 %v1416, 1e-12
        %v1801 = vmax.f32 %v1417, 1e-12
        %v1802 = vmax.f32 %v1418, 1e-12
        %v1803 = vmax.f32 %v1419, 1e-12
        %v1804 = vmax.f32 %v1420, 1e-12
        %v1805 = vmax.f32 %v1421, 1e-12
        %v1806 = vmax.f32 %v1422, 1e-12
        %v1807 = vmax.f32 %v1423, 1e-12
        %v1808 = vmax.f32 %v1424, 1e-12
        %v1809 = vmax.f32 %v1425, 1e-12
        %v1810 = vmax.f32 %v1426, 1e-12
        %v1811 = vlog2.pop %v1619
        %v1812 = vmul.f32 %v1811, 0.6931472
        %v1813 = vlog2.pop %v1620
        %v1814 = vmul.f32 %v1813, 0.6931472
        %v1815 = vlog2.pop %v1621
        %v1816 = vmul.f32 %v1815, 0.6931472
        %v1817 = vlog2.pop %v1622
        %v1818 = vmul.f32 %v1817, 0.6931472
        %v1819 = vlog2.pop %v1623
        %v1820 = vmul.f32 %v1819, 0.6931472
        %v1821 = vlog2.pop %v1624
        %v1822 = vmul.f32 %v1821, 0.6931472
        %v1823 = vlog2.pop %v1625
        %v1824 = vmul.f32 %v1823, 0.6931472
        %v1825 = vlog2.pop %v1626
        %v1826 = vmul.f32 %v1825, 0.6931472
        %v1827 = vlog2.pop %v1627
        %v1828 = vmul.f32 %v1827, 0.6931472
        %v1829 = vlog2.pop %v1628
        %v1830 = vmul.f32 %v1829, 0.6931472
        %v1831 = vlog2.pop %v1629
        %v1832 = vmul.f32 %v1831, 0.6931472
        %v1833 = vlog2.pop %v1630
        %v1834 = vmul.f32 %v1833, 0.6931472
        %v1835 = vlog2.pop %v1631
        %v1836 = vmul.f32 %v1835, 0.6931472
        %v1837 = vlog2.pop %v1632
        %v1838 = vmul.f32 %v1837, 0.6931472
        %v1839 = vlog2.pop %v1633
        %v1840 = vmul.f32 %v1839, 0.6931472
        %v1841 = vlog2.pop %v1634
        %v1842 = vmul.f32 %v1841, 0.6931472
        %v1843 = vlog2.pop %v1635
        %v1844 = vmul.f32 %v1843, 0.6931472
        %v1845 = vlog2.pop %v1636
        %v1846 = vmul.f32 %v1845, 0.6931472
        %v1847 = vlog2.pop %v1637
        %v1848 = vmul.f32 %v1847, 0.6931472
        %v1849 = vlog2.pop %v1638
        %v1850 = vmul.f32 %v1849, 0.6931472
        %v1851 = vlog2.pop %v1639
        %v1852 = vmul.f32 %v1851, 0.6931472
        %v1853 = vlog2.pop %v1640
        %v1854 = vmul.f32 %v1853, 0.6931472
        %v1855 = vlog2.pop %v1641
        %v1856 = vmul.f32 %v1855, 0.6931472
        %v1857 = vlog2.pop %v1642
        %v1858 = vmul.f32 %v1857, 0.6931472
        %v1859 = vlog2.pop %v1643
        %v1860 = vmul.f32 %v1859, 0.6931472
        %v1861 = vlog2.pop %v1644
        %v1862 = vmul.f32 %v1861, 0.6931472
        %v1863 = vlog2.pop %v1645
        %v1864 = vmul.f32 %v1863, 0.6931472
        %v1865 = vlog2.pop %v1646
        %v1866 = vmul.f32 %v1865, 0.6931472
        %v1867 = vlog2.pop %v1647
        %v1868 = vmul.f32 %v1867, 0.6931472
        %v1869 = vlog2.pop %v1648
        %v1870 = vmul.f32 %v1869, 0.6931472
        %v1871 = vlog2.pop %v1649
        %v1872 = vmul.f32 %v1871, 0.6931472
        %v1873 = vlog2.pop %v1650
        %v1874 = vmul.f32 %v1873, 0.6931472
        %v1875 = vlog2.pop %v1651
        %v1876 = vmul.f32 %v1875, 0.6931472
        %v1877 = vlog2.pop %v1652
        %v1878 = vmul.f32 %v1877, 0.6931472
        %v1879 = vlog2.pop %v1653
        %v1880 = vmul.f32 %v1879, 0.6931472
        %v1881 = vlog2.pop %v1654
        %v1882 = vmul.f32 %v1881, 0.6931472
        %v1883 = vlog2.pop %v1655
        %v1884 = vmul.f32 %v1883, 0.6931472
        %v1885 = vlog2.pop %v1656
        %v1886 = vmul.f32 %v1885, 0.6931472
        %v1887 = vlog2.pop %v1657
        %v1888 = vmul.f32 %v1887, 0.6931472
        %v1889 = vlog2.pop %v1658
        %v1890 = vmul.f32 %v1889, 0.6931472
        %v1891 = vlog2.pop %v1659
        %v1892 = vmul.f32 %v1891, 0.6931472
        %v1893 = vlog2.pop %v1660
        %v1894 = vmul.f32 %v1893, 0.6931472
        %v1895 = vlog2.pop %v1661
        %v1896 = vmul.f32 %v1895, 0.6931472
        %v1897 = vlog2.pop %v1662
        %v1898 = vmul.f32 %v1897, 0.6931472
        %v1899 = vlog2.pop %v1663
        %v1900 = vmul.f32 %v1899, 0.6931472
        %v1901 = vlog2.pop %v1664
        %v1902 = vmul.f32 %v1901, 0.6931472
        %v1903 = vlog2.pop %v1665
        %v1904 = vmul.f32 %v1903, 0.6931472
        %v1905 = vlog2.pop %v1666
        %v1906 = vmul.f32 %v1905, 0.6931472
        %v1907 = vlog2.pop %v1667
        %v1908 = vmul.f32 %v1907, 0.6931472
        %v1909 = vlog2.pop %v1668
        %v1910 = vmul.f32 %v1909, 0.6931472
        %v1911 = vlog2.pop %v1669
        %v1912 = vmul.f32 %v1911, 0.6931472
        %v1913 = vlog2.pop %v1670
        %v1914 = vmul.f32 %v1913, 0.6931472
        %v1915 = vlog2.pop %v1671
        %v1916 = vmul.f32 %v1915, 0.6931472
        %v1917 = vlog2.pop %v1672
        %v1918 = vmul.f32 %v1917, 0.6931472
        %v1919 = vlog2.pop %v1673
        %v1920 = vmul.f32 %v1919, 0.6931472
        %v1921 = vlog2.pop %v1674
        %v1922 = vmul.f32 %v1921, 0.6931472
        %v1923 = vlog2.pop %v1675
        %v1924 = vmul.f32 %v1923, 0.6931472
        %v1925 = vlog2.pop %v1676
        %v1926 = vmul.f32 %v1925, 0.6931472
        %v1927 = vlog2.pop %v1677
        %v1928 = vmul.f32 %v1927, 0.6931472
        %v1929 = vlog2.pop %v1678
        %v1930 = vmul.f32 %v1929, 0.6931472
        %v1931 = vlog2.pop %v1679
        %v1932 = vmul.f32 %v1931, 0.6931472
        %v1933 = vlog2.pop %v1680
        %v1934 = vmul.f32 %v1933, 0.6931472
        %v1935 = vlog2.pop %v1681
        %v1936 = vmul.f32 %v1935, 0.6931472
        %v1937 = vlog2.pop %v1682
        %v1938 = vmul.f32 %v1937, 0.6931472
        %v1939 = vlog2.pop %v1683
        %v1940 = vmul.f32 %v1939, 0.6931472
        %v1941 = vlog2.pop %v1684
        %v1942 = vmul.f32 %v1941, 0.6931472
        %v1943 = vlog2.pop %v1685
        %v1944 = vmul.f32 %v1943, 0.6931472
        %v1945 = vlog2.pop %v1686
        %v1946 = vmul.f32 %v1945, 0.6931472
        %v1947 = vlog2.pop %v1687
        %v1948 = vmul.f32 %v1947, 0.6931472
        %v1949 = vlog2.pop %v1688
        %v1950 = vmul.f32 %v1949, 0.6931472
        %v1951 = vlog2.pop %v1689
        %v1952 = vmul.f32 %v1951, 0.6931472
        %v1953 = vlog2.pop %v1690
        %v1954 = vmul.f32 %v1953, 0.6931472
        %v1955 = vlog2.pop %v1691
        %v1956 = vmul.f32 %v1955, 0.6931472
        %v1957 = vlog2.pop %v1692
        %v1958 = vmul.f32 %v1957, 0.6931472
        %v1959 = vlog2.pop %v1693
        %v1960 = vmul.f32 %v1959, 0.6931472
        %v1961 = vlog2.pop %v1694
        %v1962 = vmul.f32 %v1961, 0.6931472
        %v1963 = vlog2.pop %v1695
        %v1964 = vmul.f32 %v1963, 0.6931472
        %v1965 = vlog2.pop %v1696
        %v1966 = vmul.f32 %v1965, 0.6931472
        %v1967 = vlog2.pop %v1697
        %v1968 = vmul.f32 %v1967, 0.6931472
        %v1969 = vlog2.pop %v1698
        %v1970 = vmul.f32 %v1969, 0.6931472
        %v1971 = vlog2.pop %v1699
        %v1972 = vmul.f32 %v1971, 0.6931472
        %v1973 = vlog2.pop %v1700
        %v1974 = vmul.f32 %v1973, 0.6931472
        %v1975 = vlog2.pop %v1701
        %v1976 = vmul.f32 %v1975, 0.6931472
        %v1977 = vlog2.pop %v1702
        %v1978 = vmul.f32 %v1977, 0.6931472
        %v1979 = vlog2.pop %v1703
        %v1980 = vmul.f32 %v1979, 0.6931472
        %v1981 = vlog2.pop %v1704
        %v1982 = vmul.f32 %v1981, 0.6931472
        %v1983 = vlog2.pop %v1705
        %v1984 = vmul.f32 %v1983, 0.6931472
        %v1985 = vlog2.pop %v1706
        %v1986 = vmul.f32 %v1985, 0.6931472
        %v1987 = vlog2.pop %v1707
        %v1988 = vmul.f32 %v1987, 0.6931472
        %v1989 = vlog2.pop %v1708
        %v1990 = vmul.f32 %v1989, 0.6931472
        %v1991 = vlog2.pop %v1709
        %v1992 = vmul.f32 %v1991, 0.6931472
        %v1993 = vlog2.pop %v1710
        %v1994 = vmul.f32 %v1993, 0.6931472
        %v1995 = vlog2.pop %v1711
        %v1996 = vmul.f32 %v1995, 0.6931472
        %v1997 = vlog2.pop %v1712
        %v1998 = vmul.f32 %v1997, 0.6931472
        %v1999 = vlog2.pop %v1713
        %v2000 = vmul.f32 %v1999, 0.6931472
        %v2001 = vlog2.pop %v1714
        %v2002 = vmul.f32 %v2001, 0.6931472
        %v2003 = vlog2.pop %v1715
        %v2004 = vmul.f32 %v2003, 0.6931472
        %v2005 = vlog2.pop %v1716
        %v2006 = vmul.f32 %v2005, 0.6931472
        %v2007 = vlog2.pop %v1717
        %v2008 = vmul.f32 %v2007, 0.6931472
        %v2009 = vlog2.pop %v1718
        %v2010 = vmul.f32 %v2009, 0.6931472
        %v2011 = vlog2.pop %v1719
        %v2012 = vmul.f32 %v2011, 0.6931472
        %v2013 = vlog2.pop %v1720
        %v2014 = vmul.f32 %v2013, 0.6931472
        %v2015 = vlog2.pop %v1721
        %v2016 = vmul.f32 %v2015, 0.6931472
        %v2017 = vlog2.pop %v1722
        %v2018 = vmul.f32 %v2017, 0.6931472
        %v2019 = vlog2.pop %v1723
        %v2020 = vmul.f32 %v2019, 0.6931472
        %v2021 = vlog2.pop %v1724
        %v2022 = vmul.f32 %v2021, 0.6931472
        %v2023 = vlog2.pop %v1725
        %v2024 = vmul.f32 %v2023, 0.6931472
        %v2025 = vlog2.pop %v1726
        %v2026 = vmul.f32 %v2025, 0.6931472
        %v2027 = vlog2.pop %v1727
        %v2028 = vmul.f32 %v2027, 0.6931472
        %v2029 = vlog2.pop %v1728
        %v2030 = vmul.f32 %v2029, 0.6931472
        %v2031 = vlog2.pop %v1729
        %v2032 = vmul.f32 %v2031, 0.6931472
        %v2033 = vlog2.pop %v1730
        %v2034 = vmul.f32 %v2033, 0.6931472
        %v2035 = vlog2.pop %v1731
        %v2036 = vmul.f32 %v2035, 0.6931472
        %v2037 = vlog2.pop %v1732
        %v2038 = vmul.f32 %v2037, 0.6931472
        %v2039 = vlog2.pop %v1733
        %v2040 = vmul.f32 %v2039, 0.6931472
        %v2041 = vlog2.pop %v1734
        %v2042 = vmul.f32 %v2041, 0.6931472
        %v2043 = vlog2.pop %v1735
        %v2044 = vmul.f32 %v2043, 0.6931472
        %v2045 = vlog2.pop %v1736
        %v2046 = vmul.f32 %v2045, 0.6931472
        %v2047 = vlog2.pop %v1737
        %v2048 = vmul.f32 %v2047, 0.6931472
        %v2049 = vlog2.pop %v1738
        %v2050 = vmul.f32 %v2049, 0.6931472
        %v2051 = vlog2.pop %v1739
        %v2052 = vmul.f32 %v2051, 0.6931472
        %v2053 = vlog2.pop %v1740
        %v2054 = vmul.f32 %v2053, 0.6931472
        %v2055 = vlog2.pop %v1741
        %v2056 = vmul.f32 %v2055, 0.6931472
        %v2057 = vlog2.pop %v1742
        %v2058 = vmul.f32 %v2057, 0.6931472
        %v2059 = vlog2.pop %v1743
        %v2060 = vmul.f32 %v2059, 0.6931472
        %v2061 = vlog2.pop %v1744
        %v2062 = vmul.f32 %v2061, 0.6931472
        %v2063 = vlog2.pop %v1745
        %v2064 = vmul.f32 %v2063, 0.6931472
        %v2065 = vlog2.pop %v1746
        %v2066 = vmul.f32 %v2065, 0.6931472
        %v2067 = vlog2.pop %v1747
        %v2068 = vmul.f32 %v2067, 0.6931472
        %v2069 = vlog2.pop %v1748
        %v2070 = vmul.f32 %v2069, 0.6931472
        %v2071 = vlog2.pop %v1749
        %v2072 = vmul.f32 %v2071, 0.6931472
        %v2073 = vlog2.pop %v1750
        %v2074 = vmul.f32 %v2073, 0.6931472
        %v2075 = vlog2.pop %v1751
        %v2076 = vmul.f32 %v2075, 0.6931472
        %v2077 = vlog2.pop %v1752
        %v2078 = vmul.f32 %v2077, 0.6931472
        %v2079 = vlog2.pop %v1753
        %v2080 = vmul.f32 %v2079, 0.6931472
        %v2081 = vlog2.pop %v1754
        %v2082 = vmul.f32 %v2081, 0.6931472
        %v2083 = vlog2.pop %v1755
        %v2084 = vmul.f32 %v2083, 0.6931472
        %v2085 = vlog2.pop %v1756
        %v2086 = vmul.f32 %v2085, 0.6931472
        %v2087 = vlog2.pop %v1757
        %v2088 = vmul.f32 %v2087, 0.6931472
        %v2089 = vlog2.pop %v1758
        %v2090 = vmul.f32 %v2089, 0.6931472
        %v2091 = vlog2.pop %v1759
        %v2092 = vmul.f32 %v2091, 0.6931472
        %v2093 = vlog2.pop %v1760
        %v2094 = vmul.f32 %v2093, 0.6931472
        %v2095 = vlog2.pop %v1761
        %v2096 = vmul.f32 %v2095, 0.6931472
        %v2097 = vlog2.pop %v1762
        %v2098 = vmul.f32 %v2097, 0.6931472
        %v2099 = vlog2.pop %v1763
        %v2100 = vmul.f32 %v2099, 0.6931472
        %v2101 = vlog2.pop %v1764
        %v2102 = vmul.f32 %v2101, 0.6931472
        %v2103 = vlog2.pop %v1765
        %v2104 = vmul.f32 %v2103, 0.6931472
        %v2105 = vlog2.pop %v1766
        %v2106 = vmul.f32 %v2105, 0.6931472
        %v2107 = vlog2.pop %v1767
        %v2108 = vmul.f32 %v2107, 0.6931472
        %v2109 = vlog2.pop %v1768
        %v2110 = vmul.f32 %v2109, 0.6931472
        %v2111 = vlog2.pop %v1769
        %v2112 = vmul.f32 %v2111, 0.6931472
        %v2113 = vlog2.pop %v1770
        %v2114 = vmul.f32 %v2113, 0.6931472
        %v2115 = vlog2.pop %v1771
        %v2116 = vmul.f32 %v2115, 0.6931472
        %v2117 = vlog2.pop %v1772
        %v2118 = vmul.f32 %v2117, 0.6931472
        %v2119 = vlog2.pop %v1773
        %v2120 = vmul.f32 %v2119, 0.6931472
        %v2121 = vlog2.pop %v1774
        %v2122 = vmul.f32 %v2121, 0.6931472
        %v2123 = vlog2.pop %v1775
        %v2124 = vmul.f32 %v2123, 0.6931472
        %v2125 = vlog2.pop %v1776
        %v2126 = vmul.f32 %v2125, 0.6931472
        %v2127 = vlog2.pop %v1777
        %v2128 = vmul.f32 %v2127, 0.6931472
        %v2129 = vlog2.pop %v1778
        %v2130 = vmul.f32 %v2129, 0.6931472
        %v2131 = vlog2.pop %v1779
        %v2132 = vmul.f32 %v2131, 0.6931472
        %v2133 = vlog2.pop %v1780
        %v2134 = vmul.f32 %v2133, 0.6931472
        %v2135 = vlog2.pop %v1781
        %v2136 = vmul.f32 %v2135, 0.6931472
        %v2137 = vlog2.pop %v1782
        %v2138 = vmul.f32 %v2137, 0.6931472
        %v2139 = vlog2.pop %v1783
        %v2140 = vmul.f32 %v2139, 0.6931472
        %v2141 = vlog2.pop %v1784
        %v2142 = vmul.f32 %v2141, 0.6931472
        %v2143 = vlog2.pop %v1785
        %v2144 = vmul.f32 %v2143, 0.6931472
        %v2145 = vlog2.pop %v1786
        %v2146 = vmul.f32 %v2145, 0.6931472
        %v2147 = vlog2.pop %v1787
        %v2148 = vmul.f32 %v2147, 0.6931472
        %v2149 = vlog2.pop %v1788
        %v2150 = vmul.f32 %v2149, 0.6931472
        %v2151 = vlog2.pop %v1789
        %v2152 = vmul.f32 %v2151, 0.6931472
        %v2153 = vlog2.pop %v1790
        %v2154 = vmul.f32 %v2153, 0.6931472
        %v2155 = vlog2.pop %v1791
        %v2156 = vmul.f32 %v2155, 0.6931472
        %v2157 = vlog2.pop %v1792
        %v2158 = vmul.f32 %v2157, 0.6931472
        %v2159 = vlog2.pop %v1793
        %v2160 = vmul.f32 %v2159, 0.6931472
        %v2161 = vlog2.pop %v1794
        %v2162 = vmul.f32 %v2161, 0.6931472
        %v2163 = vlog2.pop %v1795
        %v2164 = vmul.f32 %v2163, 0.6931472
        %v2165 = vlog2.pop %v1796
        %v2166 = vmul.f32 %v2165, 0.6931472
        %v2167 = vlog2.pop %v1797
        %v2168 = vmul.f32 %v2167, 0.6931472
        %v2169 = vlog2.pop %v1798
        %v2170 = vmul.f32 %v2169, 0.6931472
        %v2171 = vlog2.pop %v1799
        %v2172 = vmul.f32 %v2171, 0.6931472
        %v2173 = vlog2.pop %v1800
        %v2174 = vmul.f32 %v2173, 0.6931472
        %v2175 = vlog2.pop %v1801
        %v2176 = vmul.f32 %v2175, 0.6931472
        %v2177 = vlog2.pop %v1802
        %v2178 = vmul.f32 %v2177, 0.6931472
        %v2179 = vlog2.pop %v1803
        %v2180 = vmul.f32 %v2179, 0.6931472
        %v2181 = vlog2.pop %v1804
        %v2182 = vmul.f32 %v2181, 0.6931472
        %v2183 = vlog2.pop %v1805
        %v2184 = vmul.f32 %v2183, 0.6931472
        %v2185 = vlog2.pop %v1806
        %v2186 = vmul.f32 %v2185, 0.6931472
        %v2187 = vlog2.pop %v1807
        %v2188 = vmul.f32 %v2187, 0.6931472
        %v2189 = vlog2.pop %v1808
        %v2190 = vmul.f32 %v2189, 0.6931472
        %v2191 = vlog2.pop %v1809
        %v2192 = vmul.f32 %v2191, 0.6931472
        %v2193 = vlog2.pop %v1810
        %v2194 = vmul.f32 %v2193, 0.6931472
        %v2195 = vmul.f32 %v1235, %v1812
        %v2196 = vmul.f32 %v1236, %v1814
        %v2197 = vmul.f32 %v1237, %v1816
        %v2198 = vmul.f32 %v1238, %v1818
        %v2199 = vmul.f32 %v1239, %v1820
        %v2200 = vmul.f32 %v1240, %v1822
        %v2201 = vmul.f32 %v1241, %v1824
        %v2202 = vmul.f32 %v1242, %v1826
        %v2203 = vmul.f32 %v1243, %v1828
        %v2204 = vmul.f32 %v1244, %v1830
        %v2205 = vmul.f32 %v1245, %v1832
        %v2206 = vmul.f32 %v1246, %v1834
        %v2207 = vmul.f32 %v1247, %v1836
        %v2208 = vmul.f32 %v1248, %v1838
        %v2209 = vmul.f32 %v1249, %v1840
        %v2210 = vmul.f32 %v1250, %v1842
        %v2211 = vmul.f32 %v1251, %v1844
        %v2212 = vmul.f32 %v1252, %v1846
        %v2213 = vmul.f32 %v1253, %v1848
        %v2214 = vmul.f32 %v1254, %v1850
        %v2215 = vmul.f32 %v1255, %v1852
        %v2216 = vmul.f32 %v1256, %v1854
        %v2217 = vmul.f32 %v1257, %v1856
        %v2218 = vmul.f32 %v1258, %v1858
        %v2219 = vmul.f32 %v1259, %v1860
        %v2220 = vmul.f32 %v1260, %v1862
        %v2221 = vmul.f32 %v1261, %v1864
        %v2222 = vmul.f32 %v1262, %v1866
        %v2223 = vmul.f32 %v1263, %v1868
        %v2224 = vmul.f32 %v1264, %v1870
        %v2225 = vmul.f32 %v1265, %v1872
        %v2226 = vmul.f32 %v1266, %v1874
        %v2227 = vmul.f32 %v1267, %v1876
        %v2228 = vmul.f32 %v1268, %v1878
        %v2229 = vmul.f32 %v1269, %v1880
        %v2230 = vmul.f32 %v1270, %v1882
        %v2231 = vmul.f32 %v1271, %v1884
        %v2232 = vmul.f32 %v1272, %v1886
        %v2233 = vmul.f32 %v1273, %v1888
        %v2234 = vmul.f32 %v1274, %v1890
        %v2235 = vmul.f32 %v1275, %v1892
        %v2236 = vmul.f32 %v1276, %v1894
        %v2237 = vmul.f32 %v1277, %v1896
        %v2238 = vmul.f32 %v1278, %v1898
        %v2239 = vmul.f32 %v1279, %v1900
        %v2240 = vmul.f32 %v1280, %v1902
        %v2241 = vmul.f32 %v1281, %v1904
        %v2242 = vmul.f32 %v1282, %v1906
        %v2243 = vmul.f32 %v1283, %v1908
        %v2244 = vmul.f32 %v1284, %v1910
        %v2245 = vmul.f32 %v1285, %v1912
        %v2246 = vmul.f32 %v1286, %v1914
        %v2247 = vmul.f32 %v1287, %v1916
        %v2248 = vmul.f32 %v1288, %v1918
        %v2249 = vmul.f32 %v1289, %v1920
        %v2250 = vmul.f32 %v1290, %v1922
        %v2251 = vmul.f32 %v1291, %v1924
        %v2252 = vmul.f32 %v1292, %v1926
        %v2253 = vmul.f32 %v1293, %v1928
        %v2254 = vmul.f32 %v1294, %v1930
        %v2255 = vmul.f32 %v1295, %v1932
        %v2256 = vmul.f32 %v1296, %v1934
        %v2257 = vmul.f32 %v1297, %v1936
        %v2258 = vmul.f32 %v1298, %v1938
        %v2259 = vmul.f32 %v1299, %v1940
        %v2260 = vmul.f32 %v1300, %v1942
        %v2261 = vmul.f32 %v1301, %v1944
        %v2262 = vmul.f32 %v1302, %v1946
        %v2263 = vmul.f32 %v1303, %v1948
        %v2264 = vmul.f32 %v1304, %v1950
        %v2265 = vmul.f32 %v1305, %v1952
        %v2266 = vmul.f32 %v1306, %v1954
        %v2267 = vmul.f32 %v1307, %v1956
        %v2268 = vmul.f32 %v1308, %v1958
        %v2269 = vmul.f32 %v1309, %v1960
        %v2270 = vmul.f32 %v1310, %v1962
        %v2271 = vmul.f32 %v1311, %v1964
        %v2272 = vmul.f32 %v1312, %v1966
        %v2273 = vmul.f32 %v1313, %v1968
        %v2274 = vmul.f32 %v1314, %v1970
        %v2275 = vmul.f32 %v1315, %v1972
        %v2276 = vmul.f32 %v1316, %v1974
        %v2277 = vmul.f32 %v1317, %v1976
        %v2278 = vmul.f32 %v1318, %v1978
        %v2279 = vmul.f32 %v1319, %v1980
        %v2280 = vmul.f32 %v1320, %v1982
        %v2281 = vmul.f32 %v1321, %v1984
        %v2282 = vmul.f32 %v1322, %v1986
        %v2283 = vmul.f32 %v1323, %v1988
        %v2284 = vmul.f32 %v1324, %v1990
        %v2285 = vmul.f32 %v1325, %v1992
        %v2286 = vmul.f32 %v1326, %v1994
        %v2287 = vmul.f32 %v1327, %v1996
        %v2288 = vmul.f32 %v1328, %v1998
        %v2289 = vmul.f32 %v1329, %v2000
        %v2290 = vmul.f32 %v1330, %v2002
        %v2291 = vmul.f32 %v1331, %v2004
        %v2292 = vmul.f32 %v1332, %v2006
        %v2293 = vmul.f32 %v1333, %v2008
        %v2294 = vmul.f32 %v1334, %v2010
        %v2295 = vmul.f32 %v1335, %v2012
        %v2296 = vmul.f32 %v1336, %v2014
        %v2297 = vmul.f32 %v1337, %v2016
        %v2298 = vmul.f32 %v1338, %v2018
        %v2299 = vmul.f32 %v1339, %v2020
        %v2300 = vmul.f32 %v1340, %v2022
        %v2301 = vmul.f32 %v1341, %v2024
        %v2302 = vmul.f32 %v1342, %v2026
        %v2303 = vmul.f32 %v1343, %v2028
        %v2304 = vmul.f32 %v1344, %v2030
        %v2305 = vmul.f32 %v1345, %v2032
        %v2306 = vmul.f32 %v1346, %v2034
        %v2307 = vmul.f32 %v1347, %v2036
        %v2308 = vmul.f32 %v1348, %v2038
        %v2309 = vmul.f32 %v1349, %v2040
        %v2310 = vmul.f32 %v1350, %v2042
        %v2311 = vmul.f32 %v1351, %v2044
        %v2312 = vmul.f32 %v1352, %v2046
        %v2313 = vmul.f32 %v1353, %v2048
        %v2314 = vmul.f32 %v1354, %v2050
        %v2315 = vmul.f32 %v1355, %v2052
        %v2316 = vmul.f32 %v1356, %v2054
        %v2317 = vmul.f32 %v1357, %v2056
        %v2318 = vmul.f32 %v1358, %v2058
        %v2319 = vmul.f32 %v1359, %v2060
        %v2320 = vmul.f32 %v1360, %v2062
        %v2321 = vmul.f32 %v1361, %v2064
        %v2322 = vmul.f32 %v1362, %v2066
        %v2323 = vmul.f32 %v1363, %v2068
        %v2324 = vmul.f32 %v1364, %v2070
        %v2325 = vmul.f32 %v1365, %v2072
        %v2326 = vmul.f32 %v1366, %v2074
        %v2327 = vmul.f32 %v1367, %v2076
        %v2328 = vmul.f32 %v1368, %v2078
        %v2329 = vmul.f32 %v1369, %v2080
        %v2330 = vmul.f32 %v1370, %v2082
        %v2331 = vmul.f32 %v1371, %v2084
        %v2332 = vmul.f32 %v1372, %v2086
        %v2333 = vmul.f32 %v1373, %v2088
        %v2334 = vmul.f32 %v1374, %v2090
        %v2335 = vmul.f32 %v1375, %v2092
        %v2336 = vmul.f32 %v1376, %v2094
        %v2337 = vmul.f32 %v1377, %v2096
        %v2338 = vmul.f32 %v1378, %v2098
        %v2339 = vmul.f32 %v1379, %v2100
        %v2340 = vmul.f32 %v1380, %v2102
        %v2341 = vmul.f32 %v1381, %v2104
        %v2342 = vmul.f32 %v1382, %v2106
        %v2343 = vmul.f32 %v1383, %v2108
        %v2344 = vmul.f32 %v1384, %v2110
        %v2345 = vmul.f32 %v1385, %v2112
        %v2346 = vmul.f32 %v1386, %v2114
        %v2347 = vmul.f32 %v1387, %v2116
        %v2348 = vmul.f32 %v1388, %v2118
        %v2349 = vmul.f32 %v1389, %v2120
        %v2350 = vmul.f32 %v1390, %v2122
        %v2351 = vmul.f32 %v1391, %v2124
        %v2352 = vmul.f32 %v1392, %v2126
        %v2353 = vmul.f32 %v1393, %v2128
        %v2354 = vmul.f32 %v1394, %v2130
        %v2355 = vmul.f32 %v1395, %v2132
        %v2356 = vmul.f32 %v1396, %v2134
        %v2357 = vmul.f32 %v1397, %v2136
        %v2358 = vmul.f32 %v1398, %v2138
        %v2359 = vmul.f32 %v1399, %v2140
        %v2360 = vmul.f32 %v1400, %v2142
        %v2361 = vmul.f32 %v1401, %v2144
        %v2362 = vmul.f32 %v1402, %v2146
        %v2363 = vmul.f32 %v1403, %v2148
        %v2364 = vmul.f32 %v1404, %v2150
        %v2365 = vmul.f32 %v1405, %v2152
        %v2366 = vmul.f32 %v1406, %v2154
        %v2367 = vmul.f32 %v1407, %v2156
        %v2368 = vmul.f32 %v1408, %v2158
        %v2369 = vmul.f32 %v1409, %v2160
        %v2370 = vmul.f32 %v1410, %v2162
        %v2371 = vmul.f32 %v1411, %v2164
        %v2372 = vmul.f32 %v1412, %v2166
        %v2373 = vmul.f32 %v1413, %v2168
        %v2374 = vmul.f32 %v1414, %v2170
        %v2375 = vmul.f32 %v1415, %v2172
        %v2376 = vmul.f32 %v1416, %v2174
        %v2377 = vmul.f32 %v1417, %v2176
        %v2378 = vmul.f32 %v1418, %v2178
        %v2379 = vmul.f32 %v1419, %v2180
        %v2380 = vmul.f32 %v1420, %v2182
        %v2381 = vmul.f32 %v1421, %v2184
        %v2382 = vmul.f32 %v1422, %v2186
        %v2383 = vmul.f32 %v1423, %v2188
        %v2384 = vmul.f32 %v1424, %v2190
        %v2385 = vmul.f32 %v1425, %v2192
        %v2386 = vmul.f32 %v1426, %v2194
        %v2387 = vsel %vm1427, %v2195, 0.0
        %v2388 = vsel %vm1428, %v2196, 0.0
        %v2389 = vsel %vm1429, %v2197, 0.0
        %v2390 = vsel %vm1430, %v2198, 0.0
        %v2391 = vsel %vm1431, %v2199, 0.0
        %v2392 = vsel %vm1432, %v2200, 0.0
        %v2393 = vsel %vm1433, %v2201, 0.0
        %v2394 = vsel %vm1434, %v2202, 0.0
        %v2395 = vsel %vm1435, %v2203, 0.0
        %v2396 = vsel %vm1436, %v2204, 0.0
        %v2397 = vsel %vm1437, %v2205, 0.0
        %v2398 = vsel %vm1438, %v2206, 0.0
        %v2399 = vsel %vm1439, %v2207, 0.0
        %v2400 = vsel %vm1440, %v2208, 0.0
        %v2401 = vsel %vm1441, %v2209, 0.0
        %v2402 = vsel %vm1442, %v2210, 0.0
        %v2403 = vsel %vm1443, %v2211, 0.0
        %v2404 = vsel %vm1444, %v2212, 0.0
        %v2405 = vsel %vm1445, %v2213, 0.0
        %v2406 = vsel %vm1446, %v2214, 0.0
        %v2407 = vsel %vm1447, %v2215, 0.0
        %v2408 = vsel %vm1448, %v2216, 0.0
        %v2409 = vsel %vm1449, %v2217, 0.0
        %v2410 = vsel %vm1450, %v2218, 0.0
        %v2411 = vsel %vm1451, %v2219, 0.0
        %v2412 = vsel %vm1452, %v2220, 0.0
        %v2413 = vsel %vm1453, %v2221, 0.0
        %v2414 = vsel %vm1454, %v2222, 0.0
        %v2415 = vsel %vm1455, %v2223, 0.0
        %v2416 = vsel %vm1456, %v2224, 0.0
        %v2417 = vsel %vm1457, %v2225, 0.0
        %v2418 = vsel %vm1458, %v2226, 0.0
        %v2419 = vsel %vm1459, %v2227, 0.0
        %v2420 = vsel %vm1460, %v2228, 0.0
        %v2421 = vsel %vm1461, %v2229, 0.0
        %v2422 = vsel %vm1462, %v2230, 0.0
        %v2423 = vsel %vm1463, %v2231, 0.0
        %v2424 = vsel %vm1464, %v2232, 0.0
        %v2425 = vsel %vm1465, %v2233, 0.0
        %v2426 = vsel %vm1466, %v2234, 0.0
        %v2427 = vsel %vm1467, %v2235, 0.0
        %v2428 = vsel %vm1468, %v2236, 0.0
        %v2429 = vsel %vm1469, %v2237, 0.0
        %v2430 = vsel %vm1470, %v2238, 0.0
        %v2431 = vsel %vm1471, %v2239, 0.0
        %v2432 = vsel %vm1472, %v2240, 0.0
        %v2433 = vsel %vm1473, %v2241, 0.0
        %v2434 = vsel %vm1474, %v2242, 0.0
        %v2435 = vsel %vm1475, %v2243, 0.0
        %v2436 = vsel %vm1476, %v2244, 0.0
        %v2437 = vsel %vm1477, %v2245, 0.0
        %v2438 = vsel %vm1478, %v2246, 0.0
        %v2439 = vsel %vm1479, %v2247, 0.0
        %v2440 = vsel %vm1480, %v2248, 0.0
        %v2441 = vsel %vm1481, %v2249, 0.0
        %v2442 = vsel %vm1482, %v2250, 0.0
        %v2443 = vsel %vm1483, %v2251, 0.0
        %v2444 = vsel %vm1484, %v2252, 0.0
        %v2445 = vsel %vm1485, %v2253, 0.0
        %v2446 = vsel %vm1486, %v2254, 0.0
        %v2447 = vsel %vm1487, %v2255, 0.0
        %v2448 = vsel %vm1488, %v2256, 0.0
        %v2449 = vsel %vm1489, %v2257, 0.0
        %v2450 = vsel %vm1490, %v2258, 0.0
        %v2451 = vsel %vm1491, %v2259, 0.0
        %v2452 = vsel %vm1492, %v2260, 0.0
        %v2453 = vsel %vm1493, %v2261, 0.0
        %v2454 = vsel %vm1494, %v2262, 0.0
        %v2455 = vsel %vm1495, %v2263, 0.0
        %v2456 = vsel %vm1496, %v2264, 0.0
        %v2457 = vsel %vm1497, %v2265, 0.0
        %v2458 = vsel %vm1498, %v2266, 0.0
        %v2459 = vsel %vm1499, %v2267, 0.0
        %v2460 = vsel %vm1500, %v2268, 0.0
        %v2461 = vsel %vm1501, %v2269, 0.0
        %v2462 = vsel %vm1502, %v2270, 0.0
        %v2463 = vsel %vm1503, %v2271, 0.0
        %v2464 = vsel %vm1504, %v2272, 0.0
        %v2465 = vsel %vm1505, %v2273, 0.0
        %v2466 = vsel %vm1506, %v2274, 0.0
        %v2467 = vsel %vm1507, %v2275, 0.0
        %v2468 = vsel %vm1508, %v2276, 0.0
        %v2469 = vsel %vm1509, %v2277, 0.0
        %v2470 = vsel %vm1510, %v2278, 0.0
        %v2471 = vsel %vm1511, %v2279, 0.0
        %v2472 = vsel %vm1512, %v2280, 0.0
        %v2473 = vsel %vm1513, %v2281, 0.0
        %v2474 = vsel %vm1514, %v2282, 0.0
        %v2475 = vsel %vm1515, %v2283, 0.0
        %v2476 = vsel %vm1516, %v2284, 0.0
        %v2477 = vsel %vm1517, %v2285, 0.0
        %v2478 = vsel %vm1518, %v2286, 0.0
        %v2479 = vsel %vm1519, %v2287, 0.0
        %v2480 = vsel %vm1520, %v2288, 0.0
        %v2481 = vsel %vm1521, %v2289, 0.0
        %v2482 = vsel %vm1522, %v2290, 0.0
        %v2483 = vsel %vm1523, %v2291, 0.0
        %v2484 = vsel %vm1524, %v2292, 0.0
        %v2485 = vsel %vm1525, %v2293, 0.0
        %v2486 = vsel %vm1526, %v2294, 0.0
        %v2487 = vsel %vm1527, %v2295, 0.0
        %v2488 = vsel %vm1528, %v2296, 0.0
        %v2489 = vsel %vm1529, %v2297, 0.0
        %v2490 = vsel %vm1530, %v2298, 0.0
        %v2491 = vsel %vm1531, %v2299, 0.0
        %v2492 = vsel %vm1532, %v2300, 0.0
        %v2493 = vsel %vm1533, %v2301, 0.0
        %v2494 = vsel %vm1534, %v2302, 0.0
        %v2495 = vsel %vm1535, %v2303, 0.0
        %v2496 = vsel %vm1536, %v2304, 0.0
        %v2497 = vsel %vm1537, %v2305, 0.0
        %v2498 = vsel %vm1538, %v2306, 0.0
        %v2499 = vsel %vm1539, %v2307, 0.0
        %v2500 = vsel %vm1540, %v2308, 0.0
        %v2501 = vsel %vm1541, %v2309, 0.0
        %v2502 = vsel %vm1542, %v2310, 0.0
        %v2503 = vsel %vm1543, %v2311, 0.0
        %v2504 = vsel %vm1544, %v2312, 0.0
        %v2505 = vsel %vm1545, %v2313, 0.0
        %v2506 = vsel %vm1546, %v2314, 0.0
        %v2507 = vsel %vm1547, %v2315, 0.0
        %v2508 = vsel %vm1548, %v2316, 0.0
        %v2509 = vsel %vm1549, %v2317, 0.0
        %v2510 = vsel %vm1550, %v2318, 0.0
        %v2511 = vsel %vm1551, %v2319, 0.0
        %v2512 = vsel %vm1552, %v2320, 0.0
        %v2513 = vsel %vm1553, %v2321, 0.0
        %v2514 = vsel %vm1554, %v2322, 0.0
        %v2515 = vsel %vm1555, %v2323, 0.0
        %v2516 = vsel %vm1556, %v2324, 0.0
        %v2517 = vsel %vm1557, %v2325, 0.0
        %v2518 = vsel %vm1558, %v2326, 0.0
        %v2519 = vsel %vm1559, %v2327, 0.0
        %v2520 = vsel %vm1560, %v2328, 0.0
        %v2521 = vsel %vm1561, %v2329, 0.0
        %v2522 = vsel %vm1562, %v2330, 0.0
        %v2523 = vsel %vm1563, %v2331, 0.0
        %v2524 = vsel %vm1564, %v2332, 0.0
        %v2525 = vsel %vm1565, %v2333, 0.0
        %v2526 = vsel %vm1566, %v2334, 0.0
        %v2527 = vsel %vm1567, %v2335, 0.0
        %v2528 = vsel %vm1568, %v2336, 0.0
        %v2529 = vsel %vm1569, %v2337, 0.0
        %v2530 = vsel %vm1570, %v2338, 0.0
        %v2531 = vsel %vm1571, %v2339, 0.0
        %v2532 = vsel %vm1572, %v2340, 0.0
        %v2533 = vsel %vm1573, %v2341, 0.0
        %v2534 = vsel %vm1574, %v2342, 0.0
        %v2535 = vsel %vm1575, %v2343, 0.0
        %v2536 = vsel %vm1576, %v2344, 0.0
        %v2537 = vsel %vm1577, %v2345, 0.0
        %v2538 = vsel %vm1578, %v2346, 0.0
        %v2539 = vsel %vm1579, %v2347, 0.0
        %v2540 = vsel %vm1580, %v2348, 0.0
        %v2541 = vsel %vm1581, %v2349, 0.0
        %v2542 = vsel %vm1582, %v2350, 0.0
        %v2543 = vsel %vm1583, %v2351, 0.0
        %v2544 = vsel %vm1584, %v2352, 0.0
        %v2545 = vsel %vm1585, %v2353, 0.0
        %v2546 = vsel %vm1586, %v2354, 0.0
        %v2547 = vsel %vm1587, %v2355, 0.0
        %v2548 = vsel %vm1588, %v2356, 0.0
        %v2549 = vsel %vm1589, %v2357, 0.0
        %v2550 = vsel %vm1590, %v2358, 0.0
        %v2551 = vsel %vm1591, %v2359, 0.0
        %v2552 = vsel %vm1592, %v2360, 0.0
        %v2553 = vsel %vm1593, %v2361, 0.0
        %v2554 = vsel %vm1594, %v2362, 0.0
        %v2555 = vsel %vm1595, %v2363, 0.0
        %v2556 = vsel %vm1596, %v2364, 0.0
        %v2557 = vsel %vm1597, %v2365, 0.0
        %v2558 = vsel %vm1598, %v2366, 0.0
        %v2559 = vsel %vm1599, %v2367, 0.0
        %v2560 = vsel %vm1600, %v2368, 0.0
        %v2561 = vsel %vm1601, %v2369, 0.0
        %v2562 = vsel %vm1602, %v2370, 0.0
        %v2563 = vsel %vm1603, %v2371, 0.0
        %v2564 = vsel %vm1604, %v2372, 0.0
        %v2565 = vsel %vm1605, %v2373, 0.0
        %v2566 = vsel %vm1606, %v2374, 0.0
        %v2567 = vsel %vm1607, %v2375, 0.0
        %v2568 = vsel %vm1608, %v2376, 0.0
        %v2569 = vsel %vm1609, %v2377, 0.0
        %v2570 = vsel %vm1610, %v2378, 0.0
        %v2571 = vsel %vm1611, %v2379, 0.0
        %v2572 = vsel %vm1612, %v2380, 0.0
        %v2573 = vsel %vm1613, %v2381, 0.0
        %v2574 = vsel %vm1614, %v2382, 0.0
        %v2575 = vsel %vm1615, %v2383, 0.0
        %v2576 = vsel %vm1616, %v2384, 0.0
        %v2577 = vsel %vm1617, %v2385, 0.0
        %v2578 = vsel %vm1618, %v2386, 0.0
        %v2579 = vld [vmem:[%s287] sm:$0xff]
        %v2580 = vld [vmem:[%s287 + $0x8] sm:$0xf]
        %v2581 = vld [vmem:[%s316] sm:$0xf]
        %v2584 = vunpack.c.l.s4 1983009808
        %v2585 = vunpack.c.0.s8 %v2584
        %v2586 = vlaneseq
        %v2587 = vshrl.u32 %v2586, 7
        %v2588 = vsub.s32 %v2585, %v2587
        %v2589 = vrot.slane %v2581, %v2588
        %v2590 = vcombine.high %v2589, %v2589
        %2593 = vmatprep.subr.mxu0 %v2478
        %2594 = vmatpush1.msra.mxu0 %v2477
        %2595 = vmatprep.subr.mxu0 %v2472
        %2596 = vmatpush1.msra.mxu0 %v2471
        %2597 = vmatprep.subr.mxu0 %v2466
        %2598 = vmatpush1.msra.mxu0 %v2465
        %2599 = vmatprep.subr.mxu0 %v2460
        %2600 = vmatpush1.msra.mxu0 %v2459
        %2601 = vmatprep.subr.mxu0 %v2454
        %2602 = vmatpush1.msra.mxu0 %v2453
        %2603 = vmatprep.subr.mxu0 %v2448
        %2604 = vmatpush1.msra.mxu0 %v2447
        %2605 = vmatprep.subr.mxu0 %v2442
        %2606 = vmatpush1.msra.mxu0 %v2441
        %2607 = vmatprep.subr.mxu0 %v2436
        %2608 = vmatpush1.msra.mxu0 %v2435
        %2609 = vmatprep.subr.mxu0 %v2430
        %2610 = vmatpush1.msra.mxu0 %v2429
        %2611 = vmatprep.subr.mxu0 %v2424
        %2612 = vmatpush1.msra.mxu0 %v2423
        %2613 = vmatprep.subr.mxu0 %v2418
        %2614 = vmatpush1.msra.mxu0 %v2417
        %2615 = vmatprep.subr.mxu0 %v2412
        %2616 = vmatpush1.msra.mxu0 %v2411
        %2617 = vmatprep.subr.mxu0 %v2406
        %2618 = vmatpush1.msra.mxu0 %v2405
        %2619 = vmatprep.subr.mxu0 %v2400
        %2620 = vmatpush1.msra.mxu0 %v2399
        %2621 = vmatprep.subr.mxu0 %v2394
        %2622 = vmatpush1.msra.mxu0 %v2393
        %2623 = vmatprep.subr.mxu0 %v2388
        %2624 = vmatpush1.msra.mxu0 %v2387
        %2625 = vmatprep.subr.mxu0 %v2574
        %2626 = vmatpush2.msra.mxu0 %v2573
        %2627 = vmatprep.subr.mxu0 %v2568
        %2628 = vmatpush2.msra.mxu0 %v2567
        %2629 = vmatprep.subr.mxu0 %v2562
        %2630 = vmatpush2.msra.mxu0 %v2561
        %2631 = vmatprep.subr.mxu0 %v2556
        %2632 = vmatpush2.msra.mxu0 %v2555
        %2633 = vmatprep.subr.mxu0 %v2550
        %2634 = vmatpush2.msra.mxu0 %v2549
        %2635 = vmatprep.subr.mxu0 %v2544
        %2636 = vmatpush2.msra.mxu0 %v2543
        %2637 = vmatprep.subr.mxu0 %v2538
        %2638 = vmatpush2.msra.mxu0 %v2537
        %2639 = vmatprep.subr.mxu0 %v2532
        %2640 = vmatpush2.msra.mxu0 %v2531
        %2641 = vmatprep.subr.mxu0 %v2526
        %2642 = vmatpush2.msra.mxu0 %v2525
        %2643 = vmatprep.subr.mxu0 %v2520
        %2644 = vmatpush2.msra.mxu0 %v2519
        %2645 = vmatprep.subr.mxu0 %v2514
        %2646 = vmatpush2.msra.mxu0 %v2513
        %2647 = vmatprep.subr.mxu0 %v2508
        %2648 = vmatpush2.msra.mxu0 %v2507
        %2649 = vmatprep.subr.mxu0 %v2502
        %2650 = vmatpush2.msra.mxu0 %v2501
        %2651 = vmatprep.subr.mxu0 %v2496
        %2652 = vmatpush2.msra.mxu0 %v2495
        %2653 = vmatprep.subr.mxu0 %v2490
        %2654 = vmatpush2.msra.mxu0 %v2489
        %2655 = vmatprep.subr.mxu0 %v2484
        %2656 = vmatpush2.msra.mxu0 %v2483
        %2657 = vmatprep.mubr.f32.mxu0 %v2590
        %2658 = vmatmul.mubr.f32.gmra.mxu0 %v2589
        %v2659 = vpop.f32.mrf.mxu0
        %v2660 = vadd.f32 0.0, %v2659
        %v2661 = vpop.f32.mrf.mxu0
        %v2662 = vadd.f32 0.0, %v2661
        %2663 = vdwg.mxu0
        %2664 = vmatprep.subr.mxu0 %v2480
        %2665 = vmatpush1.msra.mxu0 %v2479
        %2666 = vmatprep.subr.mxu0 %v2474
        %2667 = vmatpush1.msra.mxu0 %v2473
        %2668 = vmatprep.subr.mxu0 %v2468
        %2669 = vmatpush1.msra.mxu0 %v2467
        %2670 = vmatprep.subr.mxu0 %v2462
        %2671 = vmatpush1.msra.mxu0 %v2461
        %2672 = vmatprep.subr.mxu0 %v2456
        %2673 = vmatpush1.msra.mxu0 %v2455
        %2674 = vmatprep.subr.mxu0 %v2450
        %2675 = vmatpush1.msra.mxu0 %v2449
        %2676 = vmatprep.subr.mxu0 %v2444
        %2677 = vmatpush1.msra.mxu0 %v2443
        %2678 = vmatprep.subr.mxu0 %v2438
        %2679 = vmatpush1.msra.mxu0 %v2437
        %2680 = vmatprep.subr.mxu0 %v2432
        %2681 = vmatpush1.msra.mxu0 %v2431
        %2682 = vmatprep.subr.mxu0 %v2426
        %2683 = vmatpush1.msra.mxu0 %v2425
        %2684 = vmatprep.subr.mxu0 %v2420
        %2685 = vmatpush1.msra.mxu0 %v2419
        %2686 = vmatprep.subr.mxu0 %v2414
        %2687 = vmatpush1.msra.mxu0 %v2413
        %2688 = vmatprep.subr.mxu0 %v2408
        %2689 = vmatpush1.msra.mxu0 %v2407
        %2690 = vmatprep.subr.mxu0 %v2402
        %2691 = vmatpush1.msra.mxu0 %v2401
        %2692 = vmatprep.subr.mxu0 %v2396
        %2693 = vmatpush1.msra.mxu0 %v2395
        %2694 = vmatprep.subr.mxu0 %v2390
        %2695 = vmatpush1.msra.mxu0 %v2389
        %2696 = vmatprep.subr.mxu0 %v2576
        %2697 = vmatpush2.msra.mxu0 %v2575
        %2698 = vmatprep.subr.mxu0 %v2570
        %2699 = vmatpush2.msra.mxu0 %v2569
        %2700 = vmatprep.subr.mxu0 %v2564
        %2701 = vmatpush2.msra.mxu0 %v2563
        %2702 = vmatprep.subr.mxu0 %v2558
        %2703 = vmatpush2.msra.mxu0 %v2557
        %2704 = vmatprep.subr.mxu0 %v2552
        %2705 = vmatpush2.msra.mxu0 %v2551
        %2706 = vmatprep.subr.mxu0 %v2546
        %2707 = vmatpush2.msra.mxu0 %v2545
        %2708 = vmatprep.subr.mxu0 %v2540
        %2709 = vmatpush2.msra.mxu0 %v2539
        %2710 = vmatprep.subr.mxu0 %v2534
        %2711 = vmatpush2.msra.mxu0 %v2533
        %2712 = vmatprep.subr.mxu0 %v2528
        %2713 = vmatpush2.msra.mxu0 %v2527
        %2714 = vmatprep.subr.mxu0 %v2522
        %2715 = vmatpush2.msra.mxu0 %v2521
        %2716 = vmatprep.subr.mxu0 %v2516
        %2717 = vmatpush2.msra.mxu0 %v2515
        %2718 = vmatprep.subr.mxu0 %v2510
        %2719 = vmatpush2.msra.mxu0 %v2509
        %2720 = vmatprep.subr.mxu0 %v2504
        %2721 = vmatpush2.msra.mxu0 %v2503
        %2722 = vmatprep.subr.mxu0 %v2498
        %2723 = vmatpush2.msra.mxu0 %v2497
        %2724 = vmatprep.subr.mxu0 %v2492
        %2725 = vmatpush2.msra.mxu0 %v2491
        %2726 = vmatprep.subr.mxu0 %v2486
        %2727 = vmatpush2.msra.mxu0 %v2485
        %2728 = vmatprep.mubr.f32.mxu0 %v2590
        %2729 = vmatmul.mubr.f32.gmra.mxu0 %v2589
        %v2730 = vpop.f32.mrf.mxu0
        %v2731 = vadd.f32 0.0, %v2730
        %v2732 = vpop.f32.mrf.mxu0
        %v2733 = vadd.f32 0.0, %v2732
        %2734 = vdwg.mxu0
        %2735 = vmatprep.subr.mxu0 %v2482
        %2736 = vmatpush1.msra.mxu0 %v2481
        %2737 = vmatprep.subr.mxu0 %v2476
        %2738 = vmatpush1.msra.mxu0 %v2475
        %2739 = vmatprep.subr.mxu0 %v2470
        %2740 = vmatpush1.msra.mxu0 %v2469
        %2741 = vmatprep.subr.mxu0 %v2464
        %2742 = vmatpush1.msra.mxu0 %v2463
        %2743 = vmatprep.subr.mxu0 %v2458
        %2744 = vmatpush1.msra.mxu0 %v2457
        %2745 = vmatprep.subr.mxu0 %v2452
        %2746 = vmatpush1.msra.mxu0 %v2451
        %2747 = vmatprep.subr.mxu0 %v2446
        %2748 = vmatpush1.msra.mxu0 %v2445
        %2749 = vmatprep.subr.mxu0 %v2440
        %2750 = vmatpush1.msra.mxu0 %v2439
        %2751 = vmatprep.subr.mxu0 %v2434
        %2752 = vmatpush1.msra.mxu0 %v2433
        %2753 = vmatprep.subr.mxu0 %v2428
        %2754 = vmatpush1.msra.mxu0 %v2427
        %2755 = vmatprep.subr.mxu0 %v2422
        %2756 = vmatpush1.msra.mxu0 %v2421
        %2757 = vmatprep.subr.mxu0 %v2416
        %2758 = vmatpush1.msra.mxu0 %v2415
        %2759 = vmatprep.subr.mxu0 %v2410
        %2760 = vmatpush1.msra.mxu0 %v2409
        %2761 = vmatprep.subr.mxu0 %v2404
        %2762 = vmatpush1.msra.mxu0 %v2403
        %2763 = vmatprep.subr.mxu0 %v2398
        %2764 = vmatpush1.msra.mxu0 %v2397
        %2765 = vmatprep.subr.mxu0 %v2392
        %2766 = vmatpush1.msra.mxu0 %v2391
        %2767 = vmatprep.subr.mxu0 %v2578
        %2768 = vmatpush2.msra.mxu0 %v2577
        %2769 = vmatprep.subr.mxu0 %v2572
        %2770 = vmatpush2.msra.mxu0 %v2571
        %2771 = vmatprep.subr.mxu0 %v2566
        %2772 = vmatpush2.msra.mxu0 %v2565
        %2773 = vmatprep.subr.mxu0 %v2560
        %2774 = vmatpush2.msra.mxu0 %v2559
        %2775 = vmatprep.subr.mxu0 %v2554
        %2776 = vmatpush2.msra.mxu0 %v2553
        %2777 = vmatprep.subr.mxu0 %v2548
        %2778 = vmatpush2.msra.mxu0 %v2547
        %2779 = vmatprep.subr.mxu0 %v2542
        %2780 = vmatpush2.msra.mxu0 %v2541
        %2781 = vmatprep.subr.mxu0 %v2536
        %2782 = vmatpush2.msra.mxu0 %v2535
        %2783 = vmatprep.subr.mxu0 %v2530
        %2784 = vmatpush2.msra.mxu0 %v2529
        %2785 = vmatprep.subr.mxu0 %v2524
        %2786 = vmatpush2.msra.mxu0 %v2523
        %2787 = vmatprep.subr.mxu0 %v2518
        %2788 = vmatpush2.msra.mxu0 %v2517
        %2789 = vmatprep.subr.mxu0 %v2512
        %2790 = vmatpush2.msra.mxu0 %v2511
        %2791 = vmatprep.subr.mxu0 %v2506
        %2792 = vmatpush2.msra.mxu0 %v2505
        %2793 = vmatprep.subr.mxu0 %v2500
        %2794 = vmatpush2.msra.mxu0 %v2499
        %2795 = vmatprep.subr.mxu0 %v2494
        %2796 = vmatpush2.msra.mxu0 %v2493
        %2797 = vmatprep.subr.mxu0 %v2488
        %2798 = vmatpush2.msra.mxu0 %v2487
        %2799 = vmatprep.mubr.f32.mxu0 %v2590
        %2800 = vmatmul.mubr.f32.gmra.mxu0 %v2589
        %v2801 = vpop.f32.mrf.mxu0
        %v2802 = vadd.f32 0.0, %v2801
        %v2803 = vpop.f32.mrf.mxu0
        %v2804 = vadd.f32 0.0, %v2803
        %2805 = vdwg.mxu0
        %v2812 = vcombine.low %v2660, %v2662
        %v2813 = vcombine.low %v2731, %v2733
        %v2815 = vunpack.c.l.s4 1983009808
        %v2816 = vunpack.c.0.s8 %v2815
        %v2817 = vlaneseq
        %v2818 = vshrl.u32 %v2817, 7
        %v2819 = vsub.s32 %v2816, %v2818
        %v2820 = vrot.slane %v2812, %v2819
        %v2822 = vunpack.c.l.s4 1983009808
        %v2823 = vunpack.c.0.s8 %v2822
        %v2824 = vlaneseq
        %v2825 = vshrl.u32 %v2824, 7
        %v2826 = vsub.s32 %v2823, %v2825
        %v2827 = vrot.slane %v2813, %v2826
        %v2828 = vcombine.low %v2820, %v2827
        %v2829 = vcombine.low %v2802, %v2804
        %v2831 = vunpack.c.l.s4 1983009808
        %v2832 = vunpack.c.0.s8 %v2831
        %v2833 = vlaneseq
        %v2834 = vshrl.u32 %v2833, 7
        %v2835 = vsub.s32 %v2832, %v2834
        %v2836 = vrot.slane %v2829, %v2835
        %v2839 = vadd.f32 %v2579, %v2828
        %v2840 = vadd.f32 %v2580, %v2836
        %2841 = vst [vmem:[%s287] sm:$0xff] %v2839
        %2842 = vst [vmem:[%s287 + $0x8] sm:$0xf] %v2840
        // Predicated region
        $region41: #{tpu_custom_call.1} parent=35 // pred_check
          %p2843 = pneg %p323
        $region42: #{tpu_custom_call.1} parent=35 // pred_check_branch
          %2845 = sbr.rel (%p2843) target = $region44
        $region43: #{tpu_custom_call.1} parent=35 // pred_region
          %v2846 = vld [vmem:[%s321] sm:$0x3]
          %v2847 = vmul.f32 %v361, -0.5
          %v2848 = vmul.f32 %v362, -0.5
          %v2849 = vmul.f32 %v363, -0.5
          %v2850 = vmul.f32 %v364, -0.5
          %v2851 = vmul.f32 %v365, -0.5
          %v2852 = vmul.f32 %v366, -0.5
          %v2853 = vld [vmem:[%s287] sm:$0xff]
          %v2854 = vld [vmem:[%s287 + $0x8] sm:$0xf]
          %2856 = vset.pattern.permute.xlu0 1
          %2857 = vperm.xlu0 %2856, %v2846
          %v2858 = vpop.permute.xlu0 %2857
          %v2860 = vlaneseq
          %v2861 = vshrl.u32 %v2860, 7
          %v2862 = vsub.s32 0, %v2861
          %v2863 = vrot.slane %v2847, %v2862
          %v2864 = vlaneseq
          %v2865 = vshrl.u32 %v2864, 7
          %v2866 = vsub.s32 0, %v2865
          %v2867 = vrot.slane %v2848, %v2866
          %v2868 = vlaneseq
          %v2869 = vshrl.u32 %v2868, 7
          %v2870 = vsub.s32 0, %v2869
          %v2871 = vrot.slane %v2849, %v2870
          %v2872 = vlaneseq
          %v2873 = vshrl.u32 %v2872, 7
          %v2874 = vsub.s32 0, %v2873
          %v2875 = vrot.slane %v2850, %v2874
          %v2876 = vlaneseq
          %v2877 = vshrl.u32 %v2876, 7
          %v2878 = vsub.s32 0, %v2877
          %v2879 = vrot.slane %v2851, %v2878
          %v2880 = vlaneseq
          %v2881 = vshrl.u32 %v2880, 7
          %v2882 = vsub.s32 0, %v2881
          %v2883 = vrot.slane %v2852, %v2882
          %v2884 = vmul.f32 %v2858, %v2863
          %v2885 = vmul.f32 %v2858, %v2867
          %v2886 = vmul.f32 %v2858, %v2871
          %v2887 = vmul.f32 %v2858, %v2875
          %v2888 = vmul.f32 %v2858, %v2879
          %v2889 = vmul.f32 %v2858, %v2883
          %2890 = vset.pattern.permute.xlu0 0
          %2891 = vperm.xlu0 %2890, %v2846
          %v2892 = vpop.permute.xlu0 %2891
          %v2894 = vadd.f32 %v2892, %v2884
          %v2895 = vadd.f32 %v2892, %v2885
          %v2896 = vadd.f32 %v2892, %v2886
          %v2897 = vadd.f32 %v2892, %v2887
          %v2898 = vadd.f32 %v2892, %v2888
          %v2899 = vadd.f32 %v2892, %v2889
          %2900 = vset.pattern.permute.xlu0 2
          %2901 = vperm.xlu0 %2900, %v2846
          %v2902 = vpop.permute.xlu0 %2901
          %v2904 = vlaneseq
          %v2905 = vshrl.u32 %v2904, 7
          %v2906 = vsub.s32 1, %v2905
          %v2907 = vrot.slane %v2847, %v2906
          %v2908 = vlaneseq
          %v2909 = vshrl.u32 %v2908, 7
          %v2910 = vsub.s32 1, %v2909
          %v2911 = vrot.slane %v2848, %v2910
          %v2912 = vlaneseq
          %v2913 = vshrl.u32 %v2912, 7
          %v2914 = vsub.s32 1, %v2913
          %v2915 = vrot.slane %v2849, %v2914
          %v2916 = vlaneseq
          %v2917 = vshrl.u32 %v2916, 7
          %v2918 = vsub.s32 1, %v2917
          %v2919 = vrot.slane %v2850, %v2918
          %v2920 = vlaneseq
          %v2921 = vshrl.u32 %v2920, 7
          %v2922 = vsub.s32 1, %v2921
          %v2923 = vrot.slane %v2851, %v2922
          %v2924 = vlaneseq
          %v2925 = vshrl.u32 %v2924, 7
          %v2926 = vsub.s32 1, %v2925
          %v2927 = vrot.slane %v2852, %v2926
          %v2928 = vmul.f32 %v2902, %v2907
          %v2929 = vmul.f32 %v2902, %v2911
          %v2930 = vmul.f32 %v2902, %v2915
          %v2931 = vmul.f32 %v2902, %v2919
          %v2932 = vmul.f32 %v2902, %v2923
          %v2933 = vmul.f32 %v2902, %v2927
          %v2934 = vadd.f32 %v2894, %v2928
          %v2935 = vadd.f32 %v2895, %v2929
          %v2936 = vadd.f32 %v2896, %v2930
          %v2937 = vadd.f32 %v2897, %v2931
          %v2938 = vadd.f32 %v2898, %v2932
          %v2939 = vadd.f32 %v2899, %v2933
          %v2946 = vcombine.low %v2934, %v2935
          %v2947 = vcombine.low %v2936, %v2937
          %v2949 = vunpack.c.l.s4 1983009808
          %v2950 = vunpack.c.0.s8 %v2949
          %v2951 = vlaneseq
          %v2952 = vshrl.u32 %v2951, 7
          %v2953 = vsub.s32 %v2950, %v2952
          %v2954 = vrot.slane %v2946, %v2953
          %v2956 = vunpack.c.l.s4 1983009808
          %v2957 = vunpack.c.0.s8 %v2956
          %v2958 = vlaneseq
          %v2959 = vshrl.u32 %v2958, 7
          %v2960 = vsub.s32 %v2957, %v2959
          %v2961 = vrot.slane %v2947, %v2960
          %v2962 = vcombine.low %v2954, %v2961
          %v2963 = vcombine.low %v2938, %v2939
          %v2965 = vunpack.c.l.s4 1983009808
          %v2966 = vunpack.c.0.s8 %v2965
          %v2967 = vlaneseq
          %v2968 = vshrl.u32 %v2967, 7
          %v2969 = vsub.s32 %v2966, %v2968
          %v2970 = vrot.slane %v2963, %v2969
          %v2973 = vadd.f32 %v2853, %v2962
          %v2974 = vadd.f32 %v2854, %v2970
          %2975 = vst [vmem:[%s287] sm:$0xff] %v2973
          %2976 = vst [vmem:[%s287 + $0x8] sm:$0xf] %v2974
        $region44: #{tpu_custom_call.1} parent=35 // pred_fallthru
          _
        %s2977 = sand.u32 %s157, 1
        %s2978 = scalar_lea.sflag [#allocation3], %s2977
        %s2979 = sand.u32 %s157, 1
        %s2980 = smul.addr %s2979, 12
        %s2981 = scalar_lea.vmem [#allocation2], %s2980
        // Predicated region
        $region45: #{tpu_custom_call.1} parent=35 // pred_check
          %p2982 = pneg %p167
        $region46: #{tpu_custom_call.1} parent=35 // pred_check_branch
          %2984 = sbr.rel (%p2982) target = $region48
        $region47: #{tpu_custom_call.1} parent=35 // pred_region
          %s2985 = smul.u32 6, %s24
          %s2987 = ssub.s32 192, 192
          %2988 = vsyncadd %s2978, %s2987
          %s2989 = smul.addr %s23, 6
          %s2990 = sadd.s32 %s2985, %s2989
          %s2991 = smul.addr %s2990, 32
          %s2992 = scalar_lea.hbm %s4, %s2991
          %s2994 = sshll.u32 %s2981, 4
          %s2995 = int_to_ptr.vmem [resolvable:$true] %s2994
          %2997 = dma.vmem_to_hbm [thread:$0]  %s2995, 192, %s2992, %s2978
        $region48: #{tpu_custom_call.1} parent=35 // pred_fallthru
          _
      $region36: #{tpu_custom_call.1} parent=5 // pred_fallthru
        _
      %p2998 = scmp.le.s32.totalorder 2, %s13
      // Predicated region
      $region49: #{tpu_custom_call.1} parent=5 // pred_check
        %p2999 = pneg %p2998
      $region50: #{tpu_custom_call.1} parent=5 // pred_check_branch
        %3001 = sbr.rel (%p2999) target = $region52
      $region51: #{tpu_custom_call.1} parent=5 // pred_region
        %s3002 = ssub.s32 %s13, 2
        // Predicated region
        $region53: #{tpu_custom_call.1} parent=51 // pred_check
          %p3003 = pneg %p173
        $region54: #{tpu_custom_call.1} parent=51 // pred_check_branch
          %3005 = sbr.rel (%p3003) target = $region56
        $region55: #{tpu_custom_call.1} parent=51 // pred_region
          %s3006 = sand.u32 %s158, 1
          %s3007 = scalar_lea.sflag [#allocation3], %s3006
          %s3008 = sand.u32 %s158, 1
          %s3009 = smul.addr %s3008, 12
          %s3010 = scalar_lea.vmem [#allocation2], %s3009
          %3011 = dma.done %s3007, 192
        $region56: #{tpu_custom_call.1} parent=51 // pred_fallthru
          _
      $region52: #{tpu_custom_call.1} parent=5 // pred_fallthru
        _
    $region6: #{tpu_custom_call.1} parent=1 // loop_footer
      %s17 = sadd.s32 1, %s13
    $region7: #{tpu_custom_call.1} parent=1 // loop_footer_branch
      %12 = sbr.rel target = $region3
    $region8: #{tpu_custom_call.1} parent=1 // loop_exit
      _
    %3012 = vsyncpa [#allocation3], 1
    %s3013 = scalar_lea.sflag [#allocation3], 1
    %3014 = vsyncpa %s3013, 1

</llo_original>
